<compile_context>
chip_gen: v5e
topology: v5e:2x2
jax: 0.10.0
libtpu: 0.0.40
codegen_flags: <defaults>
</compile_context>

<pallas_src>
import functools

import jax
import jax.numpy as jnp
from jax import lax
from jax.experimental import pallas as pl
from jax.experimental.pallas import tpu as pltpu


# ----------------------------------------------------------------------------
# Kernel
# ----------------------------------------------------------------------------
def _mha_kernel(q_ref, k_ref, v_ref,
                wq_ref, wk_ref, wv_ref, wo_ref,
                ln_g_ref, ln_b_ref,
                out_ref, attn_ref,
                *, n_head, d_k, d_v, mxu_dtype):
    f32 = jnp.float32
    Bt, Lq, D = q_ref.shape
    _, Lk, _ = k_ref.shape
    Nq = Bt * Lq
    Nk = Bt * Lk

    # Flatten the batch tile so the projection matmuls see a tall M dimension.
    xq = q_ref[...].reshape(Nq, D)                 # f32, also the residual
    xk = k_ref[...].reshape(Nk, D)
    xv = v_ref[...].reshape(Nk, D)
    xq_m = xq.astype(mxu_dtype)
    xk_m = xk.astype(mxu_dtype)
    xv_m = xv.astype(mxu_dtype)

    # Per-head projections: H plain 2-D MXU dots stacked on a leading (major)
    # axis -- no broadcast_in_dim replication of the activation slab.
    def project(xm, w_ref, seq_len, d_head):
        heads = [jnp.dot(xm, w_ref[h], preferred_element_type=f32)
                 for h in range(n_head)]
        y = jnp.stack(heads, axis=0)               # (H, Bt*L, d) f32
        # (H, Bt*L, d) -> (H*Bt, L, d): leading-dim split/merge only
        # (free because L % 8 == 0 is asserted by the wrapper).
        return y.reshape(n_head * Bt, seq_len, d_head).astype(mxu_dtype)

    qh = project(xq_m, wq_ref, Lq, d_k)            # 1/sqrt(d_k) folded into wq
    kh = project(xk_m, wk_ref, Lk, d_k)
    vh = project(xv_m, wv_ref, Lk, d_v)

    # Scaled dot-product attention: ONE batched contraction over (head, batch).
    # TODO(synk): slf_attn_mask path (masked_fill(mask == 0, -1e9)) is not
    #             implemented; it must be applied to `scores` before the max.
    # TODO(synk): for long Lk, chunk the softmax + PV over Lk (flash-style
    #             online softmax) instead of materializing full (H*Bt, Lq, Lk)
    #             f32 slabs -- this is the VMEM limiter at L >= 512 on v7x.
    scores = jnp.einsum("nqd,nkd->nqk", qh, kh,
                        preferred_element_type=f32)       # (H*Bt, Lq, Lk) f32
    m = jnp.max(scores, axis=-1, keepdims=True)
    e = jnp.exp(scores - m)
    denom = jnp.sum(e, axis=-1, keepdims=True)
    # approx reciprocal on the small denominator column (EUP slot); rows sum
    # to 1 to ~2^-12 relative accuracy.
    p = e * pl.reciprocal(denom, approx=True)

    # One lane-dense store of the attention probabilities, already batch-major
    # (Bt, H, Lq, Lk): only the two leading (major) dims are permuted, the
    # (8,128)-tiled minor dims are untouched -> no wrapper-side HBM transpose.
    p_store = p.astype(attn_ref.dtype).reshape(n_head, Bt, Lq, Lk)
    attn_ref[...] = jnp.transpose(p_store, (1, 0, 2, 3))

    # PV product, batched over (head, batch) in one contraction.
    ctx = jnp.einsum("nqk,nkd->nqd", p.astype(mxu_dtype), vh,
                     preferred_element_type=f32)          # (H*Bt, Lq, dv)
    ctx = ctx.reshape(n_head, Nq, d_v)                    # (H, Nq, dv)

    # Output projection: fc(concat_h ctx_h) == sum_h ctx_h @ Wo_h.  Per-head
    # dots, tree-reduced (short critical path, fewer live partials); residual
    # added once at the end (attn/output dropouts are identity in eval mode).
    partials = [jnp.dot(ctx[h].astype(mxu_dtype), wo_ref[h],
                        preferred_element_type=f32)
                for h in range(n_head)]
    while len(partials) > 1:
        nxt = [a + b for a, b in zip(partials[0::2], partials[1::2])]
        if len(partials) % 2:
            nxt.append(partials[-1])
        partials = nxt
    out = xq + partials[0]

    # LayerNorm (eps = 1e-6, matching nn.LayerNorm(d_model, eps=1e-06)), f32.
    mu = jnp.mean(out, axis=-1, keepdims=True)
    var = jnp.mean(jnp.square(out - mu), axis=-1, keepdims=True)
    out = (out - mu) * lax.rsqrt(var + 1e-6)
    out = out * ln_g_ref[...] + ln_b_ref[...]             # (1, D) lane-major

    out_ref[...] = out.reshape(Bt, Lq, D).astype(out_ref.dtype)


# ----------------------------------------------------------------------------
# Tiling / VMEM heuristics
# ----------------------------------------------------------------------------
def _vmem_capacity_bytes():
    try:
        cap = int(pltpu.get_tpu_info().vmem_capacity_bytes)
        if cap > 0:
            return cap
    except Exception:
        pass
    return 64 * 1024 * 1024      # conservative default (v7x per-core VMEM)


def _kernel_vmem_estimate(bt, Lq, Lk, D, d_k, d_v, n_head,
                          attn_bytes, mxu_bytes, weight_buffers=2):
    """Rough per-grid-step VMEM footprint (blocks + live intermediates)."""
    f32 = 4
    nq, nk = bt * Lq, bt * Lk
    io = 2 * f32 * (2 * nq * D + 2 * nk * D)                    # q,out + k,v (dbl buf)
    io += 2 * attn_bytes * bt * n_head * Lq * Lk                # attn output block
    w = weight_buffers * mxu_bytes * n_head * D * (2 * d_k + 2 * d_v)
    proj = (f32 + mxu_bytes) * n_head * bt * (Lq * d_k + Lk * d_k + Lk * d_v)
    soft = (3 * f32 + mxu_bytes + attn_bytes) * n_head * bt * Lq * Lk
    ctx = f32 * n_head * bt * Lq * d_v
    epi = 3 * f32 * nq * D
    return io + w + proj + soft + ctx + epi


def _pick_batch_tile(B, Lq, Lk, D, d_k, d_v, n_head, attn_bytes, mxu_bytes,
                     vmem_budget, row_target=512, min_grid_steps=2):
    """Largest batch tile that fits the VMEM budget, keeps Bt*Lq near the MXU
    row target, and leaves >= 2 grid steps for dual-TensorCore parts."""
    best = 1
    for bt in range(1, B + 1):
        if B % bt:
            continue
        if bt > 1:
            if bt * Lq > row_target:
                continue
            if B // bt < min_grid_steps:
                continue
            if _kernel_vmem_estimate(bt, Lq, Lk, D, d_k, d_v, n_head,
                                     attn_bytes, mxu_bytes) > vmem_budget:
                continue
        best = bt
    return best


def _const_spec(shape, pipeline_mode=None):
    """BlockSpec for a grid-invariant (constant index map) operand."""
    n = len(shape)
    if pipeline_mode is None:
        return pl.BlockSpec(shape, lambda i, _n=n: (0,) * _n)
    return pl.BlockSpec(shape, lambda i, _n=n: (0,) * _n,
                        pipeline_mode=pipeline_mode)


# ----------------------------------------------------------------------------
# Wrapper
# ----------------------------------------------------------------------------
def multi_head_attention(q, k, v, params, *, n_head,
                         mxu_dtype=jnp.bfloat16,
                         attn_dtype=jnp.bfloat16,
                         batch_tile=None):
    """Forward pass of the PyTorch MultiHeadAttention module (dropout = identity).

    q: (B, Lq, D), k/v: (B, Lk, D) float32.
    Returns (output (B, Lq, D), attn (B, H, Lq, Lk) in `attn_dtype`).
    """
    B, Lq, D = q.shape
    _, Lk, _ = k.shape
    assert k.shape == v.shape and k.shape[0] == B and k.shape[2] == D
    # Leading-dim reshapes inside the kernel are layout-free only when the
    # sublane (second-minor) dim stays tile-aligned.
    assert Lq % 8 == 0 and Lk % 8 == 0, "pad sequence lengths to a multiple of 8"

    d_k = params["wq"].shape[1] // n_head
    d_v = params["wv"].shape[1] // n_head
    assert params["wq"].shape == (D, n_head * d_k)
    assert params["wv"].shape == (D, n_head * d_v)
    assert params["wo"].shape == (n_head * d_v, D)

    # Host-side (free) weight re-layout: per-head leading dim; fold the softmax
    # 1/sqrt(d_k) scale into Wq; cast MXU operands (halves weight DMA for bf16).
    scale = 1.0 / float(d_k) ** 0.5
    wq3 = (params["wq"] * scale).reshape(D, n_head, d_k).transpose(1, 0, 2).astype(mxu_dtype)
    wk3 = params["wk"].reshape(D, n_head, d_k).transpose(1, 0, 2).astype(mxu_dtype)
    wv3 = params["wv"].reshape(D, n_head, d_v).transpose(1, 0, 2).astype(mxu_dtype)
    wo3 = params["wo"].reshape(n_head, d_v, D).astype(mxu_dtype)          # (H, dv, D)
    g2 = params["ln_g"].reshape(1, D).astype(jnp.float32)
    b2 = params["ln_b"].reshape(1, D).astype(jnp.float32)

    mxu_bytes = jnp.dtype(mxu_dtype).itemsize
    attn_bytes = jnp.dtype(attn_dtype).itemsize

    cap = _vmem_capacity_bytes()
    vmem_limit = int(cap * 0.85)       # ~108 MiB on 128 MiB parts, ~54 MiB on v7x
    vmem_budget = int(cap * 0.70)      # headroom for compiler scratch / spills

    if batch_tile is None:
        batch_tile = _pick_batch_tile(B, Lq, Lk, D, d_k, d_v, n_head,
                                      attn_bytes, mxu_bytes,
                                      vmem_budget=vmem_budget)
    bt = batch_tile
    assert B % bt == 0
    grid = (B // bt,)

    # Advisory cost estimate so XLA schedules neighbouring ops sensibly.
    flops = 2 * B * (Lq * D * n_head * d_k + Lk * D * n_head * d_k
                     + Lk * D * n_head * d_v
                     + n_head * Lq * Lk * (d_k + d_v)
                     + Lq * n_head * d_v * D)
    transcendentals = B * n_head * Lq * Lk
    bytes_accessed = (4 * (B * Lq * D + 2 * B * Lk * D)
                      + mxu_bytes * n_head * D * (2 * d_k + 2 * d_v)
                      + 4 * B * Lq * D
                      + attn_bytes * B * n_head * Lq * Lk)
    cost = pl.CostEstimate(flops=int(flops),
                           transcendentals=int(transcendentals),
                           bytes_accessed=int(bytes_accessed))

    kernel = functools.partial(_mha_kernel, n_head=n_head, d_k=d_k, d_v=d_v,
                               mxu_dtype=mxu_dtype)

    def run(single_buffer_weights):
        if single_buffer_weights:
            wspec = lambda s: _const_spec(s, pl.Buffered(1))   # noqa: E731
        else:
            wspec = _const_spec
        return pl.pallas_call(
            kernel,
            grid_spec=pltpu.PrefetchScalarGridSpec(
                num_scalar_prefetch=0,
                grid=grid,
                in_specs=[
                    pl.BlockSpec((bt, Lq, D), lambda i: (i, 0, 0)),       # q
                    pl.BlockSpec((bt, Lk, D), lambda i: (i, 0, 0)),       # k
                    pl.BlockSpec((bt, Lk, D), lambda i: (i, 0, 0)),       # v
                    wspec((n_head, D, d_k)),                              # wq (per head)
                    wspec((n_head, D, d_k)),                              # wk (per head)
                    wspec((n_head, D, d_v)),                              # wv (per head)
                    wspec((n_head, d_v, D)),                              # wo (per head)
                    wspec((1, D)), wspec((1, D)),                         # LN gamma/beta
                ],
                out_specs=[
                    pl.BlockSpec((bt, Lq, D), lambda i: (i, 0, 0)),             # output
                    pl.BlockSpec((bt, n_head, Lq, Lk), lambda i: (i, 0, 0, 0)), # attn
                ],
            ),
            out_shape=[
                jax.ShapeDtypeStruct((B, Lq, D), q.dtype),
                jax.ShapeDtypeStruct((B, n_head, Lq, Lk), attn_dtype),
            ],
            compiler_params=pltpu.CompilerParams(
                dimension_semantics=("parallel",),
                vmem_limit_bytes=vmem_limit,
            ),
            cost_estimate=cost,
        )(q, k, v, wq3, wk3, wv3, wo3, g2, b2)

    try:
        # Constant-index-map weight/LN blocks never change across grid steps;
        # single-buffer them to reclaim VMEM (matters at large D on v7x's 64 MiB).
        return run(single_buffer_weights=True)
    except Exception:
        # Fallback for Pallas versions where pipeline_mode=pl.Buffered(1) on
        # pallas_call BlockSpecs is not supported.
        return run(single_buffer_weights=False)


# ----------------------------------------------------------------------------
# Pure-JAX reference & test
# ----------------------------------------------------------------------------
def _reference(q, k, v, params, *, n_head):
    """Pure-JAX reference of the PyTorch forward (dropout = identity)."""
    B, Lq, D = q.shape
    d_k = params["wq"].shape[1] // n_head
    d_v = params["wv"].shape[1] // n_head
    residual = q
    qh = (q @ params["wq"]).reshape(B, Lq, n_head, d_k).transpose(0, 2, 1, 3)
    kh = (k @ params["wk"]).reshape(B, -1, n_head, d_k).transpose(0, 2, 1, 3)
    vh = (v @ params["wv"]).reshape(B, -1, n_head, d_v).transpose(0, 2, 1, 3)
    scores = jnp.einsum("bhqd,bhkd->bhqk", qh / (d_k ** 0.5), kh)
    attn = jax.nn.softmax(scores, axis=-1)
    o = jnp.einsum("bhqk,bhkd->bhqd", attn, vh)
    o = o.transpose(0, 2, 1, 3).reshape(B, Lq, n_head * d_v)
    o = o @ params["wo"] + residual
    mu = o.mean(-1, keepdims=True)
    var = ((o - mu) ** 2).mean(-1, keepdims=True)
    o = (o - mu) / jnp.sqrt(var + 1e-6) * params["ln_g"] + params["ln_b"]
    return o, attn


def make_params(key, d_model, n_head):
    d_k = d_model // n_head
    ks = jax.random.split(key, 4)
    s = 0.1
    return {
        "wq": s * jax.random.normal(ks[0], (d_model, n_head * d_k), jnp.float32),
        "wk": s * jax.random.normal(ks[1], (d_model, n_head * d_k), jnp.float32),
        "wv": s * jax.random.normal(ks[2], (d_model, n_head * d_k), jnp.float32),
        "wo": s * jax.random.normal(ks[3], (n_head * d_k, d_model), jnp.float32),
        "ln_g": jnp.ones((d_model,), jnp.float32),
        "ln_b": jnp.zeros((d_model,), jnp.float32),
    }


if __name__ == "__main__":
    B, L, d_model, n_head = 2, 8, 32, 4

    key = jax.random.PRNGKey(0)
    kx, kp = jax.random.split(key)
    x = jax.random.normal(kx, (B, L, d_model), jnp.float32)
    params = make_params(kp, d_model, n_head)

    ref_out, ref_attn = _reference(x, x, x, params, n_head=n_head)

    # f32 MXU path + f32 attention output (tight check against the reference).
    out32, attn32 = multi_head_attention(x, x, x, params, n_head=n_head,
                                         mxu_dtype=jnp.float32,
                                         attn_dtype=jnp.float32)
    jax.block_until_ready((out32, attn32))
    assert jnp.allclose(out32, ref_out, rtol=1e-2, atol=1e-2), "f32 output mismatch"
    assert jnp.allclose(attn32, ref_attn, rtol=1e-2, atol=1e-2), "f32 attn mismatch"

    # Default path: bf16 MXU operands + bf16 attention output, f32 accumulation.
    out16, attn16 = multi_head_attention(x, x, x, params, n_head=n_head)
    jax.block_until_ready((out16, attn16))
    assert jnp.allclose(out16, ref_out, rtol=5e-2, atol=5e-2), "bf16 output mismatch"
    assert jnp.allclose(attn16.astype(jnp.float32), ref_attn,
                        rtol=5e-2, atol=5e-2), "bf16 attn mismatch"

    print("KERNEL_OK")
</pallas_src>

<mosaic_0001>
module attributes {stable_mosaic.version = 11 : i64} {
  func.func @_mha_kernel(%arg0: i32, %arg1: memref<1x8x32xf32, #tpu.memory_space<vmem>>, %arg2: memref<1x8x32xf32, #tpu.memory_space<vmem>>, %arg3: memref<1x8x32xf32, #tpu.memory_space<vmem>>, %arg4: memref<4x32x8xf32, #tpu.memory_space<vmem>>, %arg5: memref<4x32x8xf32, #tpu.memory_space<vmem>>, %arg6: memref<4x32x8xf32, #tpu.memory_space<vmem>>, %arg7: memref<4x8x32xf32, #tpu.memory_space<vmem>>, %arg8: memref<1x32xf32, #tpu.memory_space<vmem>>, %arg9: memref<1x32xf32, #tpu.memory_space<vmem>>, %arg10: memref<1x8x32xf32, #tpu.memory_space<vmem>>, %arg11: memref<1x4x8x8xf32, #tpu.memory_space<vmem>>) attributes {dimension_semantics = [#tpu.dimension_semantics<parallel>], iteration_bounds = array<i64: 2>, scalar_prefetch = 0 : i64, scratch_operands = 0 : i64, tpu.core_type = #tpu.core_type<tc>, window_params = [{transform_indices = @transform_0, window_bounds = array<i64: 1, 8, 32>}, {transform_indices = @transform_1, window_bounds = array<i64: 1, 8, 32>}, {transform_indices = @transform_2, window_bounds = array<i64: 1, 8, 32>}, {pipeline_mode = #tpu.pipeline_mode<synchronous>, transform_indices = @transform_3, window_bounds = array<i64: 4, 32, 8>}, {pipeline_mode = #tpu.pipeline_mode<synchronous>, transform_indices = @transform_4, window_bounds = array<i64: 4, 32, 8>}, {pipeline_mode = #tpu.pipeline_mode<synchronous>, transform_indices = @transform_5, window_bounds = array<i64: 4, 32, 8>}, {pipeline_mode = #tpu.pipeline_mode<synchronous>, transform_indices = @transform_6, window_bounds = array<i64: 4, 8, 32>}, {pipeline_mode = #tpu.pipeline_mode<synchronous>, transform_indices = @transform_7, window_bounds = array<i64: 1, 32>}, {pipeline_mode = #tpu.pipeline_mode<synchronous>, transform_indices = @transform_8, window_bounds = array<i64: 1, 32>}, {transform_indices = @transform_9, window_bounds = array<i64: 1, 8, 32>}, {transform_indices = @transform_10, window_bounds = array<i64: 1, 4, 8, 8>}]} {
    %c0 = arith.constant 0 : index
    %c0_0 = arith.constant 0 : index
    %c0_1 = arith.constant 0 : index
    %0 = vector.load %arg1[%c0, %c0_0, %c0_1] : memref<1x8x32xf32, #tpu.memory_space<vmem>>, vector<1x8x32xf32>
    %1 = vector.shape_cast %0 : vector<1x8x32xf32> to vector<8x32xf32>
    %c0_2 = arith.constant 0 : index
    %c0_3 = arith.constant 0 : index
    %c0_4 = arith.constant 0 : index
    %2 = vector.load %arg2[%c0_2, %c0_3, %c0_4] : memref<1x8x32xf32, #tpu.memory_space<vmem>>, vector<1x8x32xf32>
    %3 = vector.shape_cast %2 : vector<1x8x32xf32> to vector<8x32xf32>
    %c0_5 = arith.constant 0 : index
    %c0_6 = arith.constant 0 : index
    %c0_7 = arith.constant 0 : index
    %4 = vector.load %arg3[%c0_5, %c0_6, %c0_7] : memref<1x8x32xf32, #tpu.memory_space<vmem>>, vector<1x8x32xf32>
    %5 = vector.shape_cast %4 : vector<1x8x32xf32> to vector<8x32xf32>
    %c0_8 = arith.constant 0 : index
    %c0_9 = arith.constant 0 : index
    %c0_10 = arith.constant 0 : index
    %6 = vector.load %arg4[%c0_8, %c0_9, %c0_10] : memref<4x32x8xf32, #tpu.memory_space<vmem>>, vector<1x32x8xf32>
    %7 = vector.shape_cast %6 : vector<1x32x8xf32> to vector<32x8xf32>
    %cst = arith.constant dense<0.000000e+00> : vector<8x8xf32>
    %8 = tpu.matmul %1, %7, %cst {dimension_numbers = #tpu.dot_dimension_numbers<[1], [0], [0], [1], [0, 0, 1, 1], [], []>} : vector<8x32xf32>, vector<32x8xf32>, vector<8x8xf32> -> vector<8x8xf32>
    %c1 = arith.constant 1 : index
    %c0_11 = arith.constant 0 : index
    %c0_12 = arith.constant 0 : index
    %9 = vector.load %arg4[%c1, %c0_11, %c0_12] : memref<4x32x8xf32, #tpu.memory_space<vmem>>, vector<1x32x8xf32>
    %10 = vector.shape_cast %9 : vector<1x32x8xf32> to vector<32x8xf32>
    %cst_13 = arith.constant dense<0.000000e+00> : vector<8x8xf32>
    %11 = tpu.matmul %1, %10, %cst_13 {dimension_numbers = #tpu.dot_dimension_numbers<[1], [0], [0], [1], [0, 0, 1, 1], [], []>} : vector<8x32xf32>, vector<32x8xf32>, vector<8x8xf32> -> vector<8x8xf32>
    %c2 = arith.constant 2 : index
    %c0_14 = arith.constant 0 : index
    %c0_15 = arith.constant 0 : index
    %12 = vector.load %arg4[%c2, %c0_14, %c0_15] : memref<4x32x8xf32, #tpu.memory_space<vmem>>, vector<1x32x8xf32>
    %13 = vector.shape_cast %12 : vector<1x32x8xf32> to vector<32x8xf32>
    %cst_16 = arith.constant dense<0.000000e+00> : vector<8x8xf32>
    %14 = tpu.matmul %1, %13, %cst_16 {dimension_numbers = #tpu.dot_dimension_numbers<[1], [0], [0], [1], [0, 0, 1, 1], [], []>} : vector<8x32xf32>, vector<32x8xf32>, vector<8x8xf32> -> vector<8x8xf32>
    %c3 = arith.constant 3 : index
    %c0_17 = arith.constant 0 : index
    %c0_18 = arith.constant 0 : index
    %15 = vector.load %arg4[%c3, %c0_17, %c0_18] : memref<4x32x8xf32, #tpu.memory_space<vmem>>, vector<1x32x8xf32>
    %16 = vector.shape_cast %15 : vector<1x32x8xf32> to vector<32x8xf32>
    %cst_19 = arith.constant dense<0.000000e+00> : vector<8x8xf32>
    %17 = tpu.matmul %1, %16, %cst_19 {dimension_numbers = #tpu.dot_dimension_numbers<[1], [0], [0], [1], [0, 0, 1, 1], [], []>} : vector<8x32xf32>, vector<32x8xf32>, vector<8x8xf32> -> vector<8x8xf32>
    %18 = vector.shape_cast %8 : vector<8x8xf32> to vector<1x8x8xf32>
    %19 = vector.shape_cast %11 : vector<8x8xf32> to vector<1x8x8xf32>
    %20 = vector.shape_cast %14 : vector<8x8xf32> to vector<1x8x8xf32>
    %21 = vector.shape_cast %17 : vector<8x8xf32> to vector<1x8x8xf32>
    %22 = tpu.concatenate %18, %19, %20, %21 in 0 : vector<1x8x8xf32>, vector<1x8x8xf32>, vector<1x8x8xf32>, vector<1x8x8xf32> -> vector<4x8x8xf32>
    %c0_20 = arith.constant 0 : index
    %c0_21 = arith.constant 0 : index
    %c0_22 = arith.constant 0 : index
    %23 = vector.load %arg5[%c0_20, %c0_21, %c0_22] : memref<4x32x8xf32, #tpu.memory_space<vmem>>, vector<1x32x8xf32>
    %24 = vector.shape_cast %23 : vector<1x32x8xf32> to vector<32x8xf32>
    %cst_23 = arith.constant dense<0.000000e+00> : vector<8x8xf32>
    %25 = tpu.matmul %3, %24, %cst_23 {dimension_numbers = #tpu.dot_dimension_numbers<[1], [0], [0], [1], [0, 0, 1, 1], [], []>} : vector<8x32xf32>, vector<32x8xf32>, vector<8x8xf32> -> vector<8x8xf32>
    %c1_24 = arith.constant 1 : index
    %c0_25 = arith.constant 0 : index
    %c0_26 = arith.constant 0 : index
    %26 = vector.load %arg5[%c1_24, %c0_25, %c0_26] : memref<4x32x8xf32, #tpu.memory_space<vmem>>, vector<1x32x8xf32>
    %27 = vector.shape_cast %26 : vector<1x32x8xf32> to vector<32x8xf32>
    %cst_27 = arith.constant dense<0.000000e+00> : vector<8x8xf32>
    %28 = tpu.matmul %3, %27, %cst_27 {dimension_numbers = #tpu.dot_dimension_numbers<[1], [0], [0], [1], [0, 0, 1, 1], [], []>} : vector<8x32xf32>, vector<32x8xf32>, vector<8x8xf32> -> vector<8x8xf32>
    %c2_28 = arith.constant 2 : index
    %c0_29 = arith.constant 0 : index
    %c0_30 = arith.constant 0 : index
    %29 = vector.load %arg5[%c2_28, %c0_29, %c0_30] : memref<4x32x8xf32, #tpu.memory_space<vmem>>, vector<1x32x8xf32>
    %30 = vector.shape_cast %29 : vector<1x32x8xf32> to vector<32x8xf32>
    %cst_31 = arith.constant dense<0.000000e+00> : vector<8x8xf32>
    %31 = tpu.matmul %3, %30, %cst_31 {dimension_numbers = #tpu.dot_dimension_numbers<[1], [0], [0], [1], [0, 0, 1, 1], [], []>} : vector<8x32xf32>, vector<32x8xf32>, vector<8x8xf32> -> vector<8x8xf32>
    %c3_32 = arith.constant 3 : index
    %c0_33 = arith.constant 0 : index
    %c0_34 = arith.constant 0 : index
    %32 = vector.load %arg5[%c3_32, %c0_33, %c0_34] : memref<4x32x8xf32, #tpu.memory_space<vmem>>, vector<1x32x8xf32>
    %33 = vector.shape_cast %32 : vector<1x32x8xf32> to vector<32x8xf32>
    %cst_35 = arith.constant dense<0.000000e+00> : vector<8x8xf32>
    %34 = tpu.matmul %3, %33, %cst_35 {dimension_numbers = #tpu.dot_dimension_numbers<[1], [0], [0], [1], [0, 0, 1, 1], [], []>} : vector<8x32xf32>, vector<32x8xf32>, vector<8x8xf32> -> vector<8x8xf32>
    %35 = vector.shape_cast %25 : vector<8x8xf32> to vector<1x8x8xf32>
    %36 = vector.shape_cast %28 : vector<8x8xf32> to vector<1x8x8xf32>
    %37 = vector.shape_cast %31 : vector<8x8xf32> to vector<1x8x8xf32>
    %38 = vector.shape_cast %34 : vector<8x8xf32> to vector<1x8x8xf32>
    %39 = tpu.concatenate %35, %36, %37, %38 in 0 : vector<1x8x8xf32>, vector<1x8x8xf32>, vector<1x8x8xf32>, vector<1x8x8xf32> -> vector<4x8x8xf32>
    %c0_36 = arith.constant 0 : index
    %c0_37 = arith.constant 0 : index
    %c0_38 = arith.constant 0 : index
    %40 = vector.load %arg6[%c0_36, %c0_37, %c0_38] : memref<4x32x8xf32, #tpu.memory_space<vmem>>, vector<1x32x8xf32>
    %41 = vector.shape_cast %40 : vector<1x32x8xf32> to vector<32x8xf32>
    %cst_39 = arith.constant dense<0.000000e+00> : vector<8x8xf32>
    %42 = tpu.matmul %5, %41, %cst_39 {dimension_numbers = #tpu.dot_dimension_numbers<[1], [0], [0], [1], [0, 0, 1, 1], [], []>} : vector<8x32xf32>, vector<32x8xf32>, vector<8x8xf32> -> vector<8x8xf32>
    %c1_40 = arith.constant 1 : index
    %c0_41 = arith.constant 0 : index
    %c0_42 = arith.constant 0 : index
    %43 = vector.load %arg6[%c1_40, %c0_41, %c0_42] : memref<4x32x8xf32, #tpu.memory_space<vmem>>, vector<1x32x8xf32>
    %44 = vector.shape_cast %43 : vector<1x32x8xf32> to vector<32x8xf32>
    %cst_43 = arith.constant dense<0.000000e+00> : vector<8x8xf32>
    %45 = tpu.matmul %5, %44, %cst_43 {dimension_numbers = #tpu.dot_dimension_numbers<[1], [0], [0], [1], [0, 0, 1, 1], [], []>} : vector<8x32xf32>, vector<32x8xf32>, vector<8x8xf32> -> vector<8x8xf32>
    %c2_44 = arith.constant 2 : index
    %c0_45 = arith.constant 0 : index
    %c0_46 = arith.constant 0 : index
    %46 = vector.load %arg6[%c2_44, %c0_45, %c0_46] : memref<4x32x8xf32, #tpu.memory_space<vmem>>, vector<1x32x8xf32>
    %47 = vector.shape_cast %46 : vector<1x32x8xf32> to vector<32x8xf32>
    %cst_47 = arith.constant dense<0.000000e+00> : vector<8x8xf32>
    %48 = tpu.matmul %5, %47, %cst_47 {dimension_numbers = #tpu.dot_dimension_numbers<[1], [0], [0], [1], [0, 0, 1, 1], [], []>} : vector<8x32xf32>, vector<32x8xf32>, vector<8x8xf32> -> vector<8x8xf32>
    %c3_48 = arith.constant 3 : index
    %c0_49 = arith.constant 0 : index
    %c0_50 = arith.constant 0 : index
    %49 = vector.load %arg6[%c3_48, %c0_49, %c0_50] : memref<4x32x8xf32, #tpu.memory_space<vmem>>, vector<1x32x8xf32>
    %50 = vector.shape_cast %49 : vector<1x32x8xf32> to vector<32x8xf32>
    %cst_51 = arith.constant dense<0.000000e+00> : vector<8x8xf32>
    %51 = tpu.matmul %5, %50, %cst_51 {dimension_numbers = #tpu.dot_dimension_numbers<[1], [0], [0], [1], [0, 0, 1, 1], [], []>} : vector<8x32xf32>, vector<32x8xf32>, vector<8x8xf32> -> vector<8x8xf32>
    %52 = vector.shape_cast %42 : vector<8x8xf32> to vector<1x8x8xf32>
    %53 = vector.shape_cast %45 : vector<8x8xf32> to vector<1x8x8xf32>
    %54 = vector.shape_cast %48 : vector<8x8xf32> to vector<1x8x8xf32>
    %55 = vector.shape_cast %51 : vector<8x8xf32> to vector<1x8x8xf32>
    %56 = tpu.concatenate %52, %53, %54, %55 in 0 : vector<1x8x8xf32>, vector<1x8x8xf32>, vector<1x8x8xf32>, vector<1x8x8xf32> -> vector<4x8x8xf32>
    "tpu.trace_start"() <{level = 10 : i32, message = "nqd,nkd->nqk"}> : () -> ()
    %cst_52 = arith.constant dense<0.000000e+00> : vector<4x8x8xf32>
    %57 = tpu.matmul %22, %39, %cst_52 {dimension_numbers = #tpu.dot_dimension_numbers<[2], [2], [1], [1], [0, 0, 0, 1, 1, 1], [0], [0]>} : vector<4x8x8xf32>, vector<4x8x8xf32>, vector<4x8x8xf32> -> vector<4x8x8xf32>
    "tpu.trace_stop"() : () -> ()
    %cst_53 = arith.constant dense<0xFF800000> : vector<4x8xf32>
    %58 = vector.multi_reduction <maximumf>, %57, %cst_53 [2] : vector<4x8x8xf32> to vector<4x8xf32>
    %59 = vector.shape_cast %58 : vector<4x8xf32> to vector<4x8x1xf32>
    %60 = vector.broadcast %59 : vector<4x8x1xf32> to vector<4x8x8xf32>
    %61 = arith.subf %57, %60 : vector<4x8x8xf32>
    %62 = math.exp %61 : vector<4x8x8xf32>
    %cst_54 = arith.constant dense<0.000000e+00> : vector<4x8xf32>
    %63 = vector.multi_reduction <add>, %62, %cst_54 [2] : vector<4x8x8xf32> to vector<4x8xf32>
    %64 = vector.shape_cast %63 : vector<4x8xf32> to vector<4x8x1xf32>
    %65 = tpu.reciprocal %64 {approx = true} : vector<4x8x1xf32> -> vector<4x8x1xf32>
    %66 = vector.broadcast %65 : vector<4x8x1xf32> to vector<4x8x8xf32>
    %67 = arith.mulf %62, %66 : vector<4x8x8xf32>
    %68 = vector.shape_cast %67 : vector<4x8x8xf32> to vector<4x1x8x8xf32>
    %69 = tpu.transpose %68, [1, 0, 2, 3] : vector<4x1x8x8xf32> -> vector<1x4x8x8xf32>
    %c0_55 = arith.constant 0 : index
    %c0_56 = arith.constant 0 : index
    %c0_57 = arith.constant 0 : index
    %c0_58 = arith.constant 0 : index
    %70 = vector.load %arg11[%c0_55, %c0_56, %c0_57, %c0_58] : memref<1x4x8x8xf32, #tpu.memory_space<vmem>>, vector<1x4x8x8xf32>
    tpu.vector_store %arg11[%c0_55, %c0_56, %c0_57, %c0_58], %69 {strides = array<i32>} : memref<1x4x8x8xf32, #tpu.memory_space<vmem>>, vector<1x4x8x8xf32>,
    "tpu.trace_start"() <{level = 10 : i32, message = "nqk,nkd->nqd"}> : () -> ()
    %cst_59 = arith.constant dense<0.000000e+00> : vector<4x8x8xf32>
    %71 = tpu.matmul %67, %56, %cst_59 {dimension_numbers = #tpu.dot_dimension_numbers<[2], [1], [1], [2], [0, 0, 0, 1, 1, 2], [0], [0]>} : vector<4x8x8xf32>, vector<4x8x8xf32>, vector<4x8x8xf32> -> vector<4x8x8xf32>
    "tpu.trace_stop"() : () -> ()
    %72 = vector.extract_strided_slice %71 {offsets = [0, 0, 0], sizes = [1, 8, 8], strides = [1, 1, 1]} : vector<4x8x8xf32> to vector<1x8x8xf32>
    %73 = vector.shape_cast %72 : vector<1x8x8xf32> to vector<8x8xf32>
    %c0_60 = arith.constant 0 : index
    %c0_61 = arith.constant 0 : index
    %c0_62 = arith.constant 0 : index
    %74 = vector.load %arg7[%c0_60, %c0_61, %c0_62] : memref<4x8x32xf32, #tpu.memory_space<vmem>>, vector<1x8x32xf32>
    %75 = vector.shape_cast %74 : vector<1x8x32xf32> to vector<8x32xf32>
    %cst_63 = arith.constant dense<0.000000e+00> : vector<8x32xf32>
    %76 = tpu.matmul %73, %75, %cst_63 {dimension_numbers = #tpu.dot_dimension_numbers<[1], [0], [0], [1], [0, 0, 1, 1], [], []>} : vector<8x8xf32>, vector<8x32xf32>, vector<8x32xf32> -> vector<8x32xf32>
    %77 = vector.extract_strided_slice %71 {offsets = [1, 0, 0], sizes = [1, 8, 8], strides = [1, 1, 1]} : vector<4x8x8xf32> to vector<1x8x8xf32>
    %78 = vector.shape_cast %77 : vector<1x8x8xf32> to vector<8x8xf32>
    %c1_64 = arith.constant 1 : index
    %c0_65 = arith.constant 0 : index
    %c0_66 = arith.constant 0 : index
    %79 = vector.load %arg7[%c1_64, %c0_65, %c0_66] : memref<4x8x32xf32, #tpu.memory_space<vmem>>, vector<1x8x32xf32>
    %80 = vector.shape_cast %79 : vector<1x8x32xf32> to vector<8x32xf32>
    %cst_67 = arith.constant dense<0.000000e+00> : vector<8x32xf32>
    %81 = tpu.matmul %78, %80, %cst_67 {dimension_numbers = #tpu.dot_dimension_numbers<[1], [0], [0], [1], [0, 0, 1, 1], [], []>} : vector<8x8xf32>, vector<8x32xf32>, vector<8x32xf32> -> vector<8x32xf32>
    %82 = vector.extract_strided_slice %71 {offsets = [2, 0, 0], sizes = [1, 8, 8], strides = [1, 1, 1]} : vector<4x8x8xf32> to vector<1x8x8xf32>
    %83 = vector.shape_cast %82 : vector<1x8x8xf32> to vector<8x8xf32>
    %c2_68 = arith.constant 2 : index
    %c0_69 = arith.constant 0 : index
    %c0_70 = arith.constant 0 : index
    %84 = vector.load %arg7[%c2_68, %c0_69, %c0_70] : memref<4x8x32xf32, #tpu.memory_space<vmem>>, vector<1x8x32xf32>
    %85 = vector.shape_cast %84 : vector<1x8x32xf32> to vector<8x32xf32>
    %cst_71 = arith.constant dense<0.000000e+00> : vector<8x32xf32>
    %86 = tpu.matmul %83, %85, %cst_71 {dimension_numbers = #tpu.dot_dimension_numbers<[1], [0], [0], [1], [0, 0, 1, 1], [], []>} : vector<8x8xf32>, vector<8x32xf32>, vector<8x32xf32> -> vector<8x32xf32>
    %87 = vector.extract_strided_slice %71 {offsets = [3, 0, 0], sizes = [1, 8, 8], strides = [1, 1, 1]} : vector<4x8x8xf32> to vector<1x8x8xf32>
    %88 = vector.shape_cast %87 : vector<1x8x8xf32> to vector<8x8xf32>
    %c3_72 = arith.constant 3 : index
    %c0_73 = arith.constant 0 : index
    %c0_74 = arith.constant 0 : index
    %89 = vector.load %arg7[%c3_72, %c0_73, %c0_74] : memref<4x8x32xf32, #tpu.memory_space<vmem>>, vector<1x8x32xf32>
    %90 = vector.shape_cast %89 : vector<1x8x32xf32> to vector<8x32xf32>
    %cst_75 = arith.constant dense<0.000000e+00> : vector<8x32xf32>
    %91 = tpu.matmul %88, %90, %cst_75 {dimension_numbers = #tpu.dot_dimension_numbers<[1], [0], [0], [1], [0, 0, 1, 1], [], []>} : vector<8x8xf32>, vector<8x32xf32>, vector<8x32xf32> -> vector<8x32xf32>
    %92 = arith.addf %76, %81 : vector<8x32xf32>
    %93 = arith.addf %86, %91 : vector<8x32xf32>
    %94 = arith.addf %92, %93 : vector<8x32xf32>
    %95 = arith.addf %1, %94 : vector<8x32xf32>
    %cst_76 = arith.constant dense<0.000000e+00> : vector<8xf32>
    %96 = vector.multi_reduction <add>, %95, %cst_76 [1] : vector<8x32xf32> to vector<8xf32>
    %97 = vector.shape_cast %96 : vector<8xf32> to vector<8x1xf32>
    %cst_77 = arith.constant 3.200000e+01 : f32
    %98 = vector.broadcast %cst_77 : f32 to vector<8x1xf32>
    %99 = arith.divf %97, %98 : vector<8x1xf32>
    %100 = vector.broadcast %99 : vector<8x1xf32> to vector<8x32xf32>
    %101 = arith.subf %95, %100 : vector<8x32xf32>
    %102 = arith.mulf %101, %101 : vector<8x32xf32>
    %cst_78 = arith.constant dense<0.000000e+00> : vector<8xf32>
    %103 = vector.multi_reduction <add>, %102, %cst_78 [1] : vector<8x32xf32> to vector<8xf32>
    %104 = vector.shape_cast %103 : vector<8xf32> to vector<8x1xf32>
    %cst_79 = arith.constant 3.200000e+01 : f32
    %105 = vector.broadcast %cst_79 : f32 to vector<8x1xf32>
    %106 = arith.divf %104, %105 : vector<8x1xf32>
    %107 = vector.broadcast %99 : vector<8x1xf32> to vector<8x32xf32>
    %108 = arith.subf %95, %107 : vector<8x32xf32>
    %cst_80 = arith.constant 9.99999997E-7 : f32
    %109 = vector.broadcast %cst_80 : f32 to vector<8x1xf32>
    %110 = arith.addf %106, %109 : vector<8x1xf32>
    %111 = math.rsqrt %110 : vector<8x1xf32>
    %112 = vector.broadcast %111 : vector<8x1xf32> to vector<8x32xf32>
    %113 = arith.mulf %108, %112 : vector<8x32xf32>
    %c0_81 = arith.constant 0 : index
    %c0_82 = arith.constant 0 : index
    %114 = vector.load %arg8[%c0_81, %c0_82] : memref<1x32xf32, #tpu.memory_space<vmem>>, vector<1x32xf32>
    %115 = vector.broadcast %114 : vector<1x32xf32> to vector<8x32xf32>
    %116 = arith.mulf %113, %115 : vector<8x32xf32>
    %c0_83 = arith.constant 0 : index
    %c0_84 = arith.constant 0 : index
    %117 = vector.load %arg9[%c0_83, %c0_84] : memref<1x32xf32, #tpu.memory_space<vmem>>, vector<1x32xf32>
    %118 = vector.broadcast %117 : vector<1x32xf32> to vector<8x32xf32>
    %119 = arith.addf %116, %118 : vector<8x32xf32>
    %120 = vector.shape_cast %119 : vector<8x32xf32> to vector<1x8x32xf32>
    %c0_85 = arith.constant 0 : index
    %c0_86 = arith.constant 0 : index
    %c0_87 = arith.constant 0 : index
    %121 = vector.load %arg10[%c0_85, %c0_86, %c0_87] : memref<1x8x32xf32, #tpu.memory_space<vmem>>, vector<1x8x32xf32>
    tpu.vector_store %arg10[%c0_85, %c0_86, %c0_87], %120 {strides = array<i32>} : memref<1x8x32xf32, #tpu.memory_space<vmem>>, vector<1x8x32xf32>,
    return
  }
  func.func @transform_0(%arg0: i32) -> (i32, i32, i32) {
    %c0_i32 = arith.constant 0 : i32
    %c0_i32_0 = arith.constant 0 : i32
    %c0_i32_1 = arith.constant 0 : i32
    return %arg0, %c0_i32, %c0_i32_0 : i32, i32, i32
  }
  func.func @transform_1(%arg0: i32) -> (i32, i32, i32) {
    %c0_i32 = arith.constant 0 : i32
    %c0_i32_0 = arith.constant 0 : i32
    %c0_i32_1 = arith.constant 0 : i32
    return %arg0, %c0_i32, %c0_i32_0 : i32, i32, i32
  }
  func.func @transform_2(%arg0: i32) -> (i32, i32, i32) {
    %c0_i32 = arith.constant 0 : i32
    %c0_i32_0 = arith.constant 0 : i32
    %c0_i32_1 = arith.constant 0 : i32
    return %arg0, %c0_i32, %c0_i32_0 : i32, i32, i32
  }
  func.func @transform_3(%arg0: i32) -> (i32, i32, i32) {
    %c0_i32 = arith.constant 0 : i32
    %c0_i32_0 = arith.constant 0 : i32
    %c0_i32_1 = arith.constant 0 : i32
    %c0_i32_2 = arith.constant 0 : i32
    return %c0_i32, %c0_i32_0, %c0_i32_1 : i32, i32, i32
  }
  func.func @transform_4(%arg0: i32) -> (i32, i32, i32) {
    %c0_i32 = arith.constant 0 : i32
    %c0_i32_0 = arith.constant 0 : i32
    %c0_i32_1 = arith.constant 0 : i32
    %c0_i32_2 = arith.constant 0 : i32
    return %c0_i32, %c0_i32_0, %c0_i32_1 : i32, i32, i32
  }
  func.func @transform_5(%arg0: i32) -> (i32, i32, i32) {
    %c0_i32 = arith.constant 0 : i32
    %c0_i32_0 = arith.constant 0 : i32
    %c0_i32_1 = arith.constant 0 : i32
    %c0_i32_2 = arith.constant 0 : i32
    return %c0_i32, %c0_i32_0, %c0_i32_1 : i32, i32, i32
  }
  func.func @transform_6(%arg0: i32) -> (i32, i32, i32) {
    %c0_i32 = arith.constant 0 : i32
    %c0_i32_0 = arith.constant 0 : i32
    %c0_i32_1 = arith.constant 0 : i32
    %c0_i32_2 = arith.constant 0 : i32
    return %c0_i32, %c0_i32_0, %c0_i32_1 : i32, i32, i32
  }
  func.func @transform_7(%arg0: i32) -> (i32, i32) {
    %c0_i32 = arith.constant 0 : i32
    %c0_i32_0 = arith.constant 0 : i32
    %c0_i32_1 = arith.constant 0 : i32
    return %c0_i32, %c0_i32_0 : i32, i32
  }
  func.func @transform_8(%arg0: i32) -> (i32, i32) {
    %c0_i32 = arith.constant 0 : i32
    %c0_i32_0 = arith.constant 0 : i32
    %c0_i32_1 = arith.constant 0 : i32
    return %c0_i32, %c0_i32_0 : i32, i32
  }
  func.func @transform_9(%arg0: i32) -> (i32, i32, i32) {
    %c0_i32 = arith.constant 0 : i32
    %c0_i32_0 = arith.constant 0 : i32
    %c0_i32_1 = arith.constant 0 : i32
    return %arg0, %c0_i32, %c0_i32_0 : i32, i32, i32
  }
  func.func @transform_10(%arg0: i32) -> (i32, i32, i32, i32) {
    %c0_i32 = arith.constant 0 : i32
    %c0_i32_0 = arith.constant 0 : i32
    %c0_i32_1 = arith.constant 0 : i32
    %c0_i32_2 = arith.constant 0 : i32
    return %arg0, %c0_i32, %c0_i32_0, %c0_i32_1 : i32, i32, i32, i32
  }
}

module attributes {stable_mosaic.version = 11 : i64} {
  func.func @_mha_kernel(%arg0: i32, %arg1: memref<1x8x32xf32, #tpu.memory_space<vmem>>, %arg2: memref<1x8x32xf32, #tpu.memory_space<vmem>>, %arg3: memref<1x8x32xf32, #tpu.memory_space<vmem>>, %arg4: memref<4x32x8xf32, #tpu.memory_space<vmem>>, %arg5: memref<4x32x8xf32, #tpu.memory_space<vmem>>, %arg6: memref<4x32x8xf32, #tpu.memory_space<vmem>>, %arg7: memref<4x8x32xf32, #tpu.memory_space<vmem>>, %arg8: memref<1x32xf32, #tpu.memory_space<vmem>>, %arg9: memref<1x32xf32, #tpu.memory_space<vmem>>, %arg10: memref<1x8x32xf32, #tpu.memory_space<vmem>>, %arg11: memref<1x4x8x8xf32, #tpu.memory_space<vmem>>) attributes {dimension_semantics = [#tpu.dimension_semantics<parallel>], iteration_bounds = array<i64: 2>, scalar_prefetch = 0 : i64, scratch_operands = 0 : i64, tpu.core_type = #tpu.core_type<tc>, window_params = [{transform_indices = @transform_0, window_bounds = array<i64: 1, 8, 32>}, {transform_indices = @transform_1, window_bounds = array<i64: 1, 8, 32>}, {transform_indices = @transform_2, window_bounds = array<i64: 1, 8, 32>}, {pipeline_mode = #tpu.pipeline_mode<synchronous>, transform_indices = @transform_3, window_bounds = array<i64: 4, 32, 8>}, {pipeline_mode = #tpu.pipeline_mode<synchronous>, transform_indices = @transform_4, window_bounds = array<i64: 4, 32, 8>}, {pipeline_mode = #tpu.pipeline_mode<synchronous>, transform_indices = @transform_5, window_bounds = array<i64: 4, 32, 8>}, {pipeline_mode = #tpu.pipeline_mode<synchronous>, transform_indices = @transform_6, window_bounds = array<i64: 4, 8, 32>}, {pipeline_mode = #tpu.pipeline_mode<synchronous>, transform_indices = @transform_7, window_bounds = array<i64: 1, 32>}, {pipeline_mode = #tpu.pipeline_mode<synchronous>, transform_indices = @transform_8, window_bounds = array<i64: 1, 32>}, {transform_indices = @transform_9, window_bounds = array<i64: 1, 8, 32>}, {transform_indices = @transform_10, window_bounds = array<i64: 1, 4, 8, 8>}]} {
    %c0 = arith.constant 0 : index
    %c0_0 = arith.constant 0 : index
    %c0_1 = arith.constant 0 : index
    %0 = vector.load %arg1[%c0, %c0_0, %c0_1] : memref<1x8x32xf32, #tpu.memory_space<vmem>>, vector<1x8x32xf32>
    %1 = vector.shape_cast %0 : vector<1x8x32xf32> to vector<8x32xf32>
    %c0_2 = arith.constant 0 : index
    %c0_3 = arith.constant 0 : index
    %c0_4 = arith.constant 0 : index
    %2 = vector.load %arg2[%c0_2, %c0_3, %c0_4] : memref<1x8x32xf32, #tpu.memory_space<vmem>>, vector<1x8x32xf32>
    %3 = vector.shape_cast %2 : vector<1x8x32xf32> to vector<8x32xf32>
    %c0_5 = arith.constant 0 : index
    %c0_6 = arith.constant 0 : index
    %c0_7 = arith.constant 0 : index
    %4 = vector.load %arg3[%c0_5, %c0_6, %c0_7] : memref<1x8x32xf32, #tpu.memory_space<vmem>>, vector<1x8x32xf32>
    %5 = vector.shape_cast %4 : vector<1x8x32xf32> to vector<8x32xf32>
    %c0_8 = arith.constant 0 : index
    %c0_9 = arith.constant 0 : index
    %c0_10 = arith.constant 0 : index
    %6 = vector.load %arg4[%c0_8, %c0_9, %c0_10] : memref<4x32x8xf32, #tpu.memory_space<vmem>>, vector<1x32x8xf32>
    %7 = vector.shape_cast %6 : vector<1x32x8xf32> to vector<32x8xf32>
    %cst = arith.constant dense<0.000000e+00> : vector<8x8xf32>
    %8 = tpu.matmul %1, %7, %cst {dimension_numbers = #tpu.dot_dimension_numbers<[1], [0], [0], [1], [0, 0, 1, 1], [], []>} : vector<8x32xf32>, vector<32x8xf32>, vector<8x8xf32> -> vector<8x8xf32>
    %c1 = arith.constant 1 : index
    %c0_11 = arith.constant 0 : index
    %c0_12 = arith.constant 0 : index
    %9 = vector.load %arg4[%c1, %c0_11, %c0_12] : memref<4x32x8xf32, #tpu.memory_space<vmem>>, vector<1x32x8xf32>
    %10 = vector.shape_cast %9 : vector<1x32x8xf32> to vector<32x8xf32>
    %cst_13 = arith.constant dense<0.000000e+00> : vector<8x8xf32>
    %11 = tpu.matmul %1, %10, %cst_13 {dimension_numbers = #tpu.dot_dimension_numbers<[1], [0], [0], [1], [0, 0, 1, 1], [], []>} : vector<8x32xf32>, vector<32x8xf32>, vector<8x8xf32> -> vector<8x8xf32>
    %c2 = arith.constant 2 : index
    %c0_14 = arith.constant 0 : index
    %c0_15 = arith.constant 0 : index
    %12 = vector.load %arg4[%c2, %c0_14, %c0_15] : memref<4x32x8xf32, #tpu.memory_space<vmem>>, vector<1x32x8xf32>
    %13 = vector.shape_cast %12 : vector<1x32x8xf32> to vector<32x8xf32>
    %cst_16 = arith.constant dense<0.000000e+00> : vector<8x8xf32>
    %14 = tpu.matmul %1, %13, %cst_16 {dimension_numbers = #tpu.dot_dimension_numbers<[1], [0], [0], [1], [0, 0, 1, 1], [], []>} : vector<8x32xf32>, vector<32x8xf32>, vector<8x8xf32> -> vector<8x8xf32>
    %c3 = arith.constant 3 : index
    %c0_17 = arith.constant 0 : index
    %c0_18 = arith.constant 0 : index
    %15 = vector.load %arg4[%c3, %c0_17, %c0_18] : memref<4x32x8xf32, #tpu.memory_space<vmem>>, vector<1x32x8xf32>
    %16 = vector.shape_cast %15 : vector<1x32x8xf32> to vector<32x8xf32>
    %cst_19 = arith.constant dense<0.000000e+00> : vector<8x8xf32>
    %17 = tpu.matmul %1, %16, %cst_19 {dimension_numbers = #tpu.dot_dimension_numbers<[1], [0], [0], [1], [0, 0, 1, 1], [], []>} : vector<8x32xf32>, vector<32x8xf32>, vector<8x8xf32> -> vector<8x8xf32>
    %18 = vector.shape_cast %8 : vector<8x8xf32> to vector<1x8x8xf32>
    %19 = vector.shape_cast %11 : vector<8x8xf32> to vector<1x8x8xf32>
    %20 = vector.shape_cast %14 : vector<8x8xf32> to vector<1x8x8xf32>
    %21 = vector.shape_cast %17 : vector<8x8xf32> to vector<1x8x8xf32>
    %22 = tpu.concatenate %18, %19, %20, %21 in 0 : vector<1x8x8xf32>, vector<1x8x8xf32>, vector<1x8x8xf32>, vector<1x8x8xf32> -> vector<4x8x8xf32>
    %c0_20 = arith.constant 0 : index
    %c0_21 = arith.constant 0 : index
    %c0_22 = arith.constant 0 : index
    %23 = vector.load %arg5[%c0_20, %c0_21, %c0_22] : memref<4x32x8xf32, #tpu.memory_space<vmem>>, vector<1x32x8xf32>
    %24 = vector.shape_cast %23 : vector<1x32x8xf32> to vector<32x8xf32>
    %cst_23 = arith.constant dense<0.000000e+00> : vector<8x8xf32>
    %25 = tpu.matmul %3, %24, %cst_23 {dimension_numbers = #tpu.dot_dimension_numbers<[1], [0], [0], [1], [0, 0, 1, 1], [], []>} : vector<8x32xf32>, vector<32x8xf32>, vector<8x8xf32> -> vector<8x8xf32>
    %c1_24 = arith.constant 1 : index
    %c0_25 = arith.constant 0 : index
    %c0_26 = arith.constant 0 : index
    %26 = vector.load %arg5[%c1_24, %c0_25, %c0_26] : memref<4x32x8xf32, #tpu.memory_space<vmem>>, vector<1x32x8xf32>
    %27 = vector.shape_cast %26 : vector<1x32x8xf32> to vector<32x8xf32>
    %cst_27 = arith.constant dense<0.000000e+00> : vector<8x8xf32>
    %28 = tpu.matmul %3, %27, %cst_27 {dimension_numbers = #tpu.dot_dimension_numbers<[1], [0], [0], [1], [0, 0, 1, 1], [], []>} : vector<8x32xf32>, vector<32x8xf32>, vector<8x8xf32> -> vector<8x8xf32>
    %c2_28 = arith.constant 2 : index
    %c0_29 = arith.constant 0 : index
    %c0_30 = arith.constant 0 : index
    %29 = vector.load %arg5[%c2_28, %c0_29, %c0_30] : memref<4x32x8xf32, #tpu.memory_space<vmem>>, vector<1x32x8xf32>
    %30 = vector.shape_cast %29 : vector<1x32x8xf32> to vector<32x8xf32>
    %cst_31 = arith.constant dense<0.000000e+00> : vector<8x8xf32>
    %31 = tpu.matmul %3, %30, %cst_31 {dimension_numbers = #tpu.dot_dimension_numbers<[1], [0], [0], [1], [0, 0, 1, 1], [], []>} : vector<8x32xf32>, vector<32x8xf32>, vector<8x8xf32> -> vector<8x8xf32>
    %c3_32 = arith.constant 3 : index
    %c0_33 = arith.constant 0 : index
    %c0_34 = arith.constant 0 : index
    %32 = vector.load %arg5[%c3_32, %c0_33, %c0_34] : memref<4x32x8xf32, #tpu.memory_space<vmem>>, vector<1x32x8xf32>
    %33 = vector.shape_cast %32 : vector<1x32x8xf32> to vector<32x8xf32>
    %cst_35 = arith.constant dense<0.000000e+00> : vector<8x8xf32>
    %34 = tpu.matmul %3, %33, %cst_35 {dimension_numbers = #tpu.dot_dimension_numbers<[1], [0], [0], [1], [0, 0, 1, 1], [], []>} : vector<8x32xf32>, vector<32x8xf32>, vector<8x8xf32> -> vector<8x8xf32>
    %35 = vector.shape_cast %25 : vector<8x8xf32> to vector<1x8x8xf32>
    %36 = vector.shape_cast %28 : vector<8x8xf32> to vector<1x8x8xf32>
    %37 = vector.shape_cast %31 : vector<8x8xf32> to vector<1x8x8xf32>
    %38 = vector.shape_cast %34 : vector<8x8xf32> to vector<1x8x8xf32>
    %39 = tpu.concatenate %35, %36, %37, %38 in 0 : vector<1x8x8xf32>, vector<1x8x8xf32>, vector<1x8x8xf32>, vector<1x8x8xf32> -> vector<4x8x8xf32>
    %c0_36 = arith.constant 0 : index
    %c0_37 = arith.constant 0 : index
    %c0_38 = arith.constant 0 : index
    %40 = vector.load %arg6[%c0_36, %c0_37, %c0_38] : memref<4x32x8xf32, #tpu.memory_space<vmem>>, vector<1x32x8xf32>
    %41 = vector.shape_cast %40 : vector<1x32x8xf32> to vector<32x8xf32>
    %cst_39 = arith.constant dense<0.000000e+00> : vector<8x8xf32>
    %42 = tpu.matmul %5, %41, %cst_39 {dimension_numbers = #tpu.dot_dimension_numbers<[1], [0], [0], [1], [0, 0, 1, 1], [], []>} : vector<8x32xf32>, vector<32x8xf32>, vector<8x8xf32> -> vector<8x8xf32>
    %c1_40 = arith.constant 1 : index
    %c0_41 = arith.constant 0 : index
    %c0_42 = arith.constant 0 : index
    %43 = vector.load %arg6[%c1_40, %c0_41, %c0_42] : memref<4x32x8xf32, #tpu.memory_space<vmem>>, vector<1x32x8xf32>
    %44 = vector.shape_cast %43 : vector<1x32x8xf32> to vector<32x8xf32>
    %cst_43 = arith.constant dense<0.000000e+00> : vector<8x8xf32>
    %45 = tpu.matmul %5, %44, %cst_43 {dimension_numbers = #tpu.dot_dimension_numbers<[1], [0], [0], [1], [0, 0, 1, 1], [], []>} : vector<8x32xf32>, vector<32x8xf32>, vector<8x8xf32> -> vector<8x8xf32>
    %c2_44 = arith.constant 2 : index
    %c0_45 = arith.constant 0 : index
    %c0_46 = arith.constant 0 : index
    %46 = vector.load %arg6[%c2_44, %c0_45, %c0_46] : memref<4x32x8xf32, #tpu.memory_space<vmem>>, vector<1x32x8xf32>
    %47 = vector.shape_cast %46 : vector<1x32x8xf32> to vector<32x8xf32>
    %cst_47 = arith.constant dense<0.000000e+00> : vector<8x8xf32>
    %48 = tpu.matmul %5, %47, %cst_47 {dimension_numbers = #tpu.dot_dimension_numbers<[1], [0], [0], [1], [0, 0, 1, 1], [], []>} : vector<8x32xf32>, vector<32x8xf32>, vector<8x8xf32> -> vector<8x8xf32>
    %c3_48 = arith.constant 3 : index
    %c0_49 = arith.constant 0 : index
    %c0_50 = arith.constant 0 : index
    %49 = vector.load %arg6[%c3_48, %c0_49, %c0_50] : memref<4x32x8xf32, #tpu.memory_space<vmem>>, vector<1x32x8xf32>
    %50 = vector.shape_cast %49 : vector<1x32x8xf32> to vector<32x8xf32>
    %cst_51 = arith.constant dense<0.000000e+00> : vector<8x8xf32>
    %51 = tpu.matmul %5, %50, %cst_51 {dimension_numbers = #tpu.dot_dimension_numbers<[1], [0], [0], [1], [0, 0, 1, 1], [], []>} : vector<8x32xf32>, vector<32x8xf32>, vector<8x8xf32> -> vector<8x8xf32>
    %52 = vector.shape_cast %42 : vector<8x8xf32> to vector<1x8x8xf32>
    %53 = vector.shape_cast %45 : vector<8x8xf32> to vector<1x8x8xf32>
    %54 = vector.shape_cast %48 : vector<8x8xf32> to vector<1x8x8xf32>
    %55 = vector.shape_cast %51 : vector<8x8xf32> to vector<1x8x8xf32>
    %56 = tpu.concatenate %52, %53, %54, %55 in 0 : vector<1x8x8xf32>, vector<1x8x8xf32>, vector<1x8x8xf32>, vector<1x8x8xf32> -> vector<4x8x8xf32>
    "tpu.trace_start"() <{level = 10 : i32, message = "nqd,nkd->nqk"}> : () -> ()
    %cst_52 = arith.constant dense<0.000000e+00> : vector<4x8x8xf32>
    %57 = tpu.matmul %22, %39, %cst_52 {dimension_numbers = #tpu.dot_dimension_numbers<[2], [2], [1], [1], [0, 0, 0, 1, 1, 1], [0], [0]>} : vector<4x8x8xf32>, vector<4x8x8xf32>, vector<4x8x8xf32> -> vector<4x8x8xf32>
    "tpu.trace_stop"() : () -> ()
    %cst_53 = arith.constant dense<0xFF800000> : vector<4x8xf32>
    %58 = vector.multi_reduction <maximumf>, %57, %cst_53 [2] : vector<4x8x8xf32> to vector<4x8xf32>
    %59 = vector.shape_cast %58 : vector<4x8xf32> to vector<4x8x1xf32>
    %60 = vector.broadcast %59 : vector<4x8x1xf32> to vector<4x8x8xf32>
    %61 = arith.subf %57, %60 : vector<4x8x8xf32>
    %62 = math.exp %61 : vector<4x8x8xf32>
    %cst_54 = arith.constant dense<0.000000e+00> : vector<4x8xf32>
    %63 = vector.multi_reduction <add>, %62, %cst_54 [2] : vector<4x8x8xf32> to vector<4x8xf32>
    %64 = vector.shape_cast %63 : vector<4x8xf32> to vector<4x8x1xf32>
    %65 = tpu.reciprocal %64 {approx = true} : vector<4x8x1xf32> -> vector<4x8x1xf32>
    %66 = vector.broadcast %65 : vector<4x8x1xf32> to vector<4x8x8xf32>
    %67 = arith.mulf %62, %66 : vector<4x8x8xf32>
    %68 = vector.shape_cast %67 : vector<4x8x8xf32> to vector<4x1x8x8xf32>
    %69 = tpu.transpose %68, [1, 0, 2, 3] : vector<4x1x8x8xf32> -> vector<1x4x8x8xf32>
    %c0_55 = arith.constant 0 : index
    %c0_56 = arith.constant 0 : index
    %c0_57 = arith.constant 0 : index
    %c0_58 = arith.constant 0 : index
    %70 = vector.load %arg11[%c0_55, %c0_56, %c0_57, %c0_58] : memref<1x4x8x8xf32, #tpu.memory_space<vmem>>, vector<1x4x8x8xf32>
    tpu.vector_store %arg11[%c0_55, %c0_56, %c0_57, %c0_58], %69 {strides = array<i32>} : memref<1x4x8x8xf32, #tpu.memory_space<vmem>>, vector<1x4x8x8xf32>,
    "tpu.trace_start"() <{level = 10 : i32, message = "nqk,nkd->nqd"}> : () -> ()
    %cst_59 = arith.constant dense<0.000000e+00> : vector<4x8x8xf32>
    %71 = tpu.matmul %67, %56, %cst_59 {dimension_numbers = #tpu.dot_dimension_numbers<[2], [1], [1], [2], [0, 0, 0, 1, 1, 2], [0], [0]>} : vector<4x8x8xf32>, vector<4x8x8xf32>, vector<4x8x8xf32> -> vector<4x8x8xf32>
    "tpu.trace_stop"() : () -> ()
    %72 = vector.extract_strided_slice %71 {offsets = [0, 0, 0], sizes = [1, 8, 8], strides = [1, 1, 1]} : vector<4x8x8xf32> to vector<1x8x8xf32>
    %73 = vector.shape_cast %72 : vector<1x8x8xf32> to vector<8x8xf32>
    %c0_60 = arith.constant 0 : index
    %c0_61 = arith.constant 0 : index
    %c0_62 = arith.constant 0 : index
    %74 = vector.load %arg7[%c0_60, %c0_61, %c0_62] : memref<4x8x32xf32, #tpu.memory_space<vmem>>, vector<1x8x32xf32>
    %75 = vector.shape_cast %74 : vector<1x8x32xf32> to vector<8x32xf32>
    %cst_63 = arith.constant dense<0.000000e+00> : vector<8x32xf32>
    %76 = tpu.matmul %73, %75, %cst_63 {dimension_numbers = #tpu.dot_dimension_numbers<[1], [0], [0], [1], [0, 0, 1, 1], [], []>} : vector<8x8xf32>, vector<8x32xf32>, vector<8x32xf32> -> vector<8x32xf32>
    %77 = vector.extract_strided_slice %71 {offsets = [1, 0, 0], sizes = [1, 8, 8], strides = [1, 1, 1]} : vector<4x8x8xf32> to vector<1x8x8xf32>
    %78 = vector.shape_cast %77 : vector<1x8x8xf32> to vector<8x8xf32>
    %c1_64 = arith.constant 1 : index
    %c0_65 = arith.constant 0 : index
    %c0_66 = arith.constant 0 : index
    %79 = vector.load %arg7[%c1_64, %c0_65, %c0_66] : memref<4x8x32xf32, #tpu.memory_space<vmem>>, vector<1x8x32xf32>
    %80 = vector.shape_cast %79 : vector<1x8x32xf32> to vector<8x32xf32>
    %cst_67 = arith.constant dense<0.000000e+00> : vector<8x32xf32>
    %81 = tpu.matmul %78, %80, %cst_67 {dimension_numbers = #tpu.dot_dimension_numbers<[1], [0], [0], [1], [0, 0, 1, 1], [], []>} : vector<8x8xf32>, vector<8x32xf32>, vector<8x32xf32> -> vector<8x32xf32>
    %82 = vector.extract_strided_slice %71 {offsets = [2, 0, 0], sizes = [1, 8, 8], strides = [1, 1, 1]} : vector<4x8x8xf32> to vector<1x8x8xf32>
    %83 = vector.shape_cast %82 : vector<1x8x8xf32> to vector<8x8xf32>
    %c2_68 = arith.constant 2 : index
    %c0_69 = arith.constant 0 : index
    %c0_70 = arith.constant 0 : index
    %84 = vector.load %arg7[%c2_68, %c0_69, %c0_70] : memref<4x8x32xf32, #tpu.memory_space<vmem>>, vector<1x8x32xf32>
    %85 = vector.shape_cast %84 : vector<1x8x32xf32> to vector<8x32xf32>
    %cst_71 = arith.constant dense<0.000000e+00> : vector<8x32xf32>
    %86 = tpu.matmul %83, %85, %cst_71 {dimension_numbers = #tpu.dot_dimension_numbers<[1], [0], [0], [1], [0, 0, 1, 1], [], []>} : vector<8x8xf32>, vector<8x32xf32>, vector<8x32xf32> -> vector<8x32xf32>
    %87 = vector.extract_strided_slice %71 {offsets = [3, 0, 0], sizes = [1, 8, 8], strides = [1, 1, 1]} : vector<4x8x8xf32> to vector<1x8x8xf32>
    %88 = vector.shape_cast %87 : vector<1x8x8xf32> to vector<8x8xf32>
    %c3_72 = arith.constant 3 : index
    %c0_73 = arith.constant 0 : index
    %c0_74 = arith.constant 0 : index
    %89 = vector.load %arg7[%c3_72, %c0_73, %c0_74] : memref<4x8x32xf32, #tpu.memory_space<vmem>>, vector<1x8x32xf32>
    %90 = vector.shape_cast %89 : vector<1x8x32xf32> to vector<8x32xf32>
    %cst_75 = arith.constant dense<0.000000e+00> : vector<8x32xf32>
    %91 = tpu.matmul %88, %90, %cst_75 {dimension_numbers = #tpu.dot_dimension_numbers<[1], [0], [0], [1], [0, 0, 1, 1], [], []>} : vector<8x8xf32>, vector<8x32xf32>, vector<8x32xf32> -> vector<8x32xf32>
    %92 = arith.addf %76, %81 : vector<8x32xf32>
    %93 = arith.addf %86, %91 : vector<8x32xf32>
    %94 = arith.addf %92, %93 : vector<8x32xf32>
    %95 = arith.addf %1, %94 : vector<8x32xf32>
    %cst_76 = arith.constant dense<0.000000e+00> : vector<8xf32>
    %96 = vector.multi_reduction <add>, %95, %cst_76 [1] : vector<8x32xf32> to vector<8xf32>
    %97 = vector.shape_cast %96 : vector<8xf32> to vector<8x1xf32>
    %cst_77 = arith.constant 3.200000e+01 : f32
    %98 = vector.broadcast %cst_77 : f32 to vector<8x1xf32>
    %99 = arith.divf %97, %98 : vector<8x1xf32>
    %100 = vector.broadcast %99 : vector<8x1xf32> to vector<8x32xf32>
    %101 = arith.subf %95, %100 : vector<8x32xf32>
    %102 = arith.mulf %101, %101 : vector<8x32xf32>
    %cst_78 = arith.constant dense<0.000000e+00> : vector<8xf32>
    %103 = vector.multi_reduction <add>, %102, %cst_78 [1] : vector<8x32xf32> to vector<8xf32>
    %104 = vector.shape_cast %103 : vector<8xf32> to vector<8x1xf32>
    %cst_79 = arith.constant 3.200000e+01 : f32
    %105 = vector.broadcast %cst_79 : f32 to vector<8x1xf32>
    %106 = arith.divf %104, %105 : vector<8x1xf32>
    %107 = vector.broadcast %99 : vector<8x1xf32> to vector<8x32xf32>
    %108 = arith.subf %95, %107 : vector<8x32xf32>
    %cst_80 = arith.constant 9.99999997E-7 : f32
    %109 = vector.broadcast %cst_80 : f32 to vector<8x1xf32>
    %110 = arith.addf %106, %109 : vector<8x1xf32>
    %111 = math.rsqrt %110 : vector<8x1xf32>
    %112 = vector.broadcast %111 : vector<8x1xf32> to vector<8x32xf32>
    %113 = arith.mulf %108, %112 : vector<8x32xf32>
    %c0_81 = arith.constant 0 : index
    %c0_82 = arith.constant 0 : index
    %114 = vector.load %arg8[%c0_81, %c0_82] : memref<1x32xf32, #tpu.memory_space<vmem>>, vector<1x32xf32>
    %115 = vector.broadcast %114 : vector<1x32xf32> to vector<8x32xf32>
    %116 = arith.mulf %113, %115 : vector<8x32xf32>
    %c0_83 = arith.constant 0 : index
    %c0_84 = arith.constant 0 : index
    %117 = vector.load %arg9[%c0_83, %c0_84] : memref<1x32xf32, #tpu.memory_space<vmem>>, vector<1x32xf32>
    %118 = vector.broadcast %117 : vector<1x32xf32> to vector<8x32xf32>
    %119 = arith.addf %116, %118 : vector<8x32xf32>
    %120 = vector.shape_cast %119 : vector<8x32xf32> to vector<1x8x32xf32>
    %c0_85 = arith.constant 0 : index
    %c0_86 = arith.constant 0 : index
    %c0_87 = arith.constant 0 : index
    %121 = vector.load %arg10[%c0_85, %c0_86, %c0_87] : memref<1x8x32xf32, #tpu.memory_space<vmem>>, vector<1x8x32xf32>
    tpu.vector_store %arg10[%c0_85, %c0_86, %c0_87], %120 {strides = array<i32>} : memref<1x8x32xf32, #tpu.memory_space<vmem>>, vector<1x8x32xf32>,
    return
  }
  func.func @transform_0(%arg0: i32) -> (i32, i32, i32) {
    %c0_i32 = arith.constant 0 : i32
    %c0_i32_0 = arith.constant 0 : i32
    %c0_i32_1 = arith.constant 0 : i32
    return %arg0, %c0_i32, %c0_i32_0 : i32, i32, i32
  }
  func.func @transform_1(%arg0: i32) -> (i32, i32, i32) {
    %c0_i32 = arith.constant 0 : i32
    %c0_i32_0 = arith.constant 0 : i32
    %c0_i32_1 = arith.constant 0 : i32
    return %arg0, %c0_i32, %c0_i32_0 : i32, i32, i32
  }
  func.func @transform_2(%arg0: i32) -> (i32, i32, i32) {
    %c0_i32 = arith.constant 0 : i32
    %c0_i32_0 = arith.constant 0 : i32
    %c0_i32_1 = arith.constant 0 : i32
    return %arg0, %c0_i32, %c0_i32_0 : i32, i32, i32
  }
  func.func @transform_3(%arg0: i32) -> (i32, i32, i32) {
    %c0_i32 = arith.constant 0 : i32
    %c0_i32_0 = arith.constant 0 : i32
    %c0_i32_1 = arith.constant 0 : i32
    %c0_i32_2 = arith.constant 0 : i32
    return %c0_i32, %c0_i32_0, %c0_i32_1 : i32, i32, i32
  }
  func.func @transform_4(%arg0: i32) -> (i32, i32, i32) {
    %c0_i32 = arith.constant 0 : i32
    %c0_i32_0 = arith.constant 0 : i32
    %c0_i32_1 = arith.constant 0 : i32
    %c0_i32_2 = arith.constant 0 : i32
    return %c0_i32, %c0_i32_0, %c0_i32_1 : i32, i32, i32
  }
  func.func @transform_5(%arg0: i32) -> (i32, i32, i32) {
    %c0_i32 = arith.constant 0 : i32
    %c0_i32_0 = arith.constant 0 : i32
    %c0_i32_1 = arith.constant 0 : i32
    %c0_i32_2 = arith.constant 0 : i32
    return %c0_i32, %c0_i32_0, %c0_i32_1 : i32, i32, i32
  }
  func.func @transform_6(%arg0: i32) -> (i32, i32, i32) {
    %c0_i32 = arith.constant 0 : i32
    %c0_i32_0 = arith.constant 0 : i32
    %c0_i32_1 = arith.constant 0 : i32
    %c0_i32_2 = arith.constant 0 : i32
    return %c0_i32, %c0_i32_0, %c0_i32_1 : i32, i32, i32
  }
  func.func @transform_7(%arg0: i32) -> (i32, i32) {
    %c0_i32 = arith.constant 0 : i32
    %c0_i32_0 = arith.constant 0 : i32
    %c0_i32_1 = arith.constant 0 : i32
    return %c0_i32, %c0_i32_0 : i32, i32
  }
  func.func @transform_8(%arg0: i32) -> (i32, i32) {
    %c0_i32 = arith.constant 0 : i32
    %c0_i32_0 = arith.constant 0 : i32
    %c0_i32_1 = arith.constant 0 : i32
    return %c0_i32, %c0_i32_0 : i32, i32
  }
  func.func @transform_9(%arg0: i32) -> (i32, i32, i32) {
    %c0_i32 = arith.constant 0 : i32
    %c0_i32_0 = arith.constant 0 : i32
    %c0_i32_1 = arith.constant 0 : i32
    return %arg0, %c0_i32, %c0_i32_0 : i32, i32, i32
  }
  func.func @transform_10(%arg0: i32) -> (i32, i32, i32, i32) {
    %c0_i32 = arith.constant 0 : i32
    %c0_i32_0 = arith.constant 0 : i32
    %c0_i32_1 = arith.constant 0 : i32
    %c0_i32_2 = arith.constant 0 : i32
    return %arg0, %c0_i32, %c0_i32_0, %c0_i32_1 : i32, i32, i32, i32
  }
}

</mosaic_0001>

<llo_original>
// kernel: tpu_custom_call.1
$region0: #{tpu_custom_call.1}
  #allocation0 [shape = 'u32[]', space=smem, size = 0x4, offset = 0x4, fixed_abs, tag = 'smem constant byte address 0x4 - core index']
  #allocation1 [shape = 'u32[72,128]{1,0:T(1,128)}', space=vmem, size = 0x9000, scoped, tag = 'internal scratch']
  %s0 = inlined_call_operand.vmem [shape: f32[2,8,32], index: 0, kind: input, shape index: {}]
  %s1 = inlined_call_operand.vmem [shape: f32[2,8,32], index: 1, kind: input, shape index: {}]
  %s2 = inlined_call_operand.vmem [shape: f32[2,8,32], index: 2, kind: input, shape index: {}]
  %s3 = inlined_call_operand.vmem [shape: f32[4,32,8], index: 3, kind: input, shape index: {}]
  %s4 = inlined_call_operand.vmem [shape: f32[4,32,8], index: 4, kind: input, shape index: {}]
  %s5 = inlined_call_operand.vmem [shape: f32[4,32,8], index: 5, kind: input, shape index: {}]
  %s6 = inlined_call_operand.vmem [shape: f32[4,8,32], index: 6, kind: input, shape index: {}]
  %s7 = inlined_call_operand.vmem [shape: f32[1,32], index: 7, kind: input, shape index: {}]
  %s8 = inlined_call_operand.vmem [shape: f32[1,32], index: 8, kind: input, shape index: {}]
  %s9 = inlined_call_operand.hbm [shape: f32[2,8,32], index: 9, kind: output, shape index: {0}]
  %s10 = inlined_call_operand.hbm [shape: f32[2,4,8,8], index: 10, kind: output, shape index: {1}]
  %11 = xla_tuple %s9, %s10
  %s12 = sld [smem:[#allocation0]]
  $region77: #{tpu_custom_call.1} parent=0
    _
  %s14 = ssub.s32 1, %s12
  %s15 = scalar_select 0, %s14, %s12
  $region1: #{tpu_custom_call.1} parent=0
    #allocation2 [shape = 'u8[8192]{0}', space=vmem, size = 0x2000, scoped, tag = 'output window, operand 0']
    #allocation3 [shape = 's32[2]{0}', space=sflag, size = 0x8, scoped, tag = 'scoped memory for tpu_custom_call.1']
    #allocation4 [shape = 'u8[32768]{0}', space=vmem, size = 0x8000, scoped, tag = 'output window, operand 1']
    #allocation5 [shape = 's32[2]{0}', space=sflag, size = 0x8, scoped, tag = 'scoped memory for tpu_custom_call.1']
    %16 = vsyncpa [#allocation3], 0
    %s17 = scalar_lea.sflag [#allocation3], 1
    %18 = vsyncpa %s17, 0
    %19 = vsyncpa [#allocation5], 0
    %s20 = scalar_lea.sflag [#allocation5], 1
    %21 = vsyncpa %s20, 0
    loop: start=0, step=1, limit=4
    $region2: #{tpu_custom_call.1} parent=1 // loop_pre_header
      _
    $region3: #{tpu_custom_call.1} parent=1 // loop_header
      %s23 = sphi 0, %s27
      %p24 = scmp.ge.s32.totalorder %s23, 4
      %s33 = sphi 0, %s35
      %s36 = sphi 0, %s33
      %s37 = sphi 0, %s36
      %s53 = sphi 0, %s37
      %s59 = sphi 0, %s61
      %s62 = sphi 0, %s59
      %s63 = sphi 0, %s62
      %s79 = sphi 0, %s63
      %s85 = sphi 0, %s87
      %s88 = sphi 0, %s85
      %s89 = sphi 0, %s88
      %s105 = sphi 0, %s89
      %s109 = sphi 0, %s109
      %s111 = sphi 0, %s109
      %s112 = sphi 0, %s111
      %s126 = sphi 0, %s112
      %s130 = sphi 0, %s130
      %s132 = sphi 0, %s130
      %s133 = sphi 0, %s132
      %s147 = sphi 0, %s133
      %s151 = sphi 0, %s151
      %s153 = sphi 0, %s151
      %s154 = sphi 0, %s153
      %s168 = sphi 0, %s154
      %s172 = sphi 0, %s172
      %s174 = sphi 0, %s172
      %s175 = sphi 0, %s174
      %s189 = sphi 0, %s175
      %s193 = sphi 0, %s193
      %s195 = sphi 0, %s193
      %s196 = sphi 0, %s195
      %s210 = sphi 0, %s196
      %s214 = sphi 0, %s214
      %s216 = sphi 0, %s214
      %s217 = sphi 0, %s216
      %s231 = sphi 0, %s217
      %s237 = sphi 0, %s239
      %s240 = sphi 0, %s237
      %s241 = sphi 0, %s240
      %s257 = sphi 0, %s241
      %s263 = sphi 0, %s265
      %s266 = sphi 0, %s263
      %s267 = sphi 0, %s266
      %s283 = sphi 0, %s267
    $region4: #{tpu_custom_call.1} parent=1 // loop_header_branch
      %26 = sbr.rel (%p24) target = $region8
    $region5: #{tpu_custom_call.1} parent=1 // loop_body
      %s28 = ssub.s32 %s23, 1
      %s29 = ssub.s32 %s23, 2
      %s30 = sadd.s32 %s23, 1
      %s31 = ssub.s32 %s23, %s30
      %p32 = scmp.eq.s32.totalorder %s31, 0
      %s34 = sadd.s32 %s33, 1
      %s35 = scalar_select %p32, %s33, %s34
      %p38 = pneg %p32
      %p39 = scmp.eq.s32.totalorder %s23, 1
      %p40 = por %p38, %p39
      %p41 = scmp.ne.s32.totalorder %s33, %s36
      %p42 = scmp.eq.s32.totalorder %s23, 0
      %p43 = por %p41, %p42
      %p44 = scmp.ne.s32.totalorder %s33, %s36
      %p45 = scmp.eq.s32.totalorder %s28, 1
      %p46 = por %p44, %p45
      %p47 = scmp.ne.s32.totalorder %s36, %s37
      %p48 = scmp.eq.s32.totalorder %s28, 0
      %p49 = por %p47, %p48
      %p50 = scmp.ne.s32.totalorder %s36, %s37
      %p51 = scmp.eq.s32.totalorder %s29, 1
      %p52 = por %p50, %p51
      %p54 = scmp.ne.s32.totalorder %s37, %s53
      %p55 = scmp.eq.s32.totalorder %s29, 0
      %p56 = por %p54, %p55
      %s57 = ssub.s32 %s23, %s30
      %p58 = scmp.eq.s32.totalorder %s57, 0
      %s60 = sadd.s32 %s59, 1
      %s61 = scalar_select %p58, %s59, %s60
      %p64 = pneg %p58
      %p65 = scmp.eq.s32.totalorder %s23, 1
      %p66 = por %p64, %p65
      %p67 = scmp.ne.s32.totalorder %s59, %s62
      %p68 = scmp.eq.s32.totalorder %s23, 0
      %p69 = por %p67, %p68
      %p70 = scmp.ne.s32.totalorder %s59, %s62
      %p71 = scmp.eq.s32.totalorder %s28, 1
      %p72 = por %p70, %p71
      %p73 = scmp.ne.s32.totalorder %s62, %s63
      %p74 = scmp.eq.s32.totalorder %s28, 0
      %p75 = por %p73, %p74
      %p76 = scmp.ne.s32.totalorder %s62, %s63
      %p77 = scmp.eq.s32.totalorder %s29, 1
      %p78 = por %p76, %p77
      %p80 = scmp.ne.s32.totalorder %s63, %s79
      %p81 = scmp.eq.s32.totalorder %s29, 0
      %p82 = por %p80, %p81
      %s83 = ssub.s32 %s23, %s30
      %p84 = scmp.eq.s32.totalorder %s83, 0
      %s86 = sadd.s32 %s85, 1
      %s87 = scalar_select %p84, %s85, %s86
      %p90 = pneg %p84
      %p91 = scmp.eq.s32.totalorder %s23, 1
      %p92 = por %p90, %p91
      %p93 = scmp.ne.s32.totalorder %s85, %s88
      %p94 = scmp.eq.s32.totalorder %s23, 0
      %p95 = por %p93, %p94
      %p96 = scmp.ne.s32.totalorder %s85, %s88
      %p97 = scmp.eq.s32.totalorder %s28, 1
      %p98 = por %p96, %p97
      %p99 = scmp.ne.s32.totalorder %s88, %s89
      %p100 = scmp.eq.s32.totalorder %s28, 0
      %p101 = por %p99, %p100
      %p102 = scmp.ne.s32.totalorder %s88, %s89
      %p103 = scmp.eq.s32.totalorder %s29, 1
      %p104 = por %p102, %p103
      %p106 = scmp.ne.s32.totalorder %s89, %s105
      %p107 = scmp.eq.s32.totalorder %s29, 0
      %p108 = por %p106, %p107
      %s110 = sadd.s32 %s109, 1
      %p113 = scmp.eq.s32.totalorder %s23, 1
      %p114 = scmp.ne.s32.totalorder %s109, %s111
      %p115 = scmp.eq.s32.totalorder %s23, 0
      %p116 = por %p114, %p115
      %p117 = scmp.ne.s32.totalorder %s109, %s111
      %p118 = scmp.eq.s32.totalorder %s28, 1
      %p119 = por %p117, %p118
      %p120 = scmp.ne.s32.totalorder %s111, %s112
      %p121 = scmp.eq.s32.totalorder %s28, 0
      %p122 = por %p120, %p121
      %p123 = scmp.ne.s32.totalorder %s111, %s112
      %p124 = scmp.eq.s32.totalorder %s29, 1
      %p125 = por %p123, %p124
      %p127 = scmp.ne.s32.totalorder %s112, %s126
      %p128 = scmp.eq.s32.totalorder %s29, 0
      %p129 = por %p127, %p128
      %s131 = sadd.s32 %s130, 1
      %p134 = scmp.eq.s32.totalorder %s23, 1
      %p135 = scmp.ne.s32.totalorder %s130, %s132
      %p136 = scmp.eq.s32.totalorder %s23, 0
      %p137 = por %p135, %p136
      %p138 = scmp.ne.s32.totalorder %s130, %s132
      %p139 = scmp.eq.s32.totalorder %s28, 1
      %p140 = por %p138, %p139
      %p141 = scmp.ne.s32.totalorder %s132, %s133
      %p142 = scmp.eq.s32.totalorder %s28, 0
      %p143 = por %p141, %p142
      %p144 = scmp.ne.s32.totalorder %s132, %s133
      %p145 = scmp.eq.s32.totalorder %s29, 1
      %p146 = por %p144, %p145
      %p148 = scmp.ne.s32.totalorder %s133, %s147
      %p149 = scmp.eq.s32.totalorder %s29, 0
      %p150 = por %p148, %p149
      %s152 = sadd.s32 %s151, 1
      %p155 = scmp.eq.s32.totalorder %s23, 1
      %p156 = scmp.ne.s32.totalorder %s151, %s153
      %p157 = scmp.eq.s32.totalorder %s23, 0
      %p158 = por %p156, %p157
      %p159 = scmp.ne.s32.totalorder %s151, %s153
      %p160 = scmp.eq.s32.totalorder %s28, 1
      %p161 = por %p159, %p160
      %p162 = scmp.ne.s32.totalorder %s153, %s154
      %p163 = scmp.eq.s32.totalorder %s28, 0
      %p164 = por %p162, %p163
      %p165 = scmp.ne.s32.totalorder %s153, %s154
      %p166 = scmp.eq.s32.totalorder %s29, 1
      %p167 = por %p165, %p166
      %p169 = scmp.ne.s32.totalorder %s154, %s168
      %p170 = scmp.eq.s32.totalorder %s29, 0
      %p171 = por %p169, %p170
      %s173 = sadd.s32 %s172, 1
      %p176 = scmp.eq.s32.totalorder %s23, 1
      %p177 = scmp.ne.s32.totalorder %s172, %s174
      %p178 = scmp.eq.s32.totalorder %s23, 0
      %p179 = por %p177, %p178
      %p180 = scmp.ne.s32.totalorder %s172, %s174
      %p181 = scmp.eq.s32.totalorder %s28, 1
      %p182 = por %p180, %p181
      %p183 = scmp.ne.s32.totalorder %s174, %s175
      %p184 = scmp.eq.s32.totalorder %s28, 0
      %p185 = por %p183, %p184
      %p186 = scmp.ne.s32.totalorder %s174, %s175
      %p187 = scmp.eq.s32.totalorder %s29, 1
      %p188 = por %p186, %p187
      %p190 = scmp.ne.s32.totalorder %s175, %s189
      %p191 = scmp.eq.s32.totalorder %s29, 0
      %p192 = por %p190, %p191
      %s194 = sadd.s32 %s193, 1
      %p197 = scmp.eq.s32.totalorder %s23, 1
      %p198 = scmp.ne.s32.totalorder %s193, %s195
      %p199 = scmp.eq.s32.totalorder %s23, 0
      %p200 = por %p198, %p199
      %p201 = scmp.ne.s32.totalorder %s193, %s195
      %p202 = scmp.eq.s32.totalorder %s28, 1
      %p203 = por %p201, %p202
      %p204 = scmp.ne.s32.totalorder %s195, %s196
      %p205 = scmp.eq.s32.totalorder %s28, 0
      %p206 = por %p204, %p205
      %p207 = scmp.ne.s32.totalorder %s195, %s196
      %p208 = scmp.eq.s32.totalorder %s29, 1
      %p209 = por %p207, %p208
      %p211 = scmp.ne.s32.totalorder %s196, %s210
      %p212 = scmp.eq.s32.totalorder %s29, 0
      %p213 = por %p211, %p212
      %s215 = sadd.s32 %s214, 1
      %p218 = scmp.eq.s32.totalorder %s23, 1
      %p219 = scmp.ne.s32.totalorder %s214, %s216
      %p220 = scmp.eq.s32.totalorder %s23, 0
      %p221 = por %p219, %p220
      %p222 = scmp.ne.s32.totalorder %s214, %s216
      %p223 = scmp.eq.s32.totalorder %s28, 1
      %p224 = por %p222, %p223
      %p225 = scmp.ne.s32.totalorder %s216, %s217
      %p226 = scmp.eq.s32.totalorder %s28, 0
      %p227 = por %p225, %p226
      %p228 = scmp.ne.s32.totalorder %s216, %s217
      %p229 = scmp.eq.s32.totalorder %s29, 1
      %p230 = por %p228, %p229
      %p232 = scmp.ne.s32.totalorder %s217, %s231
      %p233 = scmp.eq.s32.totalorder %s29, 0
      %p234 = por %p232, %p233
      %s235 = ssub.s32 %s23, %s30
      %p236 = scmp.eq.s32.totalorder %s235, 0
      %s238 = sadd.s32 %s237, 1
      %s239 = scalar_select %p236, %s237, %s238
      %p242 = pneg %p236
      %p243 = scmp.eq.s32.totalorder %s23, 1
      %p244 = por %p242, %p243
      %p245 = scmp.ne.s32.totalorder %s237, %s240
      %p246 = scmp.eq.s32.totalorder %s23, 0
      %p247 = por %p245, %p246
      %p248 = scmp.ne.s32.totalorder %s237, %s240
      %p249 = scmp.eq.s32.totalorder %s28, 1
      %p250 = por %p248, %p249
      %p251 = scmp.ne.s32.totalorder %s240, %s241
      %p252 = scmp.eq.s32.totalorder %s28, 0
      %p253 = por %p251, %p252
      %p254 = scmp.ne.s32.totalorder %s240, %s241
      %p255 = scmp.eq.s32.totalorder %s29, 1
      %p256 = por %p254, %p255
      %p258 = scmp.ne.s32.totalorder %s241, %s257
      %p259 = scmp.eq.s32.totalorder %s29, 0
      %p260 = por %p258, %p259
      %s261 = ssub.s32 %s23, %s30
      %p262 = scmp.eq.s32.totalorder %s261, 0
      %s264 = sadd.s32 %s263, 1
      %s265 = scalar_select %p262, %s263, %s264
      %p268 = pneg %p262
      %p269 = scmp.eq.s32.totalorder %s23, 1
      %p270 = por %p268, %p269
      %p271 = scmp.ne.s32.totalorder %s263, %s266
      %p272 = scmp.eq.s32.totalorder %s23, 0
      %p273 = por %p271, %p272
      %p274 = scmp.ne.s32.totalorder %s263, %s266
      %p275 = scmp.eq.s32.totalorder %s28, 1
      %p276 = por %p274, %p275
      %p277 = scmp.ne.s32.totalorder %s266, %s267
      %p278 = scmp.eq.s32.totalorder %s28, 0
      %p279 = por %p277, %p278
      %p280 = scmp.ne.s32.totalorder %s266, %s267
      %p281 = scmp.eq.s32.totalorder %s29, 1
      %p282 = por %p280, %p281
      %p284 = scmp.ne.s32.totalorder %s267, %s283
      %p285 = scmp.eq.s32.totalorder %s29, 0
      %p286 = por %p284, %p285
      %p287 = scmp.le.s32.totalorder 1, %s23
      %p288 = scmp.lt.s32.totalorder %s23, 3
      %p289 = pnand %p287, %p288
      %p290 = pneg %p289
      // Predicated region
      $region9: #{tpu_custom_call.1} parent=5 // pred_check
        _
      $region10: #{tpu_custom_call.1} parent=5 // pred_check_branch
        %292 = sbr.rel (%p289) target = $region12
      $region11: #{tpu_custom_call.1} parent=5 // pred_region
        %s293 = ssub.s32 %s23, 1
        // Predicated region
        $region13: #{tpu_custom_call.1} parent=11 // pred_check
          %p294 = pneg %p122
        $region14: #{tpu_custom_call.1} parent=11 // pred_check_branch
          %296 = sbr.rel (%p294) target = $region16
        $region15: #{tpu_custom_call.1} parent=11 // pred_region
          _
        $region16: #{tpu_custom_call.1} parent=11 // pred_fallthru
          _
        // Predicated region
        $region17: #{tpu_custom_call.1} parent=11 // pred_check
          %p297 = pneg %p143
        $region18: #{tpu_custom_call.1} parent=11 // pred_check_branch
          %299 = sbr.rel (%p297) target = $region20
        $region19: #{tpu_custom_call.1} parent=11 // pred_region
          _
        $region20: #{tpu_custom_call.1} parent=11 // pred_fallthru
          _
        // Predicated region
        $region21: #{tpu_custom_call.1} parent=11 // pred_check
          %p300 = pneg %p164
        $region22: #{tpu_custom_call.1} parent=11 // pred_check_branch
          %302 = sbr.rel (%p300) target = $region24
        $region23: #{tpu_custom_call.1} parent=11 // pred_region
          _
        $region24: #{tpu_custom_call.1} parent=11 // pred_fallthru
          _
        // Predicated region
        $region25: #{tpu_custom_call.1} parent=11 // pred_check
          %p303 = pneg %p185
        $region26: #{tpu_custom_call.1} parent=11 // pred_check_branch
          %305 = sbr.rel (%p303) target = $region28
        $region27: #{tpu_custom_call.1} parent=11 // pred_region
          _
        $region28: #{tpu_custom_call.1} parent=11 // pred_fallthru
          _
        // Predicated region
        $region29: #{tpu_custom_call.1} parent=11 // pred_check
          %p306 = pneg %p206
        $region30: #{tpu_custom_call.1} parent=11 // pred_check_branch
          %308 = sbr.rel (%p306) target = $region32
        $region31: #{tpu_custom_call.1} parent=11 // pred_region
          _
        $region32: #{tpu_custom_call.1} parent=11 // pred_fallthru
          _
        // Predicated region
        $region33: #{tpu_custom_call.1} parent=11 // pred_check
          %p309 = pneg %p227
        $region34: #{tpu_custom_call.1} parent=11 // pred_check_branch
          %311 = sbr.rel (%p309) target = $region36
        $region35: #{tpu_custom_call.1} parent=11 // pred_region
          _
        $region36: #{tpu_custom_call.1} parent=11 // pred_fallthru
          _
      $region12: #{tpu_custom_call.1} parent=5 // pred_fallthru
        _
      %p312 = scmp.lt.s32.totalorder %s23, 2
      // Predicated region
      $region37: #{tpu_custom_call.1} parent=5 // pred_check
        %p313 = pneg %p312
      $region38: #{tpu_custom_call.1} parent=5 // pred_check_branch
        %315 = sbr.rel (%p313) target = $region40
      $region39: #{tpu_custom_call.1} parent=5 // pred_region
        // Predicated region
        $region41: #{tpu_custom_call.1} parent=39 // pred_check
          %p316 = pneg %p43
        $region42: #{tpu_custom_call.1} parent=39 // pred_check_branch
          %318 = sbr.rel (%p316) target = $region44
        $region43: #{tpu_custom_call.1} parent=39 // pred_region
          %p319 = scmp.lt.s32.totalorder %s23, 1
          %s320 = scalar_select %p319, %s23, 1
          %s321 = smul.addr %s320, 8
          %s322 = scalar_lea.vmem %s0, %s321
        $region44: #{tpu_custom_call.1} parent=39 // pred_fallthru
          _
        // Predicated region
        $region45: #{tpu_custom_call.1} parent=39 // pred_check
          %p323 = pneg %p69
        $region46: #{tpu_custom_call.1} parent=39 // pred_check_branch
          %325 = sbr.rel (%p323) target = $region48
        $region47: #{tpu_custom_call.1} parent=39 // pred_region
          %p326 = scmp.lt.s32.totalorder %s23, 1
          %s327 = scalar_select %p326, %s23, 1
          %s328 = smul.addr %s327, 8
          %s329 = scalar_lea.vmem %s1, %s328
        $region48: #{tpu_custom_call.1} parent=39 // pred_fallthru
          _
        // Predicated region
        $region49: #{tpu_custom_call.1} parent=39 // pred_check
          %p330 = pneg %p95
        $region50: #{tpu_custom_call.1} parent=39 // pred_check_branch
          %332 = sbr.rel (%p330) target = $region52
        $region51: #{tpu_custom_call.1} parent=39 // pred_region
          %p333 = scmp.lt.s32.totalorder %s23, 1
          %s334 = scalar_select %p333, %s23, 1
          %s335 = smul.addr %s334, 8
          %s336 = scalar_lea.vmem %s2, %s335
        $region52: #{tpu_custom_call.1} parent=39 // pred_fallthru
          _
      $region40: #{tpu_custom_call.1} parent=5 // pred_fallthru
        _
      %p337 = scmp.le.s32.totalorder 1, %s23
      %p338 = scmp.lt.s32.totalorder %s23, 3
      %p339 = pnand %p337, %p338
      %p340 = pneg %p339
      // Predicated region
      $region53: #{tpu_custom_call.1} parent=5 // pred_check
        _
      $region54: #{tpu_custom_call.1} parent=5 // pred_check_branch
        %342 = sbr.rel (%p339) target = $region56
      $region55: #{tpu_custom_call.1} parent=5 // pred_region
        %s343 = ssub.s32 %s23, 1
        %p344 = scmp.lt.s32.totalorder %s28, 1
        %s345 = scalar_select %p344, %s28, 1
        %s346 = smul.addr %s345, 8
        %s347 = scalar_lea.vmem %s0, %s346
        %p348 = pneg %p49
        %p349 = pneg %p46
        %p350 = scmp.lt.s32.totalorder %s28, 1
        %s351 = scalar_select %p350, %s28, 1
        %s352 = smul.addr %s351, 8
        %s353 = scalar_lea.vmem %s1, %s352
        %p354 = pneg %p75
        %p355 = pneg %p72
        %p356 = scmp.lt.s32.totalorder %s28, 1
        %s357 = scalar_select %p356, %s28, 1
        %s358 = smul.addr %s357, 8
        %s359 = scalar_lea.vmem %s2, %s358
        %p360 = pneg %p101
        %p361 = pneg %p98
        %p362 = pneg %p122
        %p363 = pneg %p119
        %p364 = pneg %p143
        %p365 = pneg %p140
        %p366 = pneg %p164
        %p367 = pneg %p161
        %p368 = pneg %p185
        %p369 = pneg %p182
        %p370 = pneg %p206
        %p371 = pneg %p203
        %p372 = pneg %p227
        %p373 = pneg %p224
        %p374 = pneg %p253
        %p375 = pneg %p250
        %s376 = sand.u32 %s240, 1
        %s377 = scalar_lea.sflag [#allocation3], %s376
        %s378 = sand.u32 %s240, 1
        %s379 = smul.addr %s378, 8
        %s380 = scalar_lea.vmem [#allocation2], %s379
        %p381 = pneg %p279
        %p382 = pneg %p276
        %s383 = sand.u32 %s266, 1
        %s384 = scalar_lea.sflag [#allocation5], %s383
        %s385 = sand.u32 %s266, 1
        %s386 = smul.addr %s385, 32
        %s387 = scalar_lea.vmem [#allocation4], %s386
        %p388 = scmp.lt.s32.totalorder %s28, 1
        %s389 = scalar_select %p388, %s28, 1
        %s390 = smul.addr %s389, 8
        %s391 = scalar_lea.vmem %s0, %s390
        %p392 = scmp.lt.s32.totalorder %s28, 1
        %s393 = scalar_select %p392, %s28, 1
        %s394 = smul.addr %s393, 8
        %s395 = scalar_lea.vmem %s1, %s394
        %p396 = scmp.lt.s32.totalorder %s28, 1
        %s397 = scalar_select %p396, %s28, 1
        %s398 = smul.addr %s397, 8
        %s399 = scalar_lea.vmem %s2, %s398
        %v400 = vld [vmem:[%s391] sm:$0xff]
        %v401 = vld [vmem:[%s395] sm:$0xff]
        %v402 = vld [vmem:[%s399] sm:$0xff]
        %v403 = vld [vmem:[%s3] sm:$0xff]
        %v404 = vld [vmem:[%s3 + $0x8] sm:$0xff]
        %v405 = vld [vmem:[%s3 + $0x10] sm:$0xff]
        %v406 = vld [vmem:[%s3 + $0x18] sm:$0xff]
        %vm407 = vcmask 261120
        %v409 = vsel %vm407, %v400, 0
        %411 = vmatpush.msra.mxu0 0.0
        %412 = vmatpush.msra.mxu0 0.0
        %413 = vmatpush.msra.mxu0 0.0
        %414 = vmatpush.msra.mxu0 0.0
        %415 = vmatpush.msra.mxu0 0.0
        %416 = vmatpush.msra.mxu0 0.0
        %417 = vmatpush.msra.mxu0 0.0
        %418 = vmatpush.msra.mxu0 0.0
        %419 = vmatpush.msra.mxu0 0.0
        %420 = vmatpush.msra.mxu0 0.0
        %421 = vmatpush.msra.mxu0 0.0
        %422 = vmatpush.msra.mxu0 0.0
        %423 = vmatpush.msra.mxu0 %v406
        %424 = vmatpush.msra.mxu0 %v405
        %425 = vmatpush.msra.mxu0 %v404
        %426 = vmatpush.msra.mxu0 %v403
        %427 = vmatmul.f32.gmra.mxu0 %v409
        %v428 = vpop.f32.mrf.mxu0
        %v429 = vadd.f32 0.0, %v428
        %430 = vdwg.mxu0
        %s431 = scalar_lea.vmem %s3, 32
        %v432 = vld [vmem:[%s431] sm:$0xff]
        %v433 = vld [vmem:[%s431 + $0x8] sm:$0xff]
        %v434 = vld [vmem:[%s431 + $0x10] sm:$0xff]
        %v435 = vld [vmem:[%s431 + $0x18] sm:$0xff]
        %436 = vmatpush.msra.mxu0 0.0
        %437 = vmatpush.msra.mxu0 0.0
        %438 = vmatpush.msra.mxu0 0.0
        %439 = vmatpush.msra.mxu0 0.0
        %440 = vmatpush.msra.mxu0 0.0
        %441 = vmatpush.msra.mxu0 0.0
        %442 = vmatpush.msra.mxu0 0.0
        %443 = vmatpush.msra.mxu0 0.0
        %444 = vmatpush.msra.mxu0 0.0
        %445 = vmatpush.msra.mxu0 0.0
        %446 = vmatpush.msra.mxu0 0.0
        %447 = vmatpush.msra.mxu0 0.0
        %448 = vmatpush.msra.mxu0 %v435
        %449 = vmatpush.msra.mxu0 %v434
        %450 = vmatpush.msra.mxu0 %v433
        %451 = vmatpush.msra.mxu0 %v432
        %452 = vmatmul.f32.gmra.mxu0 %v409
        %v453 = vpop.f32.mrf.mxu0
        %v454 = vadd.f32 0.0, %v453
        %455 = vdwg.mxu0
        %s456 = scalar_lea.vmem %s3, 64
        %v457 = vld [vmem:[%s456] sm:$0xff]
        %v458 = vld [vmem:[%s456 + $0x8] sm:$0xff]
        %v459 = vld [vmem:[%s456 + $0x10] sm:$0xff]
        %v460 = vld [vmem:[%s456 + $0x18] sm:$0xff]
        %461 = vmatpush.msra.mxu0 0.0
        %462 = vmatpush.msra.mxu0 0.0
        %463 = vmatpush.msra.mxu0 0.0
        %464 = vmatpush.msra.mxu0 0.0
        %465 = vmatpush.msra.mxu0 0.0
        %466 = vmatpush.msra.mxu0 0.0
        %467 = vmatpush.msra.mxu0 0.0
        %468 = vmatpush.msra.mxu0 0.0
        %469 = vmatpush.msra.mxu0 0.0
        %470 = vmatpush.msra.mxu0 0.0
        %471 = vmatpush.msra.mxu0 0.0
        %472 = vmatpush.msra.mxu0 0.0
        %473 = vmatpush.msra.mxu0 %v460
        %474 = vmatpush.msra.mxu0 %v459
        %475 = vmatpush.msra.mxu0 %v458
        %476 = vmatpush.msra.mxu0 %v457
        %477 = vmatmul.f32.gmra.mxu0 %v409
        %v478 = vpop.f32.mrf.mxu0
        %v479 = vadd.f32 0.0, %v478
        %480 = vdwg.mxu0
        %s481 = scalar_lea.vmem %s3, 96
        %v482 = vld [vmem:[%s481] sm:$0xff]
        %v483 = vld [vmem:[%s481 + $0x8] sm:$0xff]
        %v484 = vld [vmem:[%s481 + $0x10] sm:$0xff]
        %v485 = vld [vmem:[%s481 + $0x18] sm:$0xff]
        %486 = vmatpush.msra.mxu0 0.0
        %487 = vmatpush.msra.mxu0 0.0
        %488 = vmatpush.msra.mxu0 0.0
        %489 = vmatpush.msra.mxu0 0.0
        %490 = vmatpush.msra.mxu0 0.0
        %491 = vmatpush.msra.mxu0 0.0
        %492 = vmatpush.msra.mxu0 0.0
        %493 = vmatpush.msra.mxu0 0.0
        %494 = vmatpush.msra.mxu0 0.0
        %495 = vmatpush.msra.mxu0 0.0
        %496 = vmatpush.msra.mxu0 0.0
        %497 = vmatpush.msra.mxu0 0.0
        %498 = vmatpush.msra.mxu0 %v485
        %499 = vmatpush.msra.mxu0 %v484
        %500 = vmatpush.msra.mxu0 %v483
        %501 = vmatpush.msra.mxu0 %v482
        %502 = vmatmul.f32.gmra.mxu0 %v409
        %v503 = vpop.f32.mrf.mxu0
        %v504 = vadd.f32 0.0, %v503
        %505 = vdwg.mxu0
        %v506 = vld [vmem:[%s4] sm:$0xff]
        %v507 = vld [vmem:[%s4 + $0x8] sm:$0xff]
        %v508 = vld [vmem:[%s4 + $0x10] sm:$0xff]
        %v509 = vld [vmem:[%s4 + $0x18] sm:$0xff]
        %v511 = vsel %vm407, %v401, 0
        %513 = vmatpush.msra.mxu0 0.0
        %514 = vmatpush.msra.mxu0 0.0
        %515 = vmatpush.msra.mxu0 0.0
        %516 = vmatpush.msra.mxu0 0.0
        %517 = vmatpush.msra.mxu0 0.0
        %518 = vmatpush.msra.mxu0 0.0
        %519 = vmatpush.msra.mxu0 0.0
        %520 = vmatpush.msra.mxu0 0.0
        %521 = vmatpush.msra.mxu0 0.0
        %522 = vmatpush.msra.mxu0 0.0
        %523 = vmatpush.msra.mxu0 0.0
        %524 = vmatpush.msra.mxu0 0.0
        %525 = vmatpush.msra.mxu0 %v509
        %526 = vmatpush.msra.mxu0 %v508
        %527 = vmatpush.msra.mxu0 %v507
        %528 = vmatpush.msra.mxu0 %v506
        %529 = vmatmul.f32.gmra.mxu0 %v511
        %v530 = vpop.f32.mrf.mxu0
        %v531 = vadd.f32 0.0, %v530
        %532 = vdwg.mxu0
        %s533 = scalar_lea.vmem %s4, 32
        %v534 = vld [vmem:[%s533] sm:$0xff]
        %v535 = vld [vmem:[%s533 + $0x8] sm:$0xff]
        %v536 = vld [vmem:[%s533 + $0x10] sm:$0xff]
        %v537 = vld [vmem:[%s533 + $0x18] sm:$0xff]
        %538 = vmatpush.msra.mxu0 0.0
        %539 = vmatpush.msra.mxu0 0.0
        %540 = vmatpush.msra.mxu0 0.0
        %541 = vmatpush.msra.mxu0 0.0
        %542 = vmatpush.msra.mxu0 0.0
        %543 = vmatpush.msra.mxu0 0.0
        %544 = vmatpush.msra.mxu0 0.0
        %545 = vmatpush.msra.mxu0 0.0
        %546 = vmatpush.msra.mxu0 0.0
        %547 = vmatpush.msra.mxu0 0.0
        %548 = vmatpush.msra.mxu0 0.0
        %549 = vmatpush.msra.mxu0 0.0
        %550 = vmatpush.msra.mxu0 %v537
        %551 = vmatpush.msra.mxu0 %v536
        %552 = vmatpush.msra.mxu0 %v535
        %553 = vmatpush.msra.mxu0 %v534
        %554 = vmatmul.f32.gmra.mxu0 %v511
        %v555 = vpop.f32.mrf.mxu0
        %v556 = vadd.f32 0.0, %v555
        %557 = vdwg.mxu0
        %s558 = scalar_lea.vmem %s4, 64
        %v559 = vld [vmem:[%s558] sm:$0xff]
        %v560 = vld [vmem:[%s558 + $0x8] sm:$0xff]
        %v561 = vld [vmem:[%s558 + $0x10] sm:$0xff]
        %v562 = vld [vmem:[%s558 + $0x18] sm:$0xff]
        %563 = vmatpush.msra.mxu0 0.0
        %564 = vmatpush.msra.mxu0 0.0
        %565 = vmatpush.msra.mxu0 0.0
        %566 = vmatpush.msra.mxu0 0.0
        %567 = vmatpush.msra.mxu0 0.0
        %568 = vmatpush.msra.mxu0 0.0
        %569 = vmatpush.msra.mxu0 0.0
        %570 = vmatpush.msra.mxu0 0.0
        %571 = vmatpush.msra.mxu0 0.0
        %572 = vmatpush.msra.mxu0 0.0
        %573 = vmatpush.msra.mxu0 0.0
        %574 = vmatpush.msra.mxu0 0.0
        %575 = vmatpush.msra.mxu0 %v562
        %576 = vmatpush.msra.mxu0 %v561
        %577 = vmatpush.msra.mxu0 %v560
        %578 = vmatpush.msra.mxu0 %v559
        %579 = vmatmul.f32.gmra.mxu0 %v511
        %v580 = vpop.f32.mrf.mxu0
        %v581 = vadd.f32 0.0, %v580
        %582 = vdwg.mxu0
        %s583 = scalar_lea.vmem %s4, 96
        %v584 = vld [vmem:[%s583] sm:$0xff]
        %v585 = vld [vmem:[%s583 + $0x8] sm:$0xff]
        %v586 = vld [vmem:[%s583 + $0x10] sm:$0xff]
        %v587 = vld [vmem:[%s583 + $0x18] sm:$0xff]
        %588 = vmatpush.msra.mxu0 0.0
        %589 = vmatpush.msra.mxu0 0.0
        %590 = vmatpush.msra.mxu0 0.0
        %591 = vmatpush.msra.mxu0 0.0
        %592 = vmatpush.msra.mxu0 0.0
        %593 = vmatpush.msra.mxu0 0.0
        %594 = vmatpush.msra.mxu0 0.0
        %595 = vmatpush.msra.mxu0 0.0
        %596 = vmatpush.msra.mxu0 0.0
        %597 = vmatpush.msra.mxu0 0.0
        %598 = vmatpush.msra.mxu0 0.0
        %599 = vmatpush.msra.mxu0 0.0
        %600 = vmatpush.msra.mxu0 %v587
        %601 = vmatpush.msra.mxu0 %v586
        %602 = vmatpush.msra.mxu0 %v585
        %603 = vmatpush.msra.mxu0 %v584
        %604 = vmatmul.f32.gmra.mxu0 %v511
        %v605 = vpop.f32.mrf.mxu0
        %v606 = vadd.f32 0.0, %v605
        %607 = vdwg.mxu0
        %v608 = vld [vmem:[%s5] sm:$0xff]
        %v609 = vld [vmem:[%s5 + $0x8] sm:$0xff]
        %v610 = vld [vmem:[%s5 + $0x10] sm:$0xff]
        %v611 = vld [vmem:[%s5 + $0x18] sm:$0xff]
        %v613 = vsel %vm407, %v402, 0
        %615 = vmatpush.msra.mxu0 0.0
        %616 = vmatpush.msra.mxu0 0.0
        %617 = vmatpush.msra.mxu0 0.0
        %618 = vmatpush.msra.mxu0 0.0
        %619 = vmatpush.msra.mxu0 0.0
        %620 = vmatpush.msra.mxu0 0.0
        %621 = vmatpush.msra.mxu0 0.0
        %622 = vmatpush.msra.mxu0 0.0
        %623 = vmatpush.msra.mxu0 0.0
        %624 = vmatpush.msra.mxu0 0.0
        %625 = vmatpush.msra.mxu0 0.0
        %626 = vmatpush.msra.mxu0 0.0
        %627 = vmatpush.msra.mxu0 %v611
        %628 = vmatpush.msra.mxu0 %v610
        %629 = vmatpush.msra.mxu0 %v609
        %630 = vmatpush.msra.mxu0 %v608
        %631 = vmatmul.f32.gmra.mxu0 %v613
        %v632 = vpop.f32.mrf.mxu0
        %v633 = vadd.f32 0.0, %v632
        %634 = vdwg.mxu0
        %s635 = scalar_lea.vmem %s5, 32
        %v636 = vld [vmem:[%s635] sm:$0xff]
        %v637 = vld [vmem:[%s635 + $0x8] sm:$0xff]
        %v638 = vld [vmem:[%s635 + $0x10] sm:$0xff]
        %v639 = vld [vmem:[%s635 + $0x18] sm:$0xff]
        %640 = vmatpush.msra.mxu0 0.0
        %641 = vmatpush.msra.mxu0 0.0
        %642 = vmatpush.msra.mxu0 0.0
        %643 = vmatpush.msra.mxu0 0.0
        %644 = vmatpush.msra.mxu0 0.0
        %645 = vmatpush.msra.mxu0 0.0
        %646 = vmatpush.msra.mxu0 0.0
        %647 = vmatpush.msra.mxu0 0.0
        %648 = vmatpush.msra.mxu0 0.0
        %649 = vmatpush.msra.mxu0 0.0
        %650 = vmatpush.msra.mxu0 0.0
        %651 = vmatpush.msra.mxu0 0.0
        %652 = vmatpush.msra.mxu0 %v639
        %653 = vmatpush.msra.mxu0 %v638
        %654 = vmatpush.msra.mxu0 %v637
        %655 = vmatpush.msra.mxu0 %v636
        %656 = vmatmul.f32.gmra.mxu0 %v613
        %v657 = vpop.f32.mrf.mxu0
        %v658 = vadd.f32 0.0, %v657
        %659 = vdwg.mxu0
        %s660 = scalar_lea.vmem %s5, 64
        %v661 = vld [vmem:[%s660] sm:$0xff]
        %v662 = vld [vmem:[%s660 + $0x8] sm:$0xff]
        %v663 = vld [vmem:[%s660 + $0x10] sm:$0xff]
        %v664 = vld [vmem:[%s660 + $0x18] sm:$0xff]
        %665 = vmatpush.msra.mxu0 0.0
        %666 = vmatpush.msra.mxu0 0.0
        %667 = vmatpush.msra.mxu0 0.0
        %668 = vmatpush.msra.mxu0 0.0
        %669 = vmatpush.msra.mxu0 0.0
        %670 = vmatpush.msra.mxu0 0.0
        %671 = vmatpush.msra.mxu0 0.0
        %672 = vmatpush.msra.mxu0 0.0
        %673 = vmatpush.msra.mxu0 0.0
        %674 = vmatpush.msra.mxu0 0.0
        %675 = vmatpush.msra.mxu0 0.0
        %676 = vmatpush.msra.mxu0 0.0
        %677 = vmatpush.msra.mxu0 %v664
        %678 = vmatpush.msra.mxu0 %v663
        %679 = vmatpush.msra.mxu0 %v662
        %680 = vmatpush.msra.mxu0 %v661
        %681 = vmatmul.f32.gmra.mxu0 %v613
        %v682 = vpop.f32.mrf.mxu0
        %v683 = vadd.f32 0.0, %v682
        %684 = vdwg.mxu0
        %s685 = scalar_lea.vmem %s5, 96
        %v686 = vld [vmem:[%s685] sm:$0xff]
        %v687 = vld [vmem:[%s685 + $0x8] sm:$0xff]
        %v688 = vld [vmem:[%s685 + $0x10] sm:$0xff]
        %v689 = vld [vmem:[%s685 + $0x18] sm:$0xff]
        %690 = vmatpush.msra.mxu0 0.0
        %691 = vmatpush.msra.mxu0 0.0
        %692 = vmatpush.msra.mxu0 0.0
        %693 = vmatpush.msra.mxu0 0.0
        %694 = vmatpush.msra.mxu0 0.0
        %695 = vmatpush.msra.mxu0 0.0
        %696 = vmatpush.msra.mxu0 0.0
        %697 = vmatpush.msra.mxu0 0.0
        %698 = vmatpush.msra.mxu0 0.0
        %699 = vmatpush.msra.mxu0 0.0
        %700 = vmatpush.msra.mxu0 0.0
        %701 = vmatpush.msra.mxu0 0.0
        %702 = vmatpush.msra.mxu0 %v689
        %703 = vmatpush.msra.mxu0 %v688
        %704 = vmatpush.msra.mxu0 %v687
        %705 = vmatpush.msra.mxu0 %v686
        %706 = vmatmul.f32.gmra.mxu0 %v613
        %v707 = vpop.f32.mrf.mxu0
        %v708 = vadd.f32 0.0, %v707
        %709 = vdwg.mxu0
        %vm710 = vcmask 64512
        %v712 = vsel %vm710, %v429, 0
        %v715 = vsel %vm710, %v531, 0
        %717 = vmatpush.xpose.msra.mxu0 0.0
        %718 = vmatpush.xpose.msra.mxu0 0.0
        %719 = vmatpush.xpose.msra.mxu0 0.0
        %720 = vmatpush.xpose.msra.mxu0 0.0
        %721 = vmatpush.xpose.msra.mxu0 0.0
        %722 = vmatpush.xpose.msra.mxu0 0.0
        %723 = vmatpush.xpose.msra.mxu0 0.0
        %724 = vmatpush.xpose.msra.mxu0 0.0
        %725 = vmatpush.xpose.msra.mxu0 0.0
        %726 = vmatpush.xpose.msra.mxu0 0.0
        %727 = vmatpush.xpose.msra.mxu0 0.0
        %728 = vmatpush.xpose.msra.mxu0 0.0
        %729 = vmatpush.xpose.msra.mxu0 0.0
        %730 = vmatpush.xpose.msra.mxu0 0.0
        %731 = vmatpush.xpose.msra.mxu0 0.0
        %732 = vmatpush.xpose.msra.mxu0 %v715
        %733 = vmatmul.f32.gmra.mxu0 %v712
        %v734 = vpop.f32.mrf.mxu0
        %v735 = vadd.f32 0.0, %v734
        %736 = vdwg.mxu0
        %v738 = vsel %vm710, %v454, 0
        %v741 = vsel %vm710, %v556, 0
        %743 = vmatpush.xpose.msra.mxu0 0.0
        %744 = vmatpush.xpose.msra.mxu0 0.0
        %745 = vmatpush.xpose.msra.mxu0 0.0
        %746 = vmatpush.xpose.msra.mxu0 0.0
        %747 = vmatpush.xpose.msra.mxu0 0.0
        %748 = vmatpush.xpose.msra.mxu0 0.0
        %749 = vmatpush.xpose.msra.mxu0 0.0
        %750 = vmatpush.xpose.msra.mxu0 0.0
        %751 = vmatpush.xpose.msra.mxu0 0.0
        %752 = vmatpush.xpose.msra.mxu0 0.0
        %753 = vmatpush.xpose.msra.mxu0 0.0
        %754 = vmatpush.xpose.msra.mxu0 0.0
        %755 = vmatpush.xpose.msra.mxu0 0.0
        %756 = vmatpush.xpose.msra.mxu0 0.0
        %757 = vmatpush.xpose.msra.mxu0 0.0
        %758 = vmatpush.xpose.msra.mxu0 %v741
        %759 = vmatmul.f32.gmra.mxu0 %v738
        %v760 = vpop.f32.mrf.mxu0
        %v761 = vadd.f32 0.0, %v760
        %762 = vdwg.mxu0
        %v764 = vsel %vm710, %v479, 0
        %v767 = vsel %vm710, %v581, 0
        %769 = vmatpush.xpose.msra.mxu0 0.0
        %770 = vmatpush.xpose.msra.mxu0 0.0
        %771 = vmatpush.xpose.msra.mxu0 0.0
        %772 = vmatpush.xpose.msra.mxu0 0.0
        %773 = vmatpush.xpose.msra.mxu0 0.0
        %774 = vmatpush.xpose.msra.mxu0 0.0
        %775 = vmatpush.xpose.msra.mxu0 0.0
        %776 = vmatpush.xpose.msra.mxu0 0.0
        %777 = vmatpush.xpose.msra.mxu0 0.0
        %778 = vmatpush.xpose.msra.mxu0 0.0
        %779 = vmatpush.xpose.msra.mxu0 0.0
        %780 = vmatpush.xpose.msra.mxu0 0.0
        %781 = vmatpush.xpose.msra.mxu0 0.0
        %782 = vmatpush.xpose.msra.mxu0 0.0
        %783 = vmatpush.xpose.msra.mxu0 0.0
        %784 = vmatpush.xpose.msra.mxu0 %v767
        %785 = vmatmul.f32.gmra.mxu0 %v764
        %v786 = vpop.f32.mrf.mxu0
        %v787 = vadd.f32 0.0, %v786
        %788 = vdwg.mxu0
        %v790 = vsel %vm710, %v504, 0
        %v793 = vsel %vm710, %v606, 0
        %795 = vmatpush.xpose.msra.mxu0 0.0
        %796 = vmatpush.xpose.msra.mxu0 0.0
        %797 = vmatpush.xpose.msra.mxu0 0.0
        %798 = vmatpush.xpose.msra.mxu0 0.0
        %799 = vmatpush.xpose.msra.mxu0 0.0
        %800 = vmatpush.xpose.msra.mxu0 0.0
        %801 = vmatpush.xpose.msra.mxu0 0.0
        %802 = vmatpush.xpose.msra.mxu0 0.0
        %803 = vmatpush.xpose.msra.mxu0 0.0
        %804 = vmatpush.xpose.msra.mxu0 0.0
        %805 = vmatpush.xpose.msra.mxu0 0.0
        %806 = vmatpush.xpose.msra.mxu0 0.0
        %807 = vmatpush.xpose.msra.mxu0 0.0
        %808 = vmatpush.xpose.msra.mxu0 0.0
        %809 = vmatpush.xpose.msra.mxu0 0.0
        %810 = vmatpush.xpose.msra.mxu0 %v793
        %811 = vmatmul.f32.gmra.mxu0 %v790
        %v812 = vpop.f32.mrf.mxu0
        %v813 = vadd.f32 0.0, %v812
        %814 = vdwg.mxu0
        %v815 = vsel %vm710, %v735, -inf
        %816 = vmax.xlane.f32.xlu0 %v815
        %v817 = vpop.xlane.xlu0 %816
        %v818 = vsel %vm710, %v761, -inf
        %819 = vmax.xlane.f32.xlu0 %v818
        %v820 = vpop.xlane.xlu0 %819
        %v821 = vsel %vm710, %v787, -inf
        %822 = vmax.xlane.f32.xlu0 %v821
        %v823 = vpop.xlane.xlu0 %822
        %v824 = vsel %vm710, %v813, -inf
        %825 = vmax.xlane.f32.xlu0 %v824
        %v826 = vpop.xlane.xlu0 %825
        %v827 = vsub.f32 %v735, %v817
        %v828 = vsub.f32 %v761, %v820
        %v829 = vsub.f32 %v787, %v823
        %v830 = vsub.f32 %v813, %v826
        %v831 = vmul.f32 %v827, 1.442695
        %v832 = vpow.pop %v831
        %v833 = vmul.f32 %v828, 1.442695
        %v834 = vpow.pop %v833
        %v835 = vmul.f32 %v829, 1.442695
        %v836 = vpow.pop %v835
        %v837 = vmul.f32 %v830, 1.442695
        %v838 = vpow.pop %v837
        %v839 = vsel %vm710, %v832, 0.0
        %840 = vadd.xlane.f32.xlu0 %v839
        %v841 = vpop.xlane.xlu0 %840
        %v842 = vsel %vm710, %v834, 0.0
        %843 = vadd.xlane.f32.xlu0 %v842
        %v844 = vpop.xlane.xlu0 %843
        %v845 = vsel %vm710, %v836, 0.0
        %846 = vadd.xlane.f32.xlu0 %v845
        %v847 = vpop.xlane.xlu0 %846
        %v848 = vsel %vm710, %v838, 0.0
        %849 = vadd.xlane.f32.xlu0 %v848
        %v850 = vpop.xlane.xlu0 %849
        %v851 = vrcp.pop %v841
        %v852 = vrcp.pop %v844
        %v853 = vrcp.pop %v847
        %v854 = vrcp.pop %v850
        %v855 = vmul.f32 %v832, %v851
        %v856 = vmul.f32 %v834, %v852
        %v857 = vmul.f32 %v836, %v853
        %v858 = vmul.f32 %v838, %v854
        %859 = vst.msk [vmem:[%s387] sm:$0xff] %vm710, %v855
        %860 = vst.msk [vmem:[%s387 + $0x8] sm:$0xff] %vm710, %v856
        %861 = vst.msk [vmem:[%s387 + $0x10] sm:$0xff] %vm710, %v857
        %862 = vst.msk [vmem:[%s387 + $0x18] sm:$0xff] %vm710, %v858
        %v864 = vsel %vm710, %v855, 0
        %866 = vmatpush.msra.mxu0 0.0
        %867 = vmatpush.msra.mxu0 0.0
        %868 = vmatpush.msra.mxu0 0.0
        %869 = vmatpush.msra.mxu0 0.0
        %870 = vmatpush.msra.mxu0 0.0
        %871 = vmatpush.msra.mxu0 0.0
        %872 = vmatpush.msra.mxu0 0.0
        %873 = vmatpush.msra.mxu0 0.0
        %874 = vmatpush.msra.mxu0 0.0
        %875 = vmatpush.msra.mxu0 0.0
        %876 = vmatpush.msra.mxu0 0.0
        %877 = vmatpush.msra.mxu0 0.0
        %878 = vmatpush.msra.mxu0 0.0
        %879 = vmatpush.msra.mxu0 0.0
        %880 = vmatpush.msra.mxu0 0.0
        %881 = vmatpush.msra.mxu0 %v633
        %882 = vmatmul.f32.gmra.mxu0 %v864
        %v883 = vpop.f32.mrf.mxu0
        %v884 = vadd.f32 0.0, %v883
        %885 = vdwg.mxu0
        %v887 = vsel %vm710, %v856, 0
        %889 = vmatpush.msra.mxu0 0.0
        %890 = vmatpush.msra.mxu0 0.0
        %891 = vmatpush.msra.mxu0 0.0
        %892 = vmatpush.msra.mxu0 0.0
        %893 = vmatpush.msra.mxu0 0.0
        %894 = vmatpush.msra.mxu0 0.0
        %895 = vmatpush.msra.mxu0 0.0
        %896 = vmatpush.msra.mxu0 0.0
        %897 = vmatpush.msra.mxu0 0.0
        %898 = vmatpush.msra.mxu0 0.0
        %899 = vmatpush.msra.mxu0 0.0
        %900 = vmatpush.msra.mxu0 0.0
        %901 = vmatpush.msra.mxu0 0.0
        %902 = vmatpush.msra.mxu0 0.0
        %903 = vmatpush.msra.mxu0 0.0
        %904 = vmatpush.msra.mxu0 %v658
        %905 = vmatmul.f32.gmra.mxu0 %v887
        %v906 = vpop.f32.mrf.mxu0
        %v907 = vadd.f32 0.0, %v906
        %908 = vdwg.mxu0
        %v910 = vsel %vm710, %v857, 0
        %912 = vmatpush.msra.mxu0 0.0
        %913 = vmatpush.msra.mxu0 0.0
        %914 = vmatpush.msra.mxu0 0.0
        %915 = vmatpush.msra.mxu0 0.0
        %916 = vmatpush.msra.mxu0 0.0
        %917 = vmatpush.msra.mxu0 0.0
        %918 = vmatpush.msra.mxu0 0.0
        %919 = vmatpush.msra.mxu0 0.0
        %920 = vmatpush.msra.mxu0 0.0
        %921 = vmatpush.msra.mxu0 0.0
        %922 = vmatpush.msra.mxu0 0.0
        %923 = vmatpush.msra.mxu0 0.0
        %924 = vmatpush.msra.mxu0 0.0
        %925 = vmatpush.msra.mxu0 0.0
        %926 = vmatpush.msra.mxu0 0.0
        %927 = vmatpush.msra.mxu0 %v683
        %928 = vmatmul.f32.gmra.mxu0 %v910
        %v929 = vpop.f32.mrf.mxu0
        %v930 = vadd.f32 0.0, %v929
        %931 = vdwg.mxu0
        %v933 = vsel %vm710, %v858, 0
        %935 = vmatpush.msra.mxu0 0.0
        %936 = vmatpush.msra.mxu0 0.0
        %937 = vmatpush.msra.mxu0 0.0
        %938 = vmatpush.msra.mxu0 0.0
        %939 = vmatpush.msra.mxu0 0.0
        %940 = vmatpush.msra.mxu0 0.0
        %941 = vmatpush.msra.mxu0 0.0
        %942 = vmatpush.msra.mxu0 0.0
        %943 = vmatpush.msra.mxu0 0.0
        %944 = vmatpush.msra.mxu0 0.0
        %945 = vmatpush.msra.mxu0 0.0
        %946 = vmatpush.msra.mxu0 0.0
        %947 = vmatpush.msra.mxu0 0.0
        %948 = vmatpush.msra.mxu0 0.0
        %949 = vmatpush.msra.mxu0 0.0
        %950 = vmatpush.msra.mxu0 %v708
        %951 = vmatmul.f32.gmra.mxu0 %v933
        %v952 = vpop.f32.mrf.mxu0
        %v953 = vadd.f32 0.0, %v952
        %954 = vdwg.mxu0
        %v955 = vld [vmem:[%s6] sm:$0xff]
        %s956 = scalar_lea.vmem %s6, 8
        %v957 = vld [vmem:[%s956] sm:$0xff]
        %v959 = vsel %vm710, %v907, 0
        %961 = vmatpush.msra.mxu0 0.0
        %962 = vmatpush.msra.mxu0 0.0
        %963 = vmatpush.msra.mxu0 0.0
        %964 = vmatpush.msra.mxu0 0.0
        %965 = vmatpush.msra.mxu0 0.0
        %966 = vmatpush.msra.mxu0 0.0
        %967 = vmatpush.msra.mxu0 0.0
        %968 = vmatpush.msra.mxu0 0.0
        %969 = vmatpush.msra.mxu0 0.0
        %970 = vmatpush.msra.mxu0 0.0
        %971 = vmatpush.msra.mxu0 0.0
        %972 = vmatpush.msra.mxu0 0.0
        %973 = vmatpush.msra.mxu0 0.0
        %974 = vmatpush.msra.mxu0 0.0
        %975 = vmatpush.msra.mxu0 0.0
        %976 = vmatpush.msra.mxu0 %v957
        %977 = vmatmul.f32.gmra.mxu0 %v959
        %v978 = vpop.f32.mrf.mxu0
        %v979 = vadd.f32 0.0, %v978
        %980 = vdwg.mxu0
        %s981 = scalar_lea.vmem %s6, 16
        %v982 = vld [vmem:[%s981] sm:$0xff]
        %s983 = scalar_lea.vmem %s6, 24
        %v984 = vld [vmem:[%s983] sm:$0xff]
        %v986 = vsel %vm710, %v953, 0
        %988 = vmatpush.msra.mxu0 0.0
        %989 = vmatpush.msra.mxu0 0.0
        %990 = vmatpush.msra.mxu0 0.0
        %991 = vmatpush.msra.mxu0 0.0
        %992 = vmatpush.msra.mxu0 0.0
        %993 = vmatpush.msra.mxu0 0.0
        %994 = vmatpush.msra.mxu0 0.0
        %995 = vmatpush.msra.mxu0 0.0
        %996 = vmatpush.msra.mxu0 0.0
        %997 = vmatpush.msra.mxu0 0.0
        %998 = vmatpush.msra.mxu0 0.0
        %999 = vmatpush.msra.mxu0 0.0
        %1000 = vmatpush.msra.mxu0 0.0
        %1001 = vmatpush.msra.mxu0 0.0
        %1002 = vmatpush.msra.mxu0 0.0
        %1003 = vmatpush.msra.mxu0 %v984
        %1004 = vmatmul.f32.gmra.mxu0 %v986
        %v1005 = vpop.f32.mrf.mxu0
        %v1006 = vadd.f32 0.0, %v1005
        %1007 = vdwg.mxu0
        %v1009 = vsel %vm710, %v884, 0
        %1011 = vmatpush.msra.mxu0 0.0
        %1012 = vmatpush.msra.mxu0 0.0
        %1013 = vmatpush.msra.mxu0 0.0
        %1014 = vmatpush.msra.mxu0 0.0
        %1015 = vmatpush.msra.mxu0 0.0
        %1016 = vmatpush.msra.mxu0 0.0
        %1017 = vmatpush.msra.mxu0 0.0
        %1018 = vmatpush.msra.mxu0 0.0
        %1019 = vmatpush.msra.mxu0 0.0
        %1020 = vmatpush.msra.mxu0 0.0
        %1021 = vmatpush.msra.mxu0 0.0
        %1022 = vmatpush.msra.mxu0 0.0
        %1023 = vmatpush.msra.mxu0 0.0
        %1024 = vmatpush.msra.mxu0 0.0
        %1025 = vmatpush.msra.mxu0 0.0
        %1026 = vmatpush.msra.mxu0 %v955
        %1027 = vmatmul.f32.gmra.mxu0 %v1009
        %v1028 = vpop.f32.mrf.mxu0
        %v1029 = vadd.f32 %v979, %v1028
        %1030 = vdwg.mxu0
        %v1032 = vsel %vm710, %v930, 0
        %1034 = vmatpush.msra.mxu0 0.0
        %1035 = vmatpush.msra.mxu0 0.0
        %1036 = vmatpush.msra.mxu0 0.0
        %1037 = vmatpush.msra.mxu0 0.0
        %1038 = vmatpush.msra.mxu0 0.0
        %1039 = vmatpush.msra.mxu0 0.0
        %1040 = vmatpush.msra.mxu0 0.0
        %1041 = vmatpush.msra.mxu0 0.0
        %1042 = vmatpush.msra.mxu0 0.0
        %1043 = vmatpush.msra.mxu0 0.0
        %1044 = vmatpush.msra.mxu0 0.0
        %1045 = vmatpush.msra.mxu0 0.0
        %1046 = vmatpush.msra.mxu0 0.0
        %1047 = vmatpush.msra.mxu0 0.0
        %1048 = vmatpush.msra.mxu0 0.0
        %1049 = vmatpush.msra.mxu0 %v982
        %1050 = vmatmul.f32.gmra.mxu0 %v1032
        %v1051 = vpop.f32.mrf.mxu0
        %v1052 = vadd.f32 %v1006, %v1051
        %1053 = vdwg.mxu0
        %v1054 = vadd.f32 %v1029, %v1052
        %v1055 = vadd.f32 %v400, %v1054
        %v1056 = vsel %vm407, %v1055, 0.0
        %1057 = vadd.xlane.f32.xlu0 %v1056
        %v1058 = vpop.xlane.xlu0 %1057
        %v1059 = vrcp.pop 32.0
        %v1060 = vmul.f32 32.0, %v1059
        %v1061 = vsub.f32 1.0, %v1060
        %v1062 = vmul.f32 %v1059, %v1061
        %v1063 = vadd.f32 %v1059, %v1062
        %vm1064 = vweird.f32 %v1059
        %v1065 = vsel %vm1064, %v1059, %v1063
        %v1066 = vmul.f32 %v1058, %v1065
        %v1067 = vsub.f32 %v1055, %v1066
        %v1068 = vmul.f32 %v1067, %v1067
        %v1069 = vsel %vm407, %v1068, 0.0
        %1070 = vadd.xlane.f32.xlu0 %v1069
        %v1071 = vpop.xlane.xlu0 %1070
        %v1072 = vmul.f32 %v1071, %v1065
        %v1073 = vadd.f32 %v1072, 1e-06
        %v1074 = vrsqrt.pop %v1073
        %v1075 = vmul.f32 %v1074, %v1073
        %v1076 = vmul.f32 %v1075, %v1074
        %v1077 = vmul.f32 0.5, %v1076
        %v1078 = vsub.f32 1.5, %v1077
        %v1079 = vmul.f32 %v1074, %v1078
        %vm1080 = vweird.f32 %v1073
        %vm1081 = vweird.f32 %v1074
        %vm1082 = vmor %vm1080, %vm1081
        %v1083 = vsel %vm1082, %v1074, %v1079
        %v1084 = vmul.f32 %v1067, %v1083
        %v1085 = vld [vmem:[%s7] sm:$0x1]
        %v1087 = vperm.slane %v1085, 0
        %v1089 = vmul.f32 %v1084, %v1087
        %v1090 = vld [vmem:[%s8] sm:$0x1]
        %v1092 = vperm.slane %v1090, 0
        %v1094 = vadd.f32 %v1089, %v1092
        %1095 = vst.msk [vmem:[%s380] sm:$0xff] %vm407, %v1094
        %s1096 = sand.u32 %s240, 1
        %s1097 = scalar_lea.sflag [#allocation3], %s1096
        %s1098 = sand.u32 %s240, 1
        %s1099 = smul.addr %s1098, 8
        %s1100 = scalar_lea.vmem [#allocation2], %s1099
        %s1101 = sand.u32 %s266, 1
        %s1102 = scalar_lea.sflag [#allocation5], %s1101
        %s1103 = sand.u32 %s266, 1
        %s1104 = smul.addr %s1103, 32
        %s1105 = scalar_lea.vmem [#allocation4], %s1104
        // Predicated region
        $region57: #{tpu_custom_call.1} parent=55 // pred_check
          %p1106 = pneg %p250
        $region58: #{tpu_custom_call.1} parent=55 // pred_check_branch
          %1108 = sbr.rel (%p1106) target = $region60
        $region59: #{tpu_custom_call.1} parent=55 // pred_region
          %1110 = vsyncadd %s1097, 0
          %s1111 = smul.addr %s28, 8
          %s1112 = scalar_lea.hbm %s9, %s1111
          %s1114 = sshll.u32 %s1100, 4
          %s1115 = int_to_ptr.vmem [resolvable:$true] %s1114
          %s1116 = sshll.u32 %s1112, 4
          %s1117 = int_to_ptr.hbm [resolvable:$true] %s1116
          %1119 = dma.vmem_to_hbm [thread:$0]  %s1115, 128, %s1117, %s1097
        $region60: #{tpu_custom_call.1} parent=55 // pred_fallthru
          _
        // Predicated region
        $region61: #{tpu_custom_call.1} parent=55 // pred_check
          %p1120 = pneg %p276
        $region62: #{tpu_custom_call.1} parent=55 // pred_check_branch
          %1122 = sbr.rel (%p1120) target = $region64
        $region63: #{tpu_custom_call.1} parent=55 // pred_region
          %1124 = vsyncadd %s1102, 0
          %s1125 = smul.addr %s28, 4
          %s1126 = smul.addr %s1125, 8
          %s1127 = scalar_lea.hbm %s10, %s1126
          %s1128 = sshll.u32 %s1105, 4
          %s1129 = int_to_ptr.vmem [resolvable:$true] %s1128
          %s1130 = sshll.u32 %s1127, 4
          %s1131 = int_to_ptr.hbm [resolvable:$true] %s1130
          %1136 = dma.vmem_to_hbm [thread:$0]  %s1129, 512, %s1131, %s1102, 128, 128, 8
        $region64: #{tpu_custom_call.1} parent=55 // pred_fallthru
          _
      $region56: #{tpu_custom_call.1} parent=5 // pred_fallthru
        _
      %p1137 = scmp.le.s32.totalorder 2, %s23
      // Predicated region
      $region65: #{tpu_custom_call.1} parent=5 // pred_check
        %p1138 = pneg %p1137
      $region66: #{tpu_custom_call.1} parent=5 // pred_check_branch
        %1140 = sbr.rel (%p1138) target = $region68
      $region67: #{tpu_custom_call.1} parent=5 // pred_region
        %s1141 = ssub.s32 %s23, 2
        // Predicated region
        $region69: #{tpu_custom_call.1} parent=67 // pred_check
          %p1142 = pneg %p256
        $region70: #{tpu_custom_call.1} parent=67 // pred_check_branch
          %1144 = sbr.rel (%p1142) target = $region72
        $region71: #{tpu_custom_call.1} parent=67 // pred_region
          %s1145 = sand.u32 %s241, 1
          %s1146 = scalar_lea.sflag [#allocation3], %s1145
          %s1147 = sand.u32 %s241, 1
          %s1148 = smul.addr %s1147, 8
          %s1149 = scalar_lea.vmem [#allocation2], %s1148
          %1151 = dma.done %s1146, 128
        $region72: #{tpu_custom_call.1} parent=67 // pred_fallthru
          _
        // Predicated region
        $region73: #{tpu_custom_call.1} parent=67 // pred_check
          %p1152 = pneg %p282
        $region74: #{tpu_custom_call.1} parent=67 // pred_check_branch
          %1154 = sbr.rel (%p1152) target = $region76
        $region75: #{tpu_custom_call.1} parent=67 // pred_region
          %s1155 = sand.u32 %s267, 1
          %s1156 = scalar_lea.sflag [#allocation5], %s1155
          %s1157 = sand.u32 %s267, 1
          %s1158 = smul.addr %s1157, 32
          %s1159 = scalar_lea.vmem [#allocation4], %s1158
          %1161 = dma.done %s1156, 512
        $region76: #{tpu_custom_call.1} parent=67 // pred_fallthru
          _
      $region68: #{tpu_custom_call.1} parent=5 // pred_fallthru
        _
    $region6: #{tpu_custom_call.1} parent=1 // loop_footer
      %s27 = sadd.s32 1, %s23
    $region7: #{tpu_custom_call.1} parent=1 // loop_footer_branch
      %22 = sbr.rel target = $region3
    $region8: #{tpu_custom_call.1} parent=1 // loop_exit
      _
    %1162 = vsyncpa [#allocation3], 1
    %s1163 = scalar_lea.sflag [#allocation3], 1
    %1164 = vsyncpa %s1163, 1
    %1165 = vsyncpa [#allocation5], 1
    %s1166 = scalar_lea.sflag [#allocation5], 1
    %1167 = vsyncpa %s1166, 1

// kernel: tpu_custom_call.1
$region0: #{tpu_custom_call.1}
  #allocation0 [shape = 'u32[]', space=smem, size = 0x4, offset = 0x4, fixed_abs, tag = 'smem constant byte address 0x4 - core index']
  #allocation1 [shape = 'u32[72,128]{1,0:T(1,128)}', space=vmem, size = 0x9000, scoped, tag = 'internal scratch']
  %s0 = inlined_call_operand.vmem [shape: f32[2,8,32], index: 0, kind: input, shape index: {}]
  %s1 = inlined_call_operand.vmem [shape: f32[2,8,32], index: 1, kind: input, shape index: {}]
  %s2 = inlined_call_operand.vmem [shape: f32[2,8,32], index: 2, kind: input, shape index: {}]
  %s3 = inlined_call_operand.vmem [shape: f32[4,32,8], index: 3, kind: input, shape index: {}]
  %s4 = inlined_call_operand.vmem [shape: f32[4,32,8], index: 4, kind: input, shape index: {}]
  %s5 = inlined_call_operand.vmem [shape: f32[4,32,8], index: 5, kind: input, shape index: {}]
  %s6 = inlined_call_operand.vmem [shape: f32[4,8,32], index: 6, kind: input, shape index: {}]
  %s7 = inlined_call_operand.vmem [shape: f32[1,32], index: 7, kind: input, shape index: {}]
  %s8 = inlined_call_operand.vmem [shape: f32[1,32], index: 8, kind: input, shape index: {}]
  %s9 = inlined_call_operand.hbm [shape: f32[2,8,32], index: 9, kind: output, shape index: {0}]
  %s10 = inlined_call_operand.hbm [shape: f32[2,4,8,8], index: 10, kind: output, shape index: {1}]
  %11 = xla_tuple %s9, %s10
  %s12 = sld [smem:[#allocation0]]
  $region77: #{tpu_custom_call.1} parent=0
    _
  %s14 = ssub.s32 1, %s12
  %s15 = scalar_select 0, %s14, %s12
  $region1: #{tpu_custom_call.1} parent=0
    #allocation2 [shape = 'u8[8192]{0}', space=vmem, size = 0x2000, scoped, tag = 'output window, operand 0']
    #allocation3 [shape = 's32[2]{0}', space=sflag, size = 0x8, scoped, tag = 'scoped memory for tpu_custom_call.1']
    #allocation4 [shape = 'u8[32768]{0}', space=vmem, size = 0x8000, scoped, tag = 'output window, operand 1']
    #allocation5 [shape = 's32[2]{0}', space=sflag, size = 0x8, scoped, tag = 'scoped memory for tpu_custom_call.1']
    %16 = vsyncpa [#allocation3], 0
    %s17 = scalar_lea.sflag [#allocation3], 1
    %18 = vsyncpa %s17, 0
    %19 = vsyncpa [#allocation5], 0
    %s20 = scalar_lea.sflag [#allocation5], 1
    %21 = vsyncpa %s20, 0
    loop: start=0, step=1, limit=4
    $region2: #{tpu_custom_call.1} parent=1 // loop_pre_header
      _
    $region3: #{tpu_custom_call.1} parent=1 // loop_header
      %s23 = sphi 0, %s27
      %p24 = scmp.ge.s32.totalorder %s23, 4
      %s33 = sphi 0, %s35
      %s36 = sphi 0, %s33
      %s37 = sphi 0, %s36
      %s53 = sphi 0, %s37
      %s59 = sphi 0, %s61
      %s62 = sphi 0, %s59
      %s63 = sphi 0, %s62
      %s79 = sphi 0, %s63
      %s85 = sphi 0, %s87
      %s88 = sphi 0, %s85
      %s89 = sphi 0, %s88
      %s105 = sphi 0, %s89
      %s109 = sphi 0, %s109
      %s111 = sphi 0, %s109
      %s112 = sphi 0, %s111
      %s126 = sphi 0, %s112
      %s130 = sphi 0, %s130
      %s132 = sphi 0, %s130
      %s133 = sphi 0, %s132
      %s147 = sphi 0, %s133
      %s151 = sphi 0, %s151
      %s153 = sphi 0, %s151
      %s154 = sphi 0, %s153
      %s168 = sphi 0, %s154
      %s172 = sphi 0, %s172
      %s174 = sphi 0, %s172
      %s175 = sphi 0, %s174
      %s189 = sphi 0, %s175
      %s193 = sphi 0, %s193
      %s195 = sphi 0, %s193
      %s196 = sphi 0, %s195
      %s210 = sphi 0, %s196
      %s214 = sphi 0, %s214
      %s216 = sphi 0, %s214
      %s217 = sphi 0, %s216
      %s231 = sphi 0, %s217
      %s237 = sphi 0, %s239
      %s240 = sphi 0, %s237
      %s241 = sphi 0, %s240
      %s257 = sphi 0, %s241
      %s263 = sphi 0, %s265
      %s266 = sphi 0, %s263
      %s267 = sphi 0, %s266
      %s283 = sphi 0, %s267
    $region4: #{tpu_custom_call.1} parent=1 // loop_header_branch
      %26 = sbr.rel (%p24) target = $region8
    $region5: #{tpu_custom_call.1} parent=1 // loop_body
      %s28 = ssub.s32 %s23, 1
      %s29 = ssub.s32 %s23, 2
      %s30 = sadd.s32 %s23, 1
      %s31 = ssub.s32 %s23, %s30
      %p32 = scmp.eq.s32.totalorder %s31, 0
      %s34 = sadd.s32 %s33, 1
      %s35 = scalar_select %p32, %s33, %s34
      %p38 = pneg %p32
      %p39 = scmp.eq.s32.totalorder %s23, 1
      %p40 = por %p38, %p39
      %p41 = scmp.ne.s32.totalorder %s33, %s36
      %p42 = scmp.eq.s32.totalorder %s23, 0
      %p43 = por %p41, %p42
      %p44 = scmp.ne.s32.totalorder %s33, %s36
      %p45 = scmp.eq.s32.totalorder %s28, 1
      %p46 = por %p44, %p45
      %p47 = scmp.ne.s32.totalorder %s36, %s37
      %p48 = scmp.eq.s32.totalorder %s28, 0
      %p49 = por %p47, %p48
      %p50 = scmp.ne.s32.totalorder %s36, %s37
      %p51 = scmp.eq.s32.totalorder %s29, 1
      %p52 = por %p50, %p51
      %p54 = scmp.ne.s32.totalorder %s37, %s53
      %p55 = scmp.eq.s32.totalorder %s29, 0
      %p56 = por %p54, %p55
      %s57 = ssub.s32 %s23, %s30
      %p58 = scmp.eq.s32.totalorder %s57, 0
      %s60 = sadd.s32 %s59, 1
      %s61 = scalar_select %p58, %s59, %s60
      %p64 = pneg %p58
      %p65 = scmp.eq.s32.totalorder %s23, 1
      %p66 = por %p64, %p65
      %p67 = scmp.ne.s32.totalorder %s59, %s62
      %p68 = scmp.eq.s32.totalorder %s23, 0
      %p69 = por %p67, %p68
      %p70 = scmp.ne.s32.totalorder %s59, %s62
      %p71 = scmp.eq.s32.totalorder %s28, 1
      %p72 = por %p70, %p71
      %p73 = scmp.ne.s32.totalorder %s62, %s63
      %p74 = scmp.eq.s32.totalorder %s28, 0
      %p75 = por %p73, %p74
      %p76 = scmp.ne.s32.totalorder %s62, %s63
      %p77 = scmp.eq.s32.totalorder %s29, 1
      %p78 = por %p76, %p77
      %p80 = scmp.ne.s32.totalorder %s63, %s79
      %p81 = scmp.eq.s32.totalorder %s29, 0
      %p82 = por %p80, %p81
      %s83 = ssub.s32 %s23, %s30
      %p84 = scmp.eq.s32.totalorder %s83, 0
      %s86 = sadd.s32 %s85, 1
      %s87 = scalar_select %p84, %s85, %s86
      %p90 = pneg %p84
      %p91 = scmp.eq.s32.totalorder %s23, 1
      %p92 = por %p90, %p91
      %p93 = scmp.ne.s32.totalorder %s85, %s88
      %p94 = scmp.eq.s32.totalorder %s23, 0
      %p95 = por %p93, %p94
      %p96 = scmp.ne.s32.totalorder %s85, %s88
      %p97 = scmp.eq.s32.totalorder %s28, 1
      %p98 = por %p96, %p97
      %p99 = scmp.ne.s32.totalorder %s88, %s89
      %p100 = scmp.eq.s32.totalorder %s28, 0
      %p101 = por %p99, %p100
      %p102 = scmp.ne.s32.totalorder %s88, %s89
      %p103 = scmp.eq.s32.totalorder %s29, 1
      %p104 = por %p102, %p103
      %p106 = scmp.ne.s32.totalorder %s89, %s105
      %p107 = scmp.eq.s32.totalorder %s29, 0
      %p108 = por %p106, %p107
      %s110 = sadd.s32 %s109, 1
      %p113 = scmp.eq.s32.totalorder %s23, 1
      %p114 = scmp.ne.s32.totalorder %s109, %s111
      %p115 = scmp.eq.s32.totalorder %s23, 0
      %p116 = por %p114, %p115
      %p117 = scmp.ne.s32.totalorder %s109, %s111
      %p118 = scmp.eq.s32.totalorder %s28, 1
      %p119 = por %p117, %p118
      %p120 = scmp.ne.s32.totalorder %s111, %s112
      %p121 = scmp.eq.s32.totalorder %s28, 0
      %p122 = por %p120, %p121
      %p123 = scmp.ne.s32.totalorder %s111, %s112
      %p124 = scmp.eq.s32.totalorder %s29, 1
      %p125 = por %p123, %p124
      %p127 = scmp.ne.s32.totalorder %s112, %s126
      %p128 = scmp.eq.s32.totalorder %s29, 0
      %p129 = por %p127, %p128
      %s131 = sadd.s32 %s130, 1
      %p134 = scmp.eq.s32.totalorder %s23, 1
      %p135 = scmp.ne.s32.totalorder %s130, %s132
      %p136 = scmp.eq.s32.totalorder %s23, 0
      %p137 = por %p135, %p136
      %p138 = scmp.ne.s32.totalorder %s130, %s132
      %p139 = scmp.eq.s32.totalorder %s28, 1
      %p140 = por %p138, %p139
      %p141 = scmp.ne.s32.totalorder %s132, %s133
      %p142 = scmp.eq.s32.totalorder %s28, 0
      %p143 = por %p141, %p142
      %p144 = scmp.ne.s32.totalorder %s132, %s133
      %p145 = scmp.eq.s32.totalorder %s29, 1
      %p146 = por %p144, %p145
      %p148 = scmp.ne.s32.totalorder %s133, %s147
      %p149 = scmp.eq.s32.totalorder %s29, 0
      %p150 = por %p148, %p149
      %s152 = sadd.s32 %s151, 1
      %p155 = scmp.eq.s32.totalorder %s23, 1
      %p156 = scmp.ne.s32.totalorder %s151, %s153
      %p157 = scmp.eq.s32.totalorder %s23, 0
      %p158 = por %p156, %p157
      %p159 = scmp.ne.s32.totalorder %s151, %s153
      %p160 = scmp.eq.s32.totalorder %s28, 1
      %p161 = por %p159, %p160
      %p162 = scmp.ne.s32.totalorder %s153, %s154
      %p163 = scmp.eq.s32.totalorder %s28, 0
      %p164 = por %p162, %p163
      %p165 = scmp.ne.s32.totalorder %s153, %s154
      %p166 = scmp.eq.s32.totalorder %s29, 1
      %p167 = por %p165, %p166
      %p169 = scmp.ne.s32.totalorder %s154, %s168
      %p170 = scmp.eq.s32.totalorder %s29, 0
      %p171 = por %p169, %p170
      %s173 = sadd.s32 %s172, 1
      %p176 = scmp.eq.s32.totalorder %s23, 1
      %p177 = scmp.ne.s32.totalorder %s172, %s174
      %p178 = scmp.eq.s32.totalorder %s23, 0
      %p179 = por %p177, %p178
      %p180 = scmp.ne.s32.totalorder %s172, %s174
      %p181 = scmp.eq.s32.totalorder %s28, 1
      %p182 = por %p180, %p181
      %p183 = scmp.ne.s32.totalorder %s174, %s175
      %p184 = scmp.eq.s32.totalorder %s28, 0
      %p185 = por %p183, %p184
      %p186 = scmp.ne.s32.totalorder %s174, %s175
      %p187 = scmp.eq.s32.totalorder %s29, 1
      %p188 = por %p186, %p187
      %p190 = scmp.ne.s32.totalorder %s175, %s189
      %p191 = scmp.eq.s32.totalorder %s29, 0
      %p192 = por %p190, %p191
      %s194 = sadd.s32 %s193, 1
      %p197 = scmp.eq.s32.totalorder %s23, 1
      %p198 = scmp.ne.s32.totalorder %s193, %s195
      %p199 = scmp.eq.s32.totalorder %s23, 0
      %p200 = por %p198, %p199
      %p201 = scmp.ne.s32.totalorder %s193, %s195
      %p202 = scmp.eq.s32.totalorder %s28, 1
      %p203 = por %p201, %p202
      %p204 = scmp.ne.s32.totalorder %s195, %s196
      %p205 = scmp.eq.s32.totalorder %s28, 0
      %p206 = por %p204, %p205
      %p207 = scmp.ne.s32.totalorder %s195, %s196
      %p208 = scmp.eq.s32.totalorder %s29, 1
      %p209 = por %p207, %p208
      %p211 = scmp.ne.s32.totalorder %s196, %s210
      %p212 = scmp.eq.s32.totalorder %s29, 0
      %p213 = por %p211, %p212
      %s215 = sadd.s32 %s214, 1
      %p218 = scmp.eq.s32.totalorder %s23, 1
      %p219 = scmp.ne.s32.totalorder %s214, %s216
      %p220 = scmp.eq.s32.totalorder %s23, 0
      %p221 = por %p219, %p220
      %p222 = scmp.ne.s32.totalorder %s214, %s216
      %p223 = scmp.eq.s32.totalorder %s28, 1
      %p224 = por %p222, %p223
      %p225 = scmp.ne.s32.totalorder %s216, %s217
      %p226 = scmp.eq.s32.totalorder %s28, 0
      %p227 = por %p225, %p226
      %p228 = scmp.ne.s32.totalorder %s216, %s217
      %p229 = scmp.eq.s32.totalorder %s29, 1
      %p230 = por %p228, %p229
      %p232 = scmp.ne.s32.totalorder %s217, %s231
      %p233 = scmp.eq.s32.totalorder %s29, 0
      %p234 = por %p232, %p233
      %s235 = ssub.s32 %s23, %s30
      %p236 = scmp.eq.s32.totalorder %s235, 0
      %s238 = sadd.s32 %s237, 1
      %s239 = scalar_select %p236, %s237, %s238
      %p242 = pneg %p236
      %p243 = scmp.eq.s32.totalorder %s23, 1
      %p244 = por %p242, %p243
      %p245 = scmp.ne.s32.totalorder %s237, %s240
      %p246 = scmp.eq.s32.totalorder %s23, 0
      %p247 = por %p245, %p246
      %p248 = scmp.ne.s32.totalorder %s237, %s240
      %p249 = scmp.eq.s32.totalorder %s28, 1
      %p250 = por %p248, %p249
      %p251 = scmp.ne.s32.totalorder %s240, %s241
      %p252 = scmp.eq.s32.totalorder %s28, 0
      %p253 = por %p251, %p252
      %p254 = scmp.ne.s32.totalorder %s240, %s241
      %p255 = scmp.eq.s32.totalorder %s29, 1
      %p256 = por %p254, %p255
      %p258 = scmp.ne.s32.totalorder %s241, %s257
      %p259 = scmp.eq.s32.totalorder %s29, 0
      %p260 = por %p258, %p259
      %s261 = ssub.s32 %s23, %s30
      %p262 = scmp.eq.s32.totalorder %s261, 0
      %s264 = sadd.s32 %s263, 1
      %s265 = scalar_select %p262, %s263, %s264
      %p268 = pneg %p262
      %p269 = scmp.eq.s32.totalorder %s23, 1
      %p270 = por %p268, %p269
      %p271 = scmp.ne.s32.totalorder %s263, %s266
      %p272 = scmp.eq.s32.totalorder %s23, 0
      %p273 = por %p271, %p272
      %p274 = scmp.ne.s32.totalorder %s263, %s266
      %p275 = scmp.eq.s32.totalorder %s28, 1
      %p276 = por %p274, %p275
      %p277 = scmp.ne.s32.totalorder %s266, %s267
      %p278 = scmp.eq.s32.totalorder %s28, 0
      %p279 = por %p277, %p278
      %p280 = scmp.ne.s32.totalorder %s266, %s267
      %p281 = scmp.eq.s32.totalorder %s29, 1
      %p282 = por %p280, %p281
      %p284 = scmp.ne.s32.totalorder %s267, %s283
      %p285 = scmp.eq.s32.totalorder %s29, 0
      %p286 = por %p284, %p285
      %p287 = scmp.le.s32.totalorder 1, %s23
      %p288 = scmp.lt.s32.totalorder %s23, 3
      %p289 = pnand %p287, %p288
      %p290 = pneg %p289
      // Predicated region
      $region9: #{tpu_custom_call.1} parent=5 // pred_check
        _
      $region10: #{tpu_custom_call.1} parent=5 // pred_check_branch
        %292 = sbr.rel (%p289) target = $region12
      $region11: #{tpu_custom_call.1} parent=5 // pred_region
        %s293 = ssub.s32 %s23, 1
        // Predicated region
        $region13: #{tpu_custom_call.1} parent=11 // pred_check
          %p294 = pneg %p122
        $region14: #{tpu_custom_call.1} parent=11 // pred_check_branch
          %296 = sbr.rel (%p294) target = $region16
        $region15: #{tpu_custom_call.1} parent=11 // pred_region
          _
        $region16: #{tpu_custom_call.1} parent=11 // pred_fallthru
          _
        // Predicated region
        $region17: #{tpu_custom_call.1} parent=11 // pred_check
          %p297 = pneg %p143
        $region18: #{tpu_custom_call.1} parent=11 // pred_check_branch
          %299 = sbr.rel (%p297) target = $region20
        $region19: #{tpu_custom_call.1} parent=11 // pred_region
          _
        $region20: #{tpu_custom_call.1} parent=11 // pred_fallthru
          _
        // Predicated region
        $region21: #{tpu_custom_call.1} parent=11 // pred_check
          %p300 = pneg %p164
        $region22: #{tpu_custom_call.1} parent=11 // pred_check_branch
          %302 = sbr.rel (%p300) target = $region24
        $region23: #{tpu_custom_call.1} parent=11 // pred_region
          _
        $region24: #{tpu_custom_call.1} parent=11 // pred_fallthru
          _
        // Predicated region
        $region25: #{tpu_custom_call.1} parent=11 // pred_check
          %p303 = pneg %p185
        $region26: #{tpu_custom_call.1} parent=11 // pred_check_branch
          %305 = sbr.rel (%p303) target = $region28
        $region27: #{tpu_custom_call.1} parent=11 // pred_region
          _
        $region28: #{tpu_custom_call.1} parent=11 // pred_fallthru
          _
        // Predicated region
        $region29: #{tpu_custom_call.1} parent=11 // pred_check
          %p306 = pneg %p206
        $region30: #{tpu_custom_call.1} parent=11 // pred_check_branch
          %308 = sbr.rel (%p306) target = $region32
        $region31: #{tpu_custom_call.1} parent=11 // pred_region
          _
        $region32: #{tpu_custom_call.1} parent=11 // pred_fallthru
          _
        // Predicated region
        $region33: #{tpu_custom_call.1} parent=11 // pred_check
          %p309 = pneg %p227
        $region34: #{tpu_custom_call.1} parent=11 // pred_check_branch
          %311 = sbr.rel (%p309) target = $region36
        $region35: #{tpu_custom_call.1} parent=11 // pred_region
          _
        $region36: #{tpu_custom_call.1} parent=11 // pred_fallthru
          _
      $region12: #{tpu_custom_call.1} parent=5 // pred_fallthru
        _
      %p312 = scmp.lt.s32.totalorder %s23, 2
      // Predicated region
      $region37: #{tpu_custom_call.1} parent=5 // pred_check
        %p313 = pneg %p312
      $region38: #{tpu_custom_call.1} parent=5 // pred_check_branch
        %315 = sbr.rel (%p313) target = $region40
      $region39: #{tpu_custom_call.1} parent=5 // pred_region
        // Predicated region
        $region41: #{tpu_custom_call.1} parent=39 // pred_check
          %p316 = pneg %p43
        $region42: #{tpu_custom_call.1} parent=39 // pred_check_branch
          %318 = sbr.rel (%p316) target = $region44
        $region43: #{tpu_custom_call.1} parent=39 // pred_region
          %p319 = scmp.lt.s32.totalorder %s23, 1
          %s320 = scalar_select %p319, %s23, 1
          %s321 = smul.addr %s320, 8
          %s322 = scalar_lea.vmem %s0, %s321
        $region44: #{tpu_custom_call.1} parent=39 // pred_fallthru
          _
        // Predicated region
        $region45: #{tpu_custom_call.1} parent=39 // pred_check
          %p323 = pneg %p69
        $region46: #{tpu_custom_call.1} parent=39 // pred_check_branch
          %325 = sbr.rel (%p323) target = $region48
        $region47: #{tpu_custom_call.1} parent=39 // pred_region
          %p326 = scmp.lt.s32.totalorder %s23, 1
          %s327 = scalar_select %p326, %s23, 1
          %s328 = smul.addr %s327, 8
          %s329 = scalar_lea.vmem %s1, %s328
        $region48: #{tpu_custom_call.1} parent=39 // pred_fallthru
          _
        // Predicated region
        $region49: #{tpu_custom_call.1} parent=39 // pred_check
          %p330 = pneg %p95
        $region50: #{tpu_custom_call.1} parent=39 // pred_check_branch
          %332 = sbr.rel (%p330) target = $region52
        $region51: #{tpu_custom_call.1} parent=39 // pred_region
          %p333 = scmp.lt.s32.totalorder %s23, 1
          %s334 = scalar_select %p333, %s23, 1
          %s335 = smul.addr %s334, 8
          %s336 = scalar_lea.vmem %s2, %s335
        $region52: #{tpu_custom_call.1} parent=39 // pred_fallthru
          _
      $region40: #{tpu_custom_call.1} parent=5 // pred_fallthru
        _
      %p337 = scmp.le.s32.totalorder 1, %s23
      %p338 = scmp.lt.s32.totalorder %s23, 3
      %p339 = pnand %p337, %p338
      %p340 = pneg %p339
      // Predicated region
      $region53: #{tpu_custom_call.1} parent=5 // pred_check
        _
      $region54: #{tpu_custom_call.1} parent=5 // pred_check_branch
        %342 = sbr.rel (%p339) target = $region56
      $region55: #{tpu_custom_call.1} parent=5 // pred_region
        %s343 = ssub.s32 %s23, 1
        %p344 = scmp.lt.s32.totalorder %s28, 1
        %s345 = scalar_select %p344, %s28, 1
        %s346 = smul.addr %s345, 8
        %s347 = scalar_lea.vmem %s0, %s346
        %p348 = pneg %p49
        %p349 = pneg %p46
        %p350 = scmp.lt.s32.totalorder %s28, 1
        %s351 = scalar_select %p350, %s28, 1
        %s352 = smul.addr %s351, 8
        %s353 = scalar_lea.vmem %s1, %s352
        %p354 = pneg %p75
        %p355 = pneg %p72
        %p356 = scmp.lt.s32.totalorder %s28, 1
        %s357 = scalar_select %p356, %s28, 1
        %s358 = smul.addr %s357, 8
        %s359 = scalar_lea.vmem %s2, %s358
        %p360 = pneg %p101
        %p361 = pneg %p98
        %p362 = pneg %p122
        %p363 = pneg %p119
        %p364 = pneg %p143
        %p365 = pneg %p140
        %p366 = pneg %p164
        %p367 = pneg %p161
        %p368 = pneg %p185
        %p369 = pneg %p182
        %p370 = pneg %p206
        %p371 = pneg %p203
        %p372 = pneg %p227
        %p373 = pneg %p224
        %p374 = pneg %p253
        %p375 = pneg %p250
        %s376 = sand.u32 %s240, 1
        %s377 = scalar_lea.sflag [#allocation3], %s376
        %s378 = sand.u32 %s240, 1
        %s379 = smul.addr %s378, 8
        %s380 = scalar_lea.vmem [#allocation2], %s379
        %p381 = pneg %p279
        %p382 = pneg %p276
        %s383 = sand.u32 %s266, 1
        %s384 = scalar_lea.sflag [#allocation5], %s383
        %s385 = sand.u32 %s266, 1
        %s386 = smul.addr %s385, 32
        %s387 = scalar_lea.vmem [#allocation4], %s386
        %p388 = scmp.lt.s32.totalorder %s28, 1
        %s389 = scalar_select %p388, %s28, 1
        %s390 = smul.addr %s389, 8
        %s391 = scalar_lea.vmem %s0, %s390
        %p392 = scmp.lt.s32.totalorder %s28, 1
        %s393 = scalar_select %p392, %s28, 1
        %s394 = smul.addr %s393, 8
        %s395 = scalar_lea.vmem %s1, %s394
        %p396 = scmp.lt.s32.totalorder %s28, 1
        %s397 = scalar_select %p396, %s28, 1
        %s398 = smul.addr %s397, 8
        %s399 = scalar_lea.vmem %s2, %s398
        %v400 = vld [vmem:[%s391] sm:$0xff]
        %v401 = vld [vmem:[%s395] sm:$0xff]
        %v402 = vld [vmem:[%s399] sm:$0xff]
        %v403 = vld [vmem:[%s3] sm:$0xff]
        %v404 = vld [vmem:[%s3 + $0x8] sm:$0xff]
        %v405 = vld [vmem:[%s3 + $0x10] sm:$0xff]
        %v406 = vld [vmem:[%s3 + $0x18] sm:$0xff]
        %vm407 = vcmask 261120
        %v409 = vsel %vm407, %v400, 0
        %411 = vmatpush.msra.mxu0 0.0
        %412 = vmatpush.msra.mxu0 0.0
        %413 = vmatpush.msra.mxu0 0.0
        %414 = vmatpush.msra.mxu0 0.0
        %415 = vmatpush.msra.mxu0 0.0
        %416 = vmatpush.msra.mxu0 0.0
        %417 = vmatpush.msra.mxu0 0.0
        %418 = vmatpush.msra.mxu0 0.0
        %419 = vmatpush.msra.mxu0 0.0
        %420 = vmatpush.msra.mxu0 0.0
        %421 = vmatpush.msra.mxu0 0.0
        %422 = vmatpush.msra.mxu0 0.0
        %423 = vmatpush.msra.mxu0 %v406
        %424 = vmatpush.msra.mxu0 %v405
        %425 = vmatpush.msra.mxu0 %v404
        %426 = vmatpush.msra.mxu0 %v403
        %427 = vmatmul.f32.gmra.mxu0 %v409
        %v428 = vpop.f32.mrf.mxu0
        %v429 = vadd.f32 0.0, %v428
        %430 = vdwg.mxu0
        %s431 = scalar_lea.vmem %s3, 32
        %v432 = vld [vmem:[%s431] sm:$0xff]
        %v433 = vld [vmem:[%s431 + $0x8] sm:$0xff]
        %v434 = vld [vmem:[%s431 + $0x10] sm:$0xff]
        %v435 = vld [vmem:[%s431 + $0x18] sm:$0xff]
        %436 = vmatpush.msra.mxu0 0.0
        %437 = vmatpush.msra.mxu0 0.0
        %438 = vmatpush.msra.mxu0 0.0
        %439 = vmatpush.msra.mxu0 0.0
        %440 = vmatpush.msra.mxu0 0.0
        %441 = vmatpush.msra.mxu0 0.0
        %442 = vmatpush.msra.mxu0 0.0
        %443 = vmatpush.msra.mxu0 0.0
        %444 = vmatpush.msra.mxu0 0.0
        %445 = vmatpush.msra.mxu0 0.0
        %446 = vmatpush.msra.mxu0 0.0
        %447 = vmatpush.msra.mxu0 0.0
        %448 = vmatpush.msra.mxu0 %v435
        %449 = vmatpush.msra.mxu0 %v434
        %450 = vmatpush.msra.mxu0 %v433
        %451 = vmatpush.msra.mxu0 %v432
        %452 = vmatmul.f32.gmra.mxu0 %v409
        %v453 = vpop.f32.mrf.mxu0
        %v454 = vadd.f32 0.0, %v453
        %455 = vdwg.mxu0
        %s456 = scalar_lea.vmem %s3, 64
        %v457 = vld [vmem:[%s456] sm:$0xff]
        %v458 = vld [vmem:[%s456 + $0x8] sm:$0xff]
        %v459 = vld [vmem:[%s456 + $0x10] sm:$0xff]
        %v460 = vld [vmem:[%s456 + $0x18] sm:$0xff]
        %461 = vmatpush.msra.mxu0 0.0
        %462 = vmatpush.msra.mxu0 0.0
        %463 = vmatpush.msra.mxu0 0.0
        %464 = vmatpush.msra.mxu0 0.0
        %465 = vmatpush.msra.mxu0 0.0
        %466 = vmatpush.msra.mxu0 0.0
        %467 = vmatpush.msra.mxu0 0.0
        %468 = vmatpush.msra.mxu0 0.0
        %469 = vmatpush.msra.mxu0 0.0
        %470 = vmatpush.msra.mxu0 0.0
        %471 = vmatpush.msra.mxu0 0.0
        %472 = vmatpush.msra.mxu0 0.0
        %473 = vmatpush.msra.mxu0 %v460
        %474 = vmatpush.msra.mxu0 %v459
        %475 = vmatpush.msra.mxu0 %v458
        %476 = vmatpush.msra.mxu0 %v457
        %477 = vmatmul.f32.gmra.mxu0 %v409
        %v478 = vpop.f32.mrf.mxu0
        %v479 = vadd.f32 0.0, %v478
        %480 = vdwg.mxu0
        %s481 = scalar_lea.vmem %s3, 96
        %v482 = vld [vmem:[%s481] sm:$0xff]
        %v483 = vld [vmem:[%s481 + $0x8] sm:$0xff]
        %v484 = vld [vmem:[%s481 + $0x10] sm:$0xff]
        %v485 = vld [vmem:[%s481 + $0x18] sm:$0xff]
        %486 = vmatpush.msra.mxu0 0.0
        %487 = vmatpush.msra.mxu0 0.0
        %488 = vmatpush.msra.mxu0 0.0
        %489 = vmatpush.msra.mxu0 0.0
        %490 = vmatpush.msra.mxu0 0.0
        %491 = vmatpush.msra.mxu0 0.0
        %492 = vmatpush.msra.mxu0 0.0
        %493 = vmatpush.msra.mxu0 0.0
        %494 = vmatpush.msra.mxu0 0.0
        %495 = vmatpush.msra.mxu0 0.0
        %496 = vmatpush.msra.mxu0 0.0
        %497 = vmatpush.msra.mxu0 0.0
        %498 = vmatpush.msra.mxu0 %v485
        %499 = vmatpush.msra.mxu0 %v484
        %500 = vmatpush.msra.mxu0 %v483
        %501 = vmatpush.msra.mxu0 %v482
        %502 = vmatmul.f32.gmra.mxu0 %v409
        %v503 = vpop.f32.mrf.mxu0
        %v504 = vadd.f32 0.0, %v503
        %505 = vdwg.mxu0
        %v506 = vld [vmem:[%s4] sm:$0xff]
        %v507 = vld [vmem:[%s4 + $0x8] sm:$0xff]
        %v508 = vld [vmem:[%s4 + $0x10] sm:$0xff]
        %v509 = vld [vmem:[%s4 + $0x18] sm:$0xff]
        %v511 = vsel %vm407, %v401, 0
        %513 = vmatpush.msra.mxu0 0.0
        %514 = vmatpush.msra.mxu0 0.0
        %515 = vmatpush.msra.mxu0 0.0
        %516 = vmatpush.msra.mxu0 0.0
        %517 = vmatpush.msra.mxu0 0.0
        %518 = vmatpush.msra.mxu0 0.0
        %519 = vmatpush.msra.mxu0 0.0
        %520 = vmatpush.msra.mxu0 0.0
        %521 = vmatpush.msra.mxu0 0.0
        %522 = vmatpush.msra.mxu0 0.0
        %523 = vmatpush.msra.mxu0 0.0
        %524 = vmatpush.msra.mxu0 0.0
        %525 = vmatpush.msra.mxu0 %v509
        %526 = vmatpush.msra.mxu0 %v508
        %527 = vmatpush.msra.mxu0 %v507
        %528 = vmatpush.msra.mxu0 %v506
        %529 = vmatmul.f32.gmra.mxu0 %v511
        %v530 = vpop.f32.mrf.mxu0
        %v531 = vadd.f32 0.0, %v530
        %532 = vdwg.mxu0
        %s533 = scalar_lea.vmem %s4, 32
        %v534 = vld [vmem:[%s533] sm:$0xff]
        %v535 = vld [vmem:[%s533 + $0x8] sm:$0xff]
        %v536 = vld [vmem:[%s533 + $0x10] sm:$0xff]
        %v537 = vld [vmem:[%s533 + $0x18] sm:$0xff]
        %538 = vmatpush.msra.mxu0 0.0
        %539 = vmatpush.msra.mxu0 0.0
        %540 = vmatpush.msra.mxu0 0.0
        %541 = vmatpush.msra.mxu0 0.0
        %542 = vmatpush.msra.mxu0 0.0
        %543 = vmatpush.msra.mxu0 0.0
        %544 = vmatpush.msra.mxu0 0.0
        %545 = vmatpush.msra.mxu0 0.0
        %546 = vmatpush.msra.mxu0 0.0
        %547 = vmatpush.msra.mxu0 0.0
        %548 = vmatpush.msra.mxu0 0.0
        %549 = vmatpush.msra.mxu0 0.0
        %550 = vmatpush.msra.mxu0 %v537
        %551 = vmatpush.msra.mxu0 %v536
        %552 = vmatpush.msra.mxu0 %v535
        %553 = vmatpush.msra.mxu0 %v534
        %554 = vmatmul.f32.gmra.mxu0 %v511
        %v555 = vpop.f32.mrf.mxu0
        %v556 = vadd.f32 0.0, %v555
        %557 = vdwg.mxu0
        %s558 = scalar_lea.vmem %s4, 64
        %v559 = vld [vmem:[%s558] sm:$0xff]
        %v560 = vld [vmem:[%s558 + $0x8] sm:$0xff]
        %v561 = vld [vmem:[%s558 + $0x10] sm:$0xff]
        %v562 = vld [vmem:[%s558 + $0x18] sm:$0xff]
        %563 = vmatpush.msra.mxu0 0.0
        %564 = vmatpush.msra.mxu0 0.0
        %565 = vmatpush.msra.mxu0 0.0
        %566 = vmatpush.msra.mxu0 0.0
        %567 = vmatpush.msra.mxu0 0.0
        %568 = vmatpush.msra.mxu0 0.0
        %569 = vmatpush.msra.mxu0 0.0
        %570 = vmatpush.msra.mxu0 0.0
        %571 = vmatpush.msra.mxu0 0.0
        %572 = vmatpush.msra.mxu0 0.0
        %573 = vmatpush.msra.mxu0 0.0
        %574 = vmatpush.msra.mxu0 0.0
        %575 = vmatpush.msra.mxu0 %v562
        %576 = vmatpush.msra.mxu0 %v561
        %577 = vmatpush.msra.mxu0 %v560
        %578 = vmatpush.msra.mxu0 %v559
        %579 = vmatmul.f32.gmra.mxu0 %v511
        %v580 = vpop.f32.mrf.mxu0
        %v581 = vadd.f32 0.0, %v580
        %582 = vdwg.mxu0
        %s583 = scalar_lea.vmem %s4, 96
        %v584 = vld [vmem:[%s583] sm:$0xff]
        %v585 = vld [vmem:[%s583 + $0x8] sm:$0xff]
        %v586 = vld [vmem:[%s583 + $0x10] sm:$0xff]
        %v587 = vld [vmem:[%s583 + $0x18] sm:$0xff]
        %588 = vmatpush.msra.mxu0 0.0
        %589 = vmatpush.msra.mxu0 0.0
        %590 = vmatpush.msra.mxu0 0.0
        %591 = vmatpush.msra.mxu0 0.0
        %592 = vmatpush.msra.mxu0 0.0
        %593 = vmatpush.msra.mxu0 0.0
        %594 = vmatpush.msra.mxu0 0.0
        %595 = vmatpush.msra.mxu0 0.0
        %596 = vmatpush.msra.mxu0 0.0
        %597 = vmatpush.msra.mxu0 0.0
        %598 = vmatpush.msra.mxu0 0.0
        %599 = vmatpush.msra.mxu0 0.0
        %600 = vmatpush.msra.mxu0 %v587
        %601 = vmatpush.msra.mxu0 %v586
        %602 = vmatpush.msra.mxu0 %v585
        %603 = vmatpush.msra.mxu0 %v584
        %604 = vmatmul.f32.gmra.mxu0 %v511
        %v605 = vpop.f32.mrf.mxu0
        %v606 = vadd.f32 0.0, %v605
        %607 = vdwg.mxu0
        %v608 = vld [vmem:[%s5] sm:$0xff]
        %v609 = vld [vmem:[%s5 + $0x8] sm:$0xff]
        %v610 = vld [vmem:[%s5 + $0x10] sm:$0xff]
        %v611 = vld [vmem:[%s5 + $0x18] sm:$0xff]
        %v613 = vsel %vm407, %v402, 0
        %615 = vmatpush.msra.mxu0 0.0
        %616 = vmatpush.msra.mxu0 0.0
        %617 = vmatpush.msra.mxu0 0.0
        %618 = vmatpush.msra.mxu0 0.0
        %619 = vmatpush.msra.mxu0 0.0
        %620 = vmatpush.msra.mxu0 0.0
        %621 = vmatpush.msra.mxu0 0.0
        %622 = vmatpush.msra.mxu0 0.0
        %623 = vmatpush.msra.mxu0 0.0
        %624 = vmatpush.msra.mxu0 0.0
        %625 = vmatpush.msra.mxu0 0.0
        %626 = vmatpush.msra.mxu0 0.0
        %627 = vmatpush.msra.mxu0 %v611
        %628 = vmatpush.msra.mxu0 %v610
        %629 = vmatpush.msra.mxu0 %v609
        %630 = vmatpush.msra.mxu0 %v608
        %631 = vmatmul.f32.gmra.mxu0 %v613
        %v632 = vpop.f32.mrf.mxu0
        %v633 = vadd.f32 0.0, %v632
        %634 = vdwg.mxu0
        %s635 = scalar_lea.vmem %s5, 32
        %v636 = vld [vmem:[%s635] sm:$0xff]
        %v637 = vld [vmem:[%s635 + $0x8] sm:$0xff]
        %v638 = vld [vmem:[%s635 + $0x10] sm:$0xff]
        %v639 = vld [vmem:[%s635 + $0x18] sm:$0xff]
        %640 = vmatpush.msra.mxu0 0.0
        %641 = vmatpush.msra.mxu0 0.0
        %642 = vmatpush.msra.mxu0 0.0
        %643 = vmatpush.msra.mxu0 0.0
        %644 = vmatpush.msra.mxu0 0.0
        %645 = vmatpush.msra.mxu0 0.0
        %646 = vmatpush.msra.mxu0 0.0
        %647 = vmatpush.msra.mxu0 0.0
        %648 = vmatpush.msra.mxu0 0.0
        %649 = vmatpush.msra.mxu0 0.0
        %650 = vmatpush.msra.mxu0 0.0
        %651 = vmatpush.msra.mxu0 0.0
        %652 = vmatpush.msra.mxu0 %v639
        %653 = vmatpush.msra.mxu0 %v638
        %654 = vmatpush.msra.mxu0 %v637
        %655 = vmatpush.msra.mxu0 %v636
        %656 = vmatmul.f32.gmra.mxu0 %v613
        %v657 = vpop.f32.mrf.mxu0
        %v658 = vadd.f32 0.0, %v657
        %659 = vdwg.mxu0
        %s660 = scalar_lea.vmem %s5, 64
        %v661 = vld [vmem:[%s660] sm:$0xff]
        %v662 = vld [vmem:[%s660 + $0x8] sm:$0xff]
        %v663 = vld [vmem:[%s660 + $0x10] sm:$0xff]
        %v664 = vld [vmem:[%s660 + $0x18] sm:$0xff]
        %665 = vmatpush.msra.mxu0 0.0
        %666 = vmatpush.msra.mxu0 0.0
        %667 = vmatpush.msra.mxu0 0.0
        %668 = vmatpush.msra.mxu0 0.0
        %669 = vmatpush.msra.mxu0 0.0
        %670 = vmatpush.msra.mxu0 0.0
        %671 = vmatpush.msra.mxu0 0.0
        %672 = vmatpush.msra.mxu0 0.0
        %673 = vmatpush.msra.mxu0 0.0
        %674 = vmatpush.msra.mxu0 0.0
        %675 = vmatpush.msra.mxu0 0.0
        %676 = vmatpush.msra.mxu0 0.0
        %677 = vmatpush.msra.mxu0 %v664
        %678 = vmatpush.msra.mxu0 %v663
        %679 = vmatpush.msra.mxu0 %v662
        %680 = vmatpush.msra.mxu0 %v661
        %681 = vmatmul.f32.gmra.mxu0 %v613
        %v682 = vpop.f32.mrf.mxu0
        %v683 = vadd.f32 0.0, %v682
        %684 = vdwg.mxu0
        %s685 = scalar_lea.vmem %s5, 96
        %v686 = vld [vmem:[%s685] sm:$0xff]
        %v687 = vld [vmem:[%s685 + $0x8] sm:$0xff]
        %v688 = vld [vmem:[%s685 + $0x10] sm:$0xff]
        %v689 = vld [vmem:[%s685 + $0x18] sm:$0xff]
        %690 = vmatpush.msra.mxu0 0.0
        %691 = vmatpush.msra.mxu0 0.0
        %692 = vmatpush.msra.mxu0 0.0
        %693 = vmatpush.msra.mxu0 0.0
        %694 = vmatpush.msra.mxu0 0.0
        %695 = vmatpush.msra.mxu0 0.0
        %696 = vmatpush.msra.mxu0 0.0
        %697 = vmatpush.msra.mxu0 0.0
        %698 = vmatpush.msra.mxu0 0.0
        %699 = vmatpush.msra.mxu0 0.0
        %700 = vmatpush.msra.mxu0 0.0
        %701 = vmatpush.msra.mxu0 0.0
        %702 = vmatpush.msra.mxu0 %v689
        %703 = vmatpush.msra.mxu0 %v688
        %704 = vmatpush.msra.mxu0 %v687
        %705 = vmatpush.msra.mxu0 %v686
        %706 = vmatmul.f32.gmra.mxu0 %v613
        %v707 = vpop.f32.mrf.mxu0
        %v708 = vadd.f32 0.0, %v707
        %709 = vdwg.mxu0
        %vm710 = vcmask 64512
        %v712 = vsel %vm710, %v429, 0
        %v715 = vsel %vm710, %v531, 0
        %717 = vmatpush.xpose.msra.mxu0 0.0
        %718 = vmatpush.xpose.msra.mxu0 0.0
        %719 = vmatpush.xpose.msra.mxu0 0.0
        %720 = vmatpush.xpose.msra.mxu0 0.0
        %721 = vmatpush.xpose.msra.mxu0 0.0
        %722 = vmatpush.xpose.msra.mxu0 0.0
        %723 = vmatpush.xpose.msra.mxu0 0.0
        %724 = vmatpush.xpose.msra.mxu0 0.0
        %725 = vmatpush.xpose.msra.mxu0 0.0
        %726 = vmatpush.xpose.msra.mxu0 0.0
        %727 = vmatpush.xpose.msra.mxu0 0.0
        %728 = vmatpush.xpose.msra.mxu0 0.0
        %729 = vmatpush.xpose.msra.mxu0 0.0
        %730 = vmatpush.xpose.msra.mxu0 0.0
        %731 = vmatpush.xpose.msra.mxu0 0.0
        %732 = vmatpush.xpose.msra.mxu0 %v715
        %733 = vmatmul.f32.gmra.mxu0 %v712
        %v734 = vpop.f32.mrf.mxu0
        %v735 = vadd.f32 0.0, %v734
        %736 = vdwg.mxu0
        %v738 = vsel %vm710, %v454, 0
        %v741 = vsel %vm710, %v556, 0
        %743 = vmatpush.xpose.msra.mxu0 0.0
        %744 = vmatpush.xpose.msra.mxu0 0.0
        %745 = vmatpush.xpose.msra.mxu0 0.0
        %746 = vmatpush.xpose.msra.mxu0 0.0
        %747 = vmatpush.xpose.msra.mxu0 0.0
        %748 = vmatpush.xpose.msra.mxu0 0.0
        %749 = vmatpush.xpose.msra.mxu0 0.0
        %750 = vmatpush.xpose.msra.mxu0 0.0
        %751 = vmatpush.xpose.msra.mxu0 0.0
        %752 = vmatpush.xpose.msra.mxu0 0.0
        %753 = vmatpush.xpose.msra.mxu0 0.0
        %754 = vmatpush.xpose.msra.mxu0 0.0
        %755 = vmatpush.xpose.msra.mxu0 0.0
        %756 = vmatpush.xpose.msra.mxu0 0.0
        %757 = vmatpush.xpose.msra.mxu0 0.0
        %758 = vmatpush.xpose.msra.mxu0 %v741
        %759 = vmatmul.f32.gmra.mxu0 %v738
        %v760 = vpop.f32.mrf.mxu0
        %v761 = vadd.f32 0.0, %v760
        %762 = vdwg.mxu0
        %v764 = vsel %vm710, %v479, 0
        %v767 = vsel %vm710, %v581, 0
        %769 = vmatpush.xpose.msra.mxu0 0.0
        %770 = vmatpush.xpose.msra.mxu0 0.0
        %771 = vmatpush.xpose.msra.mxu0 0.0
        %772 = vmatpush.xpose.msra.mxu0 0.0
        %773 = vmatpush.xpose.msra.mxu0 0.0
        %774 = vmatpush.xpose.msra.mxu0 0.0
        %775 = vmatpush.xpose.msra.mxu0 0.0
        %776 = vmatpush.xpose.msra.mxu0 0.0
        %777 = vmatpush.xpose.msra.mxu0 0.0
        %778 = vmatpush.xpose.msra.mxu0 0.0
        %779 = vmatpush.xpose.msra.mxu0 0.0
        %780 = vmatpush.xpose.msra.mxu0 0.0
        %781 = vmatpush.xpose.msra.mxu0 0.0
        %782 = vmatpush.xpose.msra.mxu0 0.0
        %783 = vmatpush.xpose.msra.mxu0 0.0
        %784 = vmatpush.xpose.msra.mxu0 %v767
        %785 = vmatmul.f32.gmra.mxu0 %v764
        %v786 = vpop.f32.mrf.mxu0
        %v787 = vadd.f32 0.0, %v786
        %788 = vdwg.mxu0
        %v790 = vsel %vm710, %v504, 0
        %v793 = vsel %vm710, %v606, 0
        %795 = vmatpush.xpose.msra.mxu0 0.0
        %796 = vmatpush.xpose.msra.mxu0 0.0
        %797 = vmatpush.xpose.msra.mxu0 0.0
        %798 = vmatpush.xpose.msra.mxu0 0.0
        %799 = vmatpush.xpose.msra.mxu0 0.0
        %800 = vmatpush.xpose.msra.mxu0 0.0
        %801 = vmatpush.xpose.msra.mxu0 0.0
        %802 = vmatpush.xpose.msra.mxu0 0.0
        %803 = vmatpush.xpose.msra.mxu0 0.0
        %804 = vmatpush.xpose.msra.mxu0 0.0
        %805 = vmatpush.xpose.msra.mxu0 0.0
        %806 = vmatpush.xpose.msra.mxu0 0.0
        %807 = vmatpush.xpose.msra.mxu0 0.0
        %808 = vmatpush.xpose.msra.mxu0 0.0
        %809 = vmatpush.xpose.msra.mxu0 0.0
        %810 = vmatpush.xpose.msra.mxu0 %v793
        %811 = vmatmul.f32.gmra.mxu0 %v790
        %v812 = vpop.f32.mrf.mxu0
        %v813 = vadd.f32 0.0, %v812
        %814 = vdwg.mxu0
        %v815 = vsel %vm710, %v735, -inf
        %816 = vmax.xlane.f32.xlu0 %v815
        %v817 = vpop.xlane.xlu0 %816
        %v818 = vsel %vm710, %v761, -inf
        %819 = vmax.xlane.f32.xlu0 %v818
        %v820 = vpop.xlane.xlu0 %819
        %v821 = vsel %vm710, %v787, -inf
        %822 = vmax.xlane.f32.xlu0 %v821
        %v823 = vpop.xlane.xlu0 %822
        %v824 = vsel %vm710, %v813, -inf
        %825 = vmax.xlane.f32.xlu0 %v824
        %v826 = vpop.xlane.xlu0 %825
        %v827 = vsub.f32 %v735, %v817
        %v828 = vsub.f32 %v761, %v820
        %v829 = vsub.f32 %v787, %v823
        %v830 = vsub.f32 %v813, %v826
        %v831 = vmul.f32 %v827, 1.442695
        %v832 = vpow.pop %v831
        %v833 = vmul.f32 %v828, 1.442695
        %v834 = vpow.pop %v833
        %v835 = vmul.f32 %v829, 1.442695
        %v836 = vpow.pop %v835
        %v837 = vmul.f32 %v830, 1.442695
        %v838 = vpow.pop %v837
        %v839 = vsel %vm710, %v832, 0.0
        %840 = vadd.xlane.f32.xlu0 %v839
        %v841 = vpop.xlane.xlu0 %840
        %v842 = vsel %vm710, %v834, 0.0
        %843 = vadd.xlane.f32.xlu0 %v842
        %v844 = vpop.xlane.xlu0 %843
        %v845 = vsel %vm710, %v836, 0.0
        %846 = vadd.xlane.f32.xlu0 %v845
        %v847 = vpop.xlane.xlu0 %846
        %v848 = vsel %vm710, %v838, 0.0
        %849 = vadd.xlane.f32.xlu0 %v848
        %v850 = vpop.xlane.xlu0 %849
        %v851 = vrcp.pop %v841
        %v852 = vrcp.pop %v844
        %v853 = vrcp.pop %v847
        %v854 = vrcp.pop %v850
        %v855 = vmul.f32 %v832, %v851
        %v856 = vmul.f32 %v834, %v852
        %v857 = vmul.f32 %v836, %v853
        %v858 = vmul.f32 %v838, %v854
        %859 = vst.msk [vmem:[%s387] sm:$0xff] %vm710, %v855
        %860 = vst.msk [vmem:[%s387 + $0x8] sm:$0xff] %vm710, %v856
        %861 = vst.msk [vmem:[%s387 + $0x10] sm:$0xff] %vm710, %v857
        %862 = vst.msk [vmem:[%s387 + $0x18] sm:$0xff] %vm710, %v858
        %v864 = vsel %vm710, %v855, 0
        %866 = vmatpush.msra.mxu0 0.0
        %867 = vmatpush.msra.mxu0 0.0
        %868 = vmatpush.msra.mxu0 0.0
        %869 = vmatpush.msra.mxu0 0.0
        %870 = vmatpush.msra.mxu0 0.0
        %871 = vmatpush.msra.mxu0 0.0
        %872 = vmatpush.msra.mxu0 0.0
        %873 = vmatpush.msra.mxu0 0.0
        %874 = vmatpush.msra.mxu0 0.0
        %875 = vmatpush.msra.mxu0 0.0
        %876 = vmatpush.msra.mxu0 0.0
        %877 = vmatpush.msra.mxu0 0.0
        %878 = vmatpush.msra.mxu0 0.0
        %879 = vmatpush.msra.mxu0 0.0
        %880 = vmatpush.msra.mxu0 0.0
        %881 = vmatpush.msra.mxu0 %v633
        %882 = vmatmul.f32.gmra.mxu0 %v864
        %v883 = vpop.f32.mrf.mxu0
        %v884 = vadd.f32 0.0, %v883
        %885 = vdwg.mxu0
        %v887 = vsel %vm710, %v856, 0
        %889 = vmatpush.msra.mxu0 0.0
        %890 = vmatpush.msra.mxu0 0.0
        %891 = vmatpush.msra.mxu0 0.0
        %892 = vmatpush.msra.mxu0 0.0
        %893 = vmatpush.msra.mxu0 0.0
        %894 = vmatpush.msra.mxu0 0.0
        %895 = vmatpush.msra.mxu0 0.0
        %896 = vmatpush.msra.mxu0 0.0
        %897 = vmatpush.msra.mxu0 0.0
        %898 = vmatpush.msra.mxu0 0.0
        %899 = vmatpush.msra.mxu0 0.0
        %900 = vmatpush.msra.mxu0 0.0
        %901 = vmatpush.msra.mxu0 0.0
        %902 = vmatpush.msra.mxu0 0.0
        %903 = vmatpush.msra.mxu0 0.0
        %904 = vmatpush.msra.mxu0 %v658
        %905 = vmatmul.f32.gmra.mxu0 %v887
        %v906 = vpop.f32.mrf.mxu0
        %v907 = vadd.f32 0.0, %v906
        %908 = vdwg.mxu0
        %v910 = vsel %vm710, %v857, 0
        %912 = vmatpush.msra.mxu0 0.0
        %913 = vmatpush.msra.mxu0 0.0
        %914 = vmatpush.msra.mxu0 0.0
        %915 = vmatpush.msra.mxu0 0.0
        %916 = vmatpush.msra.mxu0 0.0
        %917 = vmatpush.msra.mxu0 0.0
        %918 = vmatpush.msra.mxu0 0.0
        %919 = vmatpush.msra.mxu0 0.0
        %920 = vmatpush.msra.mxu0 0.0
        %921 = vmatpush.msra.mxu0 0.0
        %922 = vmatpush.msra.mxu0 0.0
        %923 = vmatpush.msra.mxu0 0.0
        %924 = vmatpush.msra.mxu0 0.0
        %925 = vmatpush.msra.mxu0 0.0
        %926 = vmatpush.msra.mxu0 0.0
        %927 = vmatpush.msra.mxu0 %v683
        %928 = vmatmul.f32.gmra.mxu0 %v910
        %v929 = vpop.f32.mrf.mxu0
        %v930 = vadd.f32 0.0, %v929
        %931 = vdwg.mxu0
        %v933 = vsel %vm710, %v858, 0
        %935 = vmatpush.msra.mxu0 0.0
        %936 = vmatpush.msra.mxu0 0.0
        %937 = vmatpush.msra.mxu0 0.0
        %938 = vmatpush.msra.mxu0 0.0
        %939 = vmatpush.msra.mxu0 0.0
        %940 = vmatpush.msra.mxu0 0.0
        %941 = vmatpush.msra.mxu0 0.0
        %942 = vmatpush.msra.mxu0 0.0
        %943 = vmatpush.msra.mxu0 0.0
        %944 = vmatpush.msra.mxu0 0.0
        %945 = vmatpush.msra.mxu0 0.0
        %946 = vmatpush.msra.mxu0 0.0
        %947 = vmatpush.msra.mxu0 0.0
        %948 = vmatpush.msra.mxu0 0.0
        %949 = vmatpush.msra.mxu0 0.0
        %950 = vmatpush.msra.mxu0 %v708
        %951 = vmatmul.f32.gmra.mxu0 %v933
        %v952 = vpop.f32.mrf.mxu0
        %v953 = vadd.f32 0.0, %v952
        %954 = vdwg.mxu0
        %v955 = vld [vmem:[%s6] sm:$0xff]
        %s956 = scalar_lea.vmem %s6, 8
        %v957 = vld [vmem:[%s956] sm:$0xff]
        %v959 = vsel %vm710, %v907, 0
        %961 = vmatpush.msra.mxu0 0.0
        %962 = vmatpush.msra.mxu0 0.0
        %963 = vmatpush.msra.mxu0 0.0
        %964 = vmatpush.msra.mxu0 0.0
        %965 = vmatpush.msra.mxu0 0.0
        %966 = vmatpush.msra.mxu0 0.0
        %967 = vmatpush.msra.mxu0 0.0
        %968 = vmatpush.msra.mxu0 0.0
        %969 = vmatpush.msra.mxu0 0.0
        %970 = vmatpush.msra.mxu0 0.0
        %971 = vmatpush.msra.mxu0 0.0
        %972 = vmatpush.msra.mxu0 0.0
        %973 = vmatpush.msra.mxu0 0.0
        %974 = vmatpush.msra.mxu0 0.0
        %975 = vmatpush.msra.mxu0 0.0
        %976 = vmatpush.msra.mxu0 %v957
        %977 = vmatmul.f32.gmra.mxu0 %v959
        %v978 = vpop.f32.mrf.mxu0
        %v979 = vadd.f32 0.0, %v978
        %980 = vdwg.mxu0
        %s981 = scalar_lea.vmem %s6, 16
        %v982 = vld [vmem:[%s981] sm:$0xff]
        %s983 = scalar_lea.vmem %s6, 24
        %v984 = vld [vmem:[%s983] sm:$0xff]
        %v986 = vsel %vm710, %v953, 0
        %988 = vmatpush.msra.mxu0 0.0
        %989 = vmatpush.msra.mxu0 0.0
        %990 = vmatpush.msra.mxu0 0.0
        %991 = vmatpush.msra.mxu0 0.0
        %992 = vmatpush.msra.mxu0 0.0
        %993 = vmatpush.msra.mxu0 0.0
        %994 = vmatpush.msra.mxu0 0.0
        %995 = vmatpush.msra.mxu0 0.0
        %996 = vmatpush.msra.mxu0 0.0
        %997 = vmatpush.msra.mxu0 0.0
        %998 = vmatpush.msra.mxu0 0.0
        %999 = vmatpush.msra.mxu0 0.0
        %1000 = vmatpush.msra.mxu0 0.0
        %1001 = vmatpush.msra.mxu0 0.0
        %1002 = vmatpush.msra.mxu0 0.0
        %1003 = vmatpush.msra.mxu0 %v984
        %1004 = vmatmul.f32.gmra.mxu0 %v986
        %v1005 = vpop.f32.mrf.mxu0
        %v1006 = vadd.f32 0.0, %v1005
        %1007 = vdwg.mxu0
        %v1009 = vsel %vm710, %v884, 0
        %1011 = vmatpush.msra.mxu0 0.0
        %1012 = vmatpush.msra.mxu0 0.0
        %1013 = vmatpush.msra.mxu0 0.0
        %1014 = vmatpush.msra.mxu0 0.0
        %1015 = vmatpush.msra.mxu0 0.0
        %1016 = vmatpush.msra.mxu0 0.0
        %1017 = vmatpush.msra.mxu0 0.0
        %1018 = vmatpush.msra.mxu0 0.0
        %1019 = vmatpush.msra.mxu0 0.0
        %1020 = vmatpush.msra.mxu0 0.0
        %1021 = vmatpush.msra.mxu0 0.0
        %1022 = vmatpush.msra.mxu0 0.0
        %1023 = vmatpush.msra.mxu0 0.0
        %1024 = vmatpush.msra.mxu0 0.0
        %1025 = vmatpush.msra.mxu0 0.0
        %1026 = vmatpush.msra.mxu0 %v955
        %1027 = vmatmul.f32.gmra.mxu0 %v1009
        %v1028 = vpop.f32.mrf.mxu0
        %v1029 = vadd.f32 %v979, %v1028
        %1030 = vdwg.mxu0
        %v1032 = vsel %vm710, %v930, 0
        %1034 = vmatpush.msra.mxu0 0.0
        %1035 = vmatpush.msra.mxu0 0.0
        %1036 = vmatpush.msra.mxu0 0.0
        %1037 = vmatpush.msra.mxu0 0.0
        %1038 = vmatpush.msra.mxu0 0.0
        %1039 = vmatpush.msra.mxu0 0.0
        %1040 = vmatpush.msra.mxu0 0.0
        %1041 = vmatpush.msra.mxu0 0.0
        %1042 = vmatpush.msra.mxu0 0.0
        %1043 = vmatpush.msra.mxu0 0.0
        %1044 = vmatpush.msra.mxu0 0.0
        %1045 = vmatpush.msra.mxu0 0.0
        %1046 = vmatpush.msra.mxu0 0.0
        %1047 = vmatpush.msra.mxu0 0.0
        %1048 = vmatpush.msra.mxu0 0.0
        %1049 = vmatpush.msra.mxu0 %v982
        %1050 = vmatmul.f32.gmra.mxu0 %v1032
        %v1051 = vpop.f32.mrf.mxu0
        %v1052 = vadd.f32 %v1006, %v1051
        %1053 = vdwg.mxu0
        %v1054 = vadd.f32 %v1029, %v1052
        %v1055 = vadd.f32 %v400, %v1054
        %v1056 = vsel %vm407, %v1055, 0.0
        %1057 = vadd.xlane.f32.xlu0 %v1056
        %v1058 = vpop.xlane.xlu0 %1057
        %v1059 = vrcp.pop 32.0
        %v1060 = vmul.f32 32.0, %v1059
        %v1061 = vsub.f32 1.0, %v1060
        %v1062 = vmul.f32 %v1059, %v1061
        %v1063 = vadd.f32 %v1059, %v1062
        %vm1064 = vweird.f32 %v1059
        %v1065 = vsel %vm1064, %v1059, %v1063
        %v1066 = vmul.f32 %v1058, %v1065
        %v1067 = vsub.f32 %v1055, %v1066
        %v1068 = vmul.f32 %v1067, %v1067
        %v1069 = vsel %vm407, %v1068, 0.0
        %1070 = vadd.xlane.f32.xlu0 %v1069
        %v1071 = vpop.xlane.xlu0 %1070
        %v1072 = vmul.f32 %v1071, %v1065
        %v1073 = vadd.f32 %v1072, 1e-06
        %v1074 = vrsqrt.pop %v1073
        %v1075 = vmul.f32 %v1074, %v1073
        %v1076 = vmul.f32 %v1075, %v1074
        %v1077 = vmul.f32 0.5, %v1076
        %v1078 = vsub.f32 1.5, %v1077
        %v1079 = vmul.f32 %v1074, %v1078
        %vm1080 = vweird.f32 %v1073
        %vm1081 = vweird.f32 %v1074
        %vm1082 = vmor %vm1080, %vm1081
        %v1083 = vsel %vm1082, %v1074, %v1079
        %v1084 = vmul.f32 %v1067, %v1083
        %v1085 = vld [vmem:[%s7] sm:$0x1]
        %v1087 = vperm.slane %v1085, 0
        %v1089 = vmul.f32 %v1084, %v1087
        %v1090 = vld [vmem:[%s8] sm:$0x1]
        %v1092 = vperm.slane %v1090, 0
        %v1094 = vadd.f32 %v1089, %v1092
        %1095 = vst.msk [vmem:[%s380] sm:$0xff] %vm407, %v1094
        %s1096 = sand.u32 %s240, 1
        %s1097 = scalar_lea.sflag [#allocation3], %s1096
        %s1098 = sand.u32 %s240, 1
        %s1099 = smul.addr %s1098, 8
        %s1100 = scalar_lea.vmem [#allocation2], %s1099
        %s1101 = sand.u32 %s266, 1
        %s1102 = scalar_lea.sflag [#allocation5], %s1101
        %s1103 = sand.u32 %s266, 1
        %s1104 = smul.addr %s1103, 32
        %s1105 = scalar_lea.vmem [#allocation4], %s1104
        // Predicated region
        $region57: #{tpu_custom_call.1} parent=55 // pred_check
          %p1106 = pneg %p250
        $region58: #{tpu_custom_call.1} parent=55 // pred_check_branch
          %1108 = sbr.rel (%p1106) target = $region60
        $region59: #{tpu_custom_call.1} parent=55 // pred_region
          %1110 = vsyncadd %s1097, 0
          %s1111 = smul.addr %s28, 8
          %s1112 = scalar_lea.hbm %s9, %s1111
          %s1114 = sshll.u32 %s1100, 4
          %s1115 = int_to_ptr.vmem [resolvable:$true] %s1114
          %s1116 = sshll.u32 %s1112, 4
          %s1117 = int_to_ptr.hbm [resolvable:$true] %s1116
          %1119 = dma.vmem_to_hbm [thread:$0]  %s1115, 128, %s1117, %s1097
        $region60: #{tpu_custom_call.1} parent=55 // pred_fallthru
          _
        // Predicated region
        $region61: #{tpu_custom_call.1} parent=55 // pred_check
          %p1120 = pneg %p276
        $region62: #{tpu_custom_call.1} parent=55 // pred_check_branch
          %1122 = sbr.rel (%p1120) target = $region64
        $region63: #{tpu_custom_call.1} parent=55 // pred_region
          %1124 = vsyncadd %s1102, 0
          %s1125 = smul.addr %s28, 4
          %s1126 = smul.addr %s1125, 8
          %s1127 = scalar_lea.hbm %s10, %s1126
          %s1128 = sshll.u32 %s1105, 4
          %s1129 = int_to_ptr.vmem [resolvable:$true] %s1128
          %s1130 = sshll.u32 %s1127, 4
          %s1131 = int_to_ptr.hbm [resolvable:$true] %s1130
          %1136 = dma.vmem_to_hbm [thread:$0]  %s1129, 512, %s1131, %s1102, 128, 128, 8
        $region64: #{tpu_custom_call.1} parent=55 // pred_fallthru
          _
      $region56: #{tpu_custom_call.1} parent=5 // pred_fallthru
        _
      %p1137 = scmp.le.s32.totalorder 2, %s23
      // Predicated region
      $region65: #{tpu_custom_call.1} parent=5 // pred_check
        %p1138 = pneg %p1137
      $region66: #{tpu_custom_call.1} parent=5 // pred_check_branch
        %1140 = sbr.rel (%p1138) target = $region68
      $region67: #{tpu_custom_call.1} parent=5 // pred_region
        %s1141 = ssub.s32 %s23, 2
        // Predicated region
        $region69: #{tpu_custom_call.1} parent=67 // pred_check
          %p1142 = pneg %p256
        $region70: #{tpu_custom_call.1} parent=67 // pred_check_branch
          %1144 = sbr.rel (%p1142) target = $region72
        $region71: #{tpu_custom_call.1} parent=67 // pred_region
          %s1145 = sand.u32 %s241, 1
          %s1146 = scalar_lea.sflag [#allocation3], %s1145
          %s1147 = sand.u32 %s241, 1
          %s1148 = smul.addr %s1147, 8
          %s1149 = scalar_lea.vmem [#allocation2], %s1148
          %1151 = dma.done %s1146, 128
        $region72: #{tpu_custom_call.1} parent=67 // pred_fallthru
          _
        // Predicated region
        $region73: #{tpu_custom_call.1} parent=67 // pred_check
          %p1152 = pneg %p282
        $region74: #{tpu_custom_call.1} parent=67 // pred_check_branch
          %1154 = sbr.rel (%p1152) target = $region76
        $region75: #{tpu_custom_call.1} parent=67 // pred_region
          %s1155 = sand.u32 %s267, 1
          %s1156 = scalar_lea.sflag [#allocation5], %s1155
          %s1157 = sand.u32 %s267, 1
          %s1158 = smul.addr %s1157, 32
          %s1159 = scalar_lea.vmem [#allocation4], %s1158
          %1161 = dma.done %s1156, 512
        $region76: #{tpu_custom_call.1} parent=67 // pred_fallthru
          _
      $region68: #{tpu_custom_call.1} parent=5 // pred_fallthru
        _
    $region6: #{tpu_custom_call.1} parent=1 // loop_footer
      %s27 = sadd.s32 1, %s23
    $region7: #{tpu_custom_call.1} parent=1 // loop_footer_branch
      %22 = sbr.rel target = $region3
    $region8: #{tpu_custom_call.1} parent=1 // loop_exit
      _
    %1162 = vsyncpa [#allocation3], 1
    %s1163 = scalar_lea.sflag [#allocation3], 1
    %1164 = vsyncpa %s1163, 1
    %1165 = vsyncpa [#allocation5], 1
    %s1166 = scalar_lea.sflag [#allocation5], 1
    %1167 = vsyncpa %s1166, 1

</llo_original>
